<compile_context>
chip_gen: v7x
topology: tpu7x:2x2x1
jax: 0.10.0
libtpu: 0.0.40
codegen_flags: <defaults>
</compile_context>

<pallas_src>
import functools

import jax
import jax.numpy as jnp
from jax.experimental import pallas as pl
from jax.experimental.pallas import tpu as pltpu

LN_EPS = 1e-5                    # PyTorch nn.LayerNorm default
_INV_SQRT2 = 0.7071067811865476  # 1/sqrt(2) for exact erf GELU


def _layer_norm(x, gamma, beta):
    mu = jnp.mean(x, axis=-1, keepdims=True)
    var = jnp.mean((x - mu) ** 2, axis=-1, keepdims=True)
    return (x - mu) * jax.lax.rsqrt(var + LN_EPS) * gamma + beta


# ---------------------------------------------------------------------------
# Single fused kernel: embed + depth x (MHSA, MLP) + mean-pool/LayerNorm head
#   bs = samples processed per grid step (static): dense matmuls run on all
#   bs*n rows at once; attention is done per sample via sublane-aligned
#   static row slices.
# ---------------------------------------------------------------------------
def ct_kernel(x_ref, we_ref, eb_ref,
              ln1g_ref, ln1b_ref, wqkv_ref, wo_ref, bo_ref,
              ln2g_ref, ln2b_ref, w1_ref, b1_ref, w2_ref, b2_ref,
              hg_ref, hb_ref, o_ref, *, depth, heads, dim_head, bs, n):
    inner = heads * dim_head

    # ---- patch embedding + (pre-folded) bias + positional embedding ----
    x = (jnp.dot(x_ref[...], we_ref[...], preferred_element_type=jnp.float32)
         + eb_ref[...])                                             # (bs*n, D)

    # ---- transformer layers (static unroll over depth) ----
    for l in range(depth):
        # PreNorm + multi-head self-attention + residual
        xn = _layer_norm(x, ln1g_ref[l], ln1b_ref[l])
        # scale (1/sqrt(dim_head)) is already folded into the q columns of wqkv
        qkv = jnp.dot(xn, wqkv_ref[l],
                      preferred_element_type=jnp.float32)           # (bs*n, 3*inner)

        sample_outs = []
        for bi in range(bs):                                        # static unroll
            r0 = bi * n                                             # sublane-aligned
            head_outs = []
            for h in range(heads):                                  # static unroll
                c = h * dim_head
                qh = qkv[r0:r0 + n, c:c + dim_head]
                kh = qkv[r0:r0 + n, inner + c:inner + c + dim_head]
                vh = qkv[r0:r0 + n, 2 * inner + c:2 * inner + c + dim_head]
                # q @ k^T without materializing kh.T (contract last dims)
                dots = jax.lax.dot_general(
                    qh, kh, dimension_numbers=(((1,), (1,)), ((), ())),
                    preferred_element_type=jnp.float32)             # (n, n)
                m = jnp.max(dots, axis=-1, keepdims=True)
                p = jnp.exp(dots - m)
                denom = jnp.sum(p, axis=-1, keepdims=True)
                # deferred softmax normalization: normalize the (n, dim_head)
                # output instead of the (n, n) probability tile
                oh = jnp.dot(p, vh, preferred_element_type=jnp.float32)
                head_outs.append(oh * pl.reciprocal(denom, approx=True))
            sample_outs.append(head_outs[0] if heads == 1
                               else jnp.concatenate(head_outs, axis=-1))
        concat = (sample_outs[0] if bs == 1
                  else jnp.concatenate(sample_outs, axis=0))        # (bs*n, inner)
        x = x + jnp.dot(concat, wo_ref[l],
                        preferred_element_type=jnp.float32) + bo_ref[l]

        # PreNorm + MLP (exact erf GELU) + residual
        xn = _layer_norm(x, ln2g_ref[l], ln2b_ref[l])
        h1 = jnp.dot(xn, w1_ref[l],
                     preferred_element_type=jnp.float32) + b1_ref[l]
        h1 = 0.5 * h1 * (1.0 + jax.lax.erf(h1 * _INV_SQRT2))
        x = x + jnp.dot(h1, w2_ref[l],
                        preferred_element_type=jnp.float32) + b2_ref[l]

    # ---- head: per sample, x.mean(dim=2) then LayerNorm(dim) over tokens ----
    # (the PyTorch module implicitly requires n == dim here)
    rows = []
    for bi in range(bs):
        xb = x[bi * n:(bi + 1) * n, :]                              # (n, D)
        pooled = jnp.mean(xb.T, axis=0, keepdims=True)              # (1, n) lane-dense
        mu = jnp.mean(pooled)
        var = jnp.mean((pooled - mu) ** 2)
        rows.append((pooled - mu) * jax.lax.rsqrt(var + LN_EPS)
                    * hg_ref[...] + hb_ref[...])                    # (1, n)
    o_ref[0] = rows[0] if bs == 1 else jnp.concatenate(rows, axis=0)


# ---------------------------------------------------------------------------
# Wrapper: pre-fold constants, pre-transpose / stack weights, one pallas_call
# ---------------------------------------------------------------------------
def _samples_per_step(batch):
    """Fold the whole batch into one grid step on single-TC chips (v5e/v6e);
    keep one sample per grid step on multi-TC chips (v7x) so the parallel
    grid axis shards samples across TensorCores."""
    try:
        kind = jax.devices()[0].device_kind.lower()
    except Exception:  # pragma: no cover - defensive
        kind = ""
    multi_tc = ("v7" in kind) or ("7x" in kind) or ("tpu7" in kind)
    return 1 if (multi_tc and batch > 1) else batch


@functools.partial(jax.jit, static_argnames=("heads", "dim_head"))
def ct_forward(data, params, *, heads, dim_head):
    b, n, hh, ww = data.shape
    patch_dim = hh * ww
    dim = params["w_embed"].shape[0]
    depth = len(params["layers"])
    inner = heads * dim_head
    mlp_dim = params["layers"][0]["w1"].shape[0]
    scale = dim_head ** (-0.5)

    # The module's x.mean(dim=2) followed by LayerNorm(dim) is only
    # shape-consistent when num_patches == dim.
    assert n == dim, "CT requires num_patches == dim (LayerNorm head over tokens)"
    assert patch_dim == params["w_embed"].shape[1]

    bs = _samples_per_step(b)          # samples per grid step (static at trace)
    grid = (b // bs,)

    # -- wrapper-side constant folding & weight prep --
    we = params["w_embed"].T                                        # (patch_dim, dim)
    # fold bias + positional embedding into one tensor, tiled per grid-step batch
    ebias = params["pos"][0, :n] + params["b_embed"][None, :]       # (n, dim)
    ebias = jnp.tile(ebias, (bs, 1))                                # (bs*n, dim)

    layers = params["layers"]
    stack_vec = lambda k, d: jnp.stack([lp[k].reshape(1, d) for lp in layers])
    # fold 1/sqrt(dim_head) into the q columns of W_qkv
    q_scale = jnp.concatenate([jnp.full((inner,), scale, jnp.float32),
                               jnp.ones((2 * inner,), jnp.float32)])
    ln1g = stack_vec("ln1_g", dim)                                  # (depth, 1, dim)
    ln1b = stack_vec("ln1_b", dim)
    wqkv = jnp.stack([lp["wqkv"].T * q_scale[None, :] for lp in layers])  # (depth, dim, 3*inner)
    wo = jnp.stack([lp["wo"].T for lp in layers])                   # (depth, inner, dim)
    bo = stack_vec("bo", dim)
    ln2g = stack_vec("ln2_g", dim)
    ln2b = stack_vec("ln2_b", dim)
    w1 = jnp.stack([lp["w1"].T for lp in layers])                   # (depth, dim, mlp_dim)
    b1 = stack_vec("b1", mlp_dim)
    w2 = jnp.stack([lp["w2"].T for lp in layers])                   # (depth, mlp_dim, dim)
    b2 = stack_vec("b2", dim)
    hg = params["head_g"].reshape(1, dim)
    hb = params["head_b"].reshape(1, dim)

    # 'b n h w -> b n (h w)' then merge batch into rows (contiguous reshape)
    x = data.reshape(b * n, patch_dim)

    kern = functools.partial(ct_kernel, depth=depth, heads=heads,
                             dim_head=dim_head, bs=bs, n=n)

    def full(arr):
        nd = arr.ndim
        return pl.BlockSpec(arr.shape, lambda i, _nd=nd: (0,) * _nd)

    out = pl.pallas_call(
        kern,
        out_shape=jax.ShapeDtypeStruct((b // bs, bs, n), jnp.float32),
        grid=grid,
        in_specs=[
            pl.BlockSpec((bs * n, patch_dim), lambda i: (i, 0)),    # activations
            full(we), full(ebias),                                  # embed
            full(ln1g), full(ln1b), full(wqkv), full(wo), full(bo), # attention
            full(ln2g), full(ln2b), full(w1), full(b1), full(w2), full(b2),  # MLP
            full(hg), full(hb),                                     # head LN
        ],
        out_specs=pl.BlockSpec((1, bs, n), lambda i: (i, 0, 0)),
        compiler_params=pltpu.CompilerParams(
            dimension_semantics=("parallel",)),
    )(x, we, ebias, ln1g, ln1b, wqkv, wo, bo,
      ln2g, ln2b, w1, b1, w2, b2, hg, hb)

    return out.reshape(b, n)                                        # (B, N) with N == dim


# ---------------------------------------------------------------------------
# Deterministic parameter init (PyTorch layouts; synthetic values)
# ---------------------------------------------------------------------------
def init_params(key, *, num_patches, dim, depth, heads, dim_head, mlp_dim,
                channels=1):
    patch_dim = channels * num_patches
    inner = heads * dim_head

    def nrm(k, shape, scale=0.05):
        return (scale * jax.random.normal(k, shape)).astype(jnp.float32)

    keys = jax.random.split(key, 3 + depth)
    params = {
        "w_embed": nrm(keys[0], (dim, patch_dim)),       # nn.Linear weight layout
        "b_embed": nrm(keys[1], (dim,)),
        "pos": jax.random.normal(keys[2], (1, num_patches, dim),
                                 dtype=jnp.float32),
        "head_g": jnp.ones((dim,), jnp.float32),         # mlp_head LayerNorm
        "head_b": jnp.zeros((dim,), jnp.float32),
        "layers": [],
    }
    for l in range(depth):
        lk = jax.random.split(keys[3 + l], 6)
        params["layers"].append({
            "ln1_g": jnp.ones((dim,), jnp.float32),
            "ln1_b": jnp.zeros((dim,), jnp.float32),
            "wqkv": nrm(lk[0], (3 * inner, dim)),        # to_qkv (bias=False)
            "wo": nrm(lk[1], (dim, inner)),              # to_out Linear
            "bo": nrm(lk[2], (dim,)),
            "ln2_g": jnp.ones((dim,), jnp.float32),
            "ln2_b": jnp.zeros((dim,), jnp.float32),
            "w1": nrm(lk[3], (mlp_dim, dim)),
            "b1": nrm(lk[4], (mlp_dim,)),
            "w2": nrm(lk[5], (dim, mlp_dim)),
            "b2": jnp.zeros((dim,), jnp.float32),
        })
    return params


if __name__ == "__main__":
    # Config: num_patches = dim = 32 so that the module's mean(dim=2) followed
    # by LayerNorm(dim) is shape-consistent (as the PyTorch code requires).
    NUM_PATCHES, DIM, DEPTH, HEADS, DIM_HEAD, MLP_DIM, CHANNELS = 32, 32, 2, 2, 16, 64, 1
    B, N, H, W = 2, NUM_PATCHES, 4, 8          # H*W == channels*num_patches

    root = jax.random.PRNGKey(0)
    kd, kp = jax.random.split(root)
    data = jax.random.normal(kd, (B, N, H, W), dtype=jnp.float32)
    params = init_params(kp, num_patches=NUM_PATCHES, dim=DIM, depth=DEPTH,
                         heads=HEADS, dim_head=DIM_HEAD, mlp_dim=MLP_DIM,
                         channels=CHANNELS)

    out = ct_forward(data, params, heads=HEADS, dim_head=DIM_HEAD)
    out = jax.block_until_ready(out)
    assert out.shape == (B, DIM) and out.dtype == jnp.float32
    print("KERNEL_OK")
</pallas_src>

<mosaic_0001>
module attributes {stable_mosaic.version = 11 : i64} {
  func.func @ct_kernel(%arg0: i32, %arg1: memref<64x32xf32, #tpu.memory_space<vmem>>, %arg2: memref<32x32xf32, #tpu.memory_space<vmem>>, %arg3: memref<64x32xf32, #tpu.memory_space<vmem>>, %arg4: memref<2x1x32xf32, #tpu.memory_space<vmem>>, %arg5: memref<2x1x32xf32, #tpu.memory_space<vmem>>, %arg6: memref<2x32x96xf32, #tpu.memory_space<vmem>>, %arg7: memref<2x32x32xf32, #tpu.memory_space<vmem>>, %arg8: memref<2x1x32xf32, #tpu.memory_space<vmem>>, %arg9: memref<2x1x32xf32, #tpu.memory_space<vmem>>, %arg10: memref<2x1x32xf32, #tpu.memory_space<vmem>>, %arg11: memref<2x32x64xf32, #tpu.memory_space<vmem>>, %arg12: memref<2x1x64xf32, #tpu.memory_space<vmem>>, %arg13: memref<2x64x32xf32, #tpu.memory_space<vmem>>, %arg14: memref<2x1x32xf32, #tpu.memory_space<vmem>>, %arg15: memref<1x32xf32, #tpu.memory_space<vmem>>, %arg16: memref<1x32xf32, #tpu.memory_space<vmem>>, %arg17: memref<1x2x32xf32, #tpu.memory_space<vmem>>) attributes {dimension_semantics = [#tpu.dimension_semantics<parallel>], iteration_bounds = array<i64: 1>, scalar_prefetch = 0 : i64, scratch_operands = 0 : i64, tpu.core_type = #tpu.core_type<tc>, window_params = [{transform_indices = @transform_0, window_bounds = array<i64: 64, 32>}, {pipeline_mode = #tpu.pipeline_mode<synchronous>, transform_indices = @transform_1, window_bounds = array<i64: 32, 32>}, {pipeline_mode = #tpu.pipeline_mode<synchronous>, transform_indices = @transform_2, window_bounds = array<i64: 64, 32>}, {pipeline_mode = #tpu.pipeline_mode<synchronous>, transform_indices = @transform_3, window_bounds = array<i64: 2, 1, 32>}, {pipeline_mode = #tpu.pipeline_mode<synchronous>, transform_indices = @transform_4, window_bounds = array<i64: 2, 1, 32>}, {pipeline_mode = #tpu.pipeline_mode<synchronous>, transform_indices = @transform_5, window_bounds = array<i64: 2, 32, 96>}, {pipeline_mode = #tpu.pipeline_mode<synchronous>, transform_indices = @transform_6, window_bounds = array<i64: 2, 32, 32>}, {pipeline_mode = #tpu.pipeline_mode<synchronous>, transform_indices = @transform_7, window_bounds = array<i64: 2, 1, 32>}, {pipeline_mode = #tpu.pipeline_mode<synchronous>, transform_indices = @transform_8, window_bounds = array<i64: 2, 1, 32>}, {pipeline_mode = #tpu.pipeline_mode<synchronous>, transform_indices = @transform_9, window_bounds = array<i64: 2, 1, 32>}, {pipeline_mode = #tpu.pipeline_mode<synchronous>, transform_indices = @transform_10, window_bounds = array<i64: 2, 32, 64>}, {pipeline_mode = #tpu.pipeline_mode<synchronous>, transform_indices = @transform_11, window_bounds = array<i64: 2, 1, 64>}, {pipeline_mode = #tpu.pipeline_mode<synchronous>, transform_indices = @transform_12, window_bounds = array<i64: 2, 64, 32>}, {pipeline_mode = #tpu.pipeline_mode<synchronous>, transform_indices = @transform_13, window_bounds = array<i64: 2, 1, 32>}, {pipeline_mode = #tpu.pipeline_mode<synchronous>, transform_indices = @transform_14, window_bounds = array<i64: 1, 32>}, {pipeline_mode = #tpu.pipeline_mode<synchronous>, transform_indices = @transform_15, window_bounds = array<i64: 1, 32>}, {transform_indices = @transform_16, window_bounds = array<i64: 1, 2, 32>}]} {
    %c0 = arith.constant 0 : index
    %c0_0 = arith.constant 0 : index
    %0 = vector.load %arg1[%c0, %c0_0] : memref<64x32xf32, #tpu.memory_space<vmem>>, vector<64x32xf32>
    %c0_1 = arith.constant 0 : index
    %c0_2 = arith.constant 0 : index
    %1 = vector.load %arg2[%c0_1, %c0_2] : memref<32x32xf32, #tpu.memory_space<vmem>>, vector<32x32xf32>
    %cst = arith.constant dense<0.000000e+00> : vector<64x32xf32>
    %2 = tpu.matmul %0, %1, %cst {dimension_numbers = #tpu.dot_dimension_numbers<[1], [0], [0], [1], [0, 0, 1, 1], [], []>} : vector<64x32xf32>, vector<32x32xf32>, vector<64x32xf32> -> vector<64x32xf32>
    %c0_3 = arith.constant 0 : index
    %c0_4 = arith.constant 0 : index
    %3 = vector.load %arg3[%c0_3, %c0_4] : memref<64x32xf32, #tpu.memory_space<vmem>>, vector<64x32xf32>
    %4 = arith.addf %2, %3 : vector<64x32xf32>
    %c0_5 = arith.constant 0 : index
    %c0_6 = arith.constant 0 : index
    %c0_7 = arith.constant 0 : index
    %5 = vector.load %arg4[%c0_5, %c0_6, %c0_7] : memref<2x1x32xf32, #tpu.memory_space<vmem>>, vector<1x1x32xf32>
    %6 = vector.shape_cast %5 : vector<1x1x32xf32> to vector<1x32xf32>
    %c0_8 = arith.constant 0 : index
    %c0_9 = arith.constant 0 : index
    %c0_10 = arith.constant 0 : index
    %7 = vector.load %arg5[%c0_8, %c0_9, %c0_10] : memref<2x1x32xf32, #tpu.memory_space<vmem>>, vector<1x1x32xf32>
    %8 = vector.shape_cast %7 : vector<1x1x32xf32> to vector<1x32xf32>
    %cst_11 = arith.constant dense<0.000000e+00> : vector<64xf32>
    %9 = vector.multi_reduction <add>, %4, %cst_11 [1] : vector<64x32xf32> to vector<64xf32>
    %10 = vector.shape_cast %9 : vector<64xf32> to vector<64x1xf32>
    %cst_12 = arith.constant 3.200000e+01 : f32
    %11 = vector.broadcast %cst_12 : f32 to vector<64x1xf32>
    %12 = arith.divf %10, %11 : vector<64x1xf32>
    %13 = vector.broadcast %12 : vector<64x1xf32> to vector<64x32xf32>
    %14 = arith.subf %4, %13 : vector<64x32xf32>
    %15 = arith.mulf %14, %14 : vector<64x32xf32>
    %cst_13 = arith.constant dense<0.000000e+00> : vector<64xf32>
    %16 = vector.multi_reduction <add>, %15, %cst_13 [1] : vector<64x32xf32> to vector<64xf32>
    %17 = vector.shape_cast %16 : vector<64xf32> to vector<64x1xf32>
    %cst_14 = arith.constant 3.200000e+01 : f32
    %18 = vector.broadcast %cst_14 : f32 to vector<64x1xf32>
    %19 = arith.divf %17, %18 : vector<64x1xf32>
    %20 = vector.broadcast %12 : vector<64x1xf32> to vector<64x32xf32>
    %21 = arith.subf %4, %20 : vector<64x32xf32>
    %cst_15 = arith.constant 9.99999974E-6 : f32
    %22 = vector.broadcast %cst_15 : f32 to vector<64x1xf32>
    %23 = arith.addf %19, %22 : vector<64x1xf32>
    %24 = math.rsqrt %23 : vector<64x1xf32>
    %25 = vector.broadcast %24 : vector<64x1xf32> to vector<64x32xf32>
    %26 = arith.mulf %21, %25 : vector<64x32xf32>
    %27 = vector.broadcast %6 : vector<1x32xf32> to vector<64x32xf32>
    %28 = arith.mulf %26, %27 : vector<64x32xf32>
    %29 = vector.broadcast %8 : vector<1x32xf32> to vector<64x32xf32>
    %30 = arith.addf %28, %29 : vector<64x32xf32>
    %c0_16 = arith.constant 0 : index
    %c0_17 = arith.constant 0 : index
    %c0_18 = arith.constant 0 : index
    %31 = vector.load %arg6[%c0_16, %c0_17, %c0_18] : memref<2x32x96xf32, #tpu.memory_space<vmem>>, vector<1x32x96xf32>
    %32 = vector.shape_cast %31 : vector<1x32x96xf32> to vector<32x96xf32>
    %cst_19 = arith.constant dense<0.000000e+00> : vector<64x96xf32>
    %33 = tpu.matmul %30, %32, %cst_19 {dimension_numbers = #tpu.dot_dimension_numbers<[1], [0], [0], [1], [0, 0, 1, 1], [], []>} : vector<64x32xf32>, vector<32x96xf32>, vector<64x96xf32> -> vector<64x96xf32>
    %34 = vector.extract_strided_slice %33 {offsets = [0, 0], sizes = [32, 16], strides = [1, 1]} : vector<64x96xf32> to vector<32x16xf32>
    %35 = vector.extract_strided_slice %33 {offsets = [0, 32], sizes = [32, 16], strides = [1, 1]} : vector<64x96xf32> to vector<32x16xf32>
    %36 = vector.extract_strided_slice %33 {offsets = [0, 64], sizes = [32, 16], strides = [1, 1]} : vector<64x96xf32> to vector<32x16xf32>
    %cst_20 = arith.constant dense<0.000000e+00> : vector<32x32xf32>
    %37 = tpu.matmul %34, %35, %cst_20 {dimension_numbers = #tpu.dot_dimension_numbers<[1], [1], [0], [0], [0, 0, 1, 0], [], []>} : vector<32x16xf32>, vector<32x16xf32>, vector<32x32xf32> -> vector<32x32xf32>
    %cst_21 = arith.constant dense<0xFF800000> : vector<32xf32>
    %38 = vector.multi_reduction <maximumf>, %37, %cst_21 [1] : vector<32x32xf32> to vector<32xf32>
    %39 = vector.shape_cast %38 : vector<32xf32> to vector<32x1xf32>
    %40 = vector.broadcast %39 : vector<32x1xf32> to vector<32x32xf32>
    %41 = arith.subf %37, %40 : vector<32x32xf32>
    %42 = math.exp %41 : vector<32x32xf32>
    %cst_22 = arith.constant dense<0.000000e+00> : vector<32xf32>
    %43 = vector.multi_reduction <add>, %42, %cst_22 [1] : vector<32x32xf32> to vector<32xf32>
    %44 = vector.shape_cast %43 : vector<32xf32> to vector<32x1xf32>
    %cst_23 = arith.constant dense<0.000000e+00> : vector<32x16xf32>
    %45 = tpu.matmul %42, %36, %cst_23 {dimension_numbers = #tpu.dot_dimension_numbers<[1], [0], [0], [1], [0, 0, 1, 1], [], []>} : vector<32x32xf32>, vector<32x16xf32>, vector<32x16xf32> -> vector<32x16xf32>
    %46 = tpu.reciprocal %44 {approx = true} : vector<32x1xf32> -> vector<32x1xf32>
    %47 = vector.broadcast %46 : vector<32x1xf32> to vector<32x16xf32>
    %48 = arith.mulf %45, %47 : vector<32x16xf32>
    %49 = vector.extract_strided_slice %33 {offsets = [0, 16], sizes = [32, 16], strides = [1, 1]} : vector<64x96xf32> to vector<32x16xf32>
    %50 = vector.extract_strided_slice %33 {offsets = [0, 48], sizes = [32, 16], strides = [1, 1]} : vector<64x96xf32> to vector<32x16xf32>
    %51 = vector.extract_strided_slice %33 {offsets = [0, 80], sizes = [32, 16], strides = [1, 1]} : vector<64x96xf32> to vector<32x16xf32>
    %cst_24 = arith.constant dense<0.000000e+00> : vector<32x32xf32>
    %52 = tpu.matmul %49, %50, %cst_24 {dimension_numbers = #tpu.dot_dimension_numbers<[1], [1], [0], [0], [0, 0, 1, 0], [], []>} : vector<32x16xf32>, vector<32x16xf32>, vector<32x32xf32> -> vector<32x32xf32>
    %cst_25 = arith.constant dense<0xFF800000> : vector<32xf32>
    %53 = vector.multi_reduction <maximumf>, %52, %cst_25 [1] : vector<32x32xf32> to vector<32xf32>
    %54 = vector.shape_cast %53 : vector<32xf32> to vector<32x1xf32>
    %55 = vector.broadcast %54 : vector<32x1xf32> to vector<32x32xf32>
    %56 = arith.subf %52, %55 : vector<32x32xf32>
    %57 = math.exp %56 : vector<32x32xf32>
    %cst_26 = arith.constant dense<0.000000e+00> : vector<32xf32>
    %58 = vector.multi_reduction <add>, %57, %cst_26 [1] : vector<32x32xf32> to vector<32xf32>
    %59 = vector.shape_cast %58 : vector<32xf32> to vector<32x1xf32>
    %cst_27 = arith.constant dense<0.000000e+00> : vector<32x16xf32>
    %60 = tpu.matmul %57, %51, %cst_27 {dimension_numbers = #tpu.dot_dimension_numbers<[1], [0], [0], [1], [0, 0, 1, 1], [], []>} : vector<32x32xf32>, vector<32x16xf32>, vector<32x16xf32> -> vector<32x16xf32>
    %61 = tpu.reciprocal %59 {approx = true} : vector<32x1xf32> -> vector<32x1xf32>
    %62 = vector.broadcast %61 : vector<32x1xf32> to vector<32x16xf32>
    %63 = arith.mulf %60, %62 : vector<32x16xf32>
    %64 = tpu.concatenate %48, %63 in 1 : vector<32x16xf32>, vector<32x16xf32> -> vector<32x32xf32>
    %65 = vector.extract_strided_slice %33 {offsets = [32, 0], sizes = [32, 16], strides = [1, 1]} : vector<64x96xf32> to vector<32x16xf32>
    %66 = vector.extract_strided_slice %33 {offsets = [32, 32], sizes = [32, 16], strides = [1, 1]} : vector<64x96xf32> to vector<32x16xf32>
    %67 = vector.extract_strided_slice %33 {offsets = [32, 64], sizes = [32, 16], strides = [1, 1]} : vector<64x96xf32> to vector<32x16xf32>
    %cst_28 = arith.constant dense<0.000000e+00> : vector<32x32xf32>
    %68 = tpu.matmul %65, %66, %cst_28 {dimension_numbers = #tpu.dot_dimension_numbers<[1], [1], [0], [0], [0, 0, 1, 0], [], []>} : vector<32x16xf32>, vector<32x16xf32>, vector<32x32xf32> -> vector<32x32xf32>
    %cst_29 = arith.constant dense<0xFF800000> : vector<32xf32>
    %69 = vector.multi_reduction <maximumf>, %68, %cst_29 [1] : vector<32x32xf32> to vector<32xf32>
    %70 = vector.shape_cast %69 : vector<32xf32> to vector<32x1xf32>
    %71 = vector.broadcast %70 : vector<32x1xf32> to vector<32x32xf32>
    %72 = arith.subf %68, %71 : vector<32x32xf32>
    %73 = math.exp %72 : vector<32x32xf32>
    %cst_30 = arith.constant dense<0.000000e+00> : vector<32xf32>
    %74 = vector.multi_reduction <add>, %73, %cst_30 [1] : vector<32x32xf32> to vector<32xf32>
    %75 = vector.shape_cast %74 : vector<32xf32> to vector<32x1xf32>
    %cst_31 = arith.constant dense<0.000000e+00> : vector<32x16xf32>
    %76 = tpu.matmul %73, %67, %cst_31 {dimension_numbers = #tpu.dot_dimension_numbers<[1], [0], [0], [1], [0, 0, 1, 1], [], []>} : vector<32x32xf32>, vector<32x16xf32>, vector<32x16xf32> -> vector<32x16xf32>
    %77 = tpu.reciprocal %75 {approx = true} : vector<32x1xf32> -> vector<32x1xf32>
    %78 = vector.broadcast %77 : vector<32x1xf32> to vector<32x16xf32>
    %79 = arith.mulf %76, %78 : vector<32x16xf32>
    %80 = vector.extract_strided_slice %33 {offsets = [32, 16], sizes = [32, 16], strides = [1, 1]} : vector<64x96xf32> to vector<32x16xf32>
    %81 = vector.extract_strided_slice %33 {offsets = [32, 48], sizes = [32, 16], strides = [1, 1]} : vector<64x96xf32> to vector<32x16xf32>
    %82 = vector.extract_strided_slice %33 {offsets = [32, 80], sizes = [32, 16], strides = [1, 1]} : vector<64x96xf32> to vector<32x16xf32>
    %cst_32 = arith.constant dense<0.000000e+00> : vector<32x32xf32>
    %83 = tpu.matmul %80, %81, %cst_32 {dimension_numbers = #tpu.dot_dimension_numbers<[1], [1], [0], [0], [0, 0, 1, 0], [], []>} : vector<32x16xf32>, vector<32x16xf32>, vector<32x32xf32> -> vector<32x32xf32>
    %cst_33 = arith.constant dense<0xFF800000> : vector<32xf32>
    %84 = vector.multi_reduction <maximumf>, %83, %cst_33 [1] : vector<32x32xf32> to vector<32xf32>
    %85 = vector.shape_cast %84 : vector<32xf32> to vector<32x1xf32>
    %86 = vector.broadcast %85 : vector<32x1xf32> to vector<32x32xf32>
    %87 = arith.subf %83, %86 : vector<32x32xf32>
    %88 = math.exp %87 : vector<32x32xf32>
    %cst_34 = arith.constant dense<0.000000e+00> : vector<32xf32>
    %89 = vector.multi_reduction <add>, %88, %cst_34 [1] : vector<32x32xf32> to vector<32xf32>
    %90 = vector.shape_cast %89 : vector<32xf32> to vector<32x1xf32>
    %cst_35 = arith.constant dense<0.000000e+00> : vector<32x16xf32>
    %91 = tpu.matmul %88, %82, %cst_35 {dimension_numbers = #tpu.dot_dimension_numbers<[1], [0], [0], [1], [0, 0, 1, 1], [], []>} : vector<32x32xf32>, vector<32x16xf32>, vector<32x16xf32> -> vector<32x16xf32>
    %92 = tpu.reciprocal %90 {approx = true} : vector<32x1xf32> -> vector<32x1xf32>
    %93 = vector.broadcast %92 : vector<32x1xf32> to vector<32x16xf32>
    %94 = arith.mulf %91, %93 : vector<32x16xf32>
    %95 = tpu.concatenate %79, %94 in 1 : vector<32x16xf32>, vector<32x16xf32> -> vector<32x32xf32>
    %96 = tpu.concatenate %64, %95 in 0 : vector<32x32xf32>, vector<32x32xf32> -> vector<64x32xf32>
    %c0_36 = arith.constant 0 : index
    %c0_37 = arith.constant 0 : index
    %c0_38 = arith.constant 0 : index
    %97 = vector.load %arg7[%c0_36, %c0_37, %c0_38] : memref<2x32x32xf32, #tpu.memory_space<vmem>>, vector<1x32x32xf32>
    %98 = vector.shape_cast %97 : vector<1x32x32xf32> to vector<32x32xf32>
    %cst_39 = arith.constant dense<0.000000e+00> : vector<64x32xf32>
    %99 = tpu.matmul %96, %98, %cst_39 {dimension_numbers = #tpu.dot_dimension_numbers<[1], [0], [0], [1], [0, 0, 1, 1], [], []>} : vector<64x32xf32>, vector<32x32xf32>, vector<64x32xf32> -> vector<64x32xf32>
    %100 = arith.addf %4, %99 : vector<64x32xf32>
    %c0_40 = arith.constant 0 : index
    %c0_41 = arith.constant 0 : index
    %c0_42 = arith.constant 0 : index
    %101 = vector.load %arg8[%c0_40, %c0_41, %c0_42] : memref<2x1x32xf32, #tpu.memory_space<vmem>>, vector<1x1x32xf32>
    %102 = vector.shape_cast %101 : vector<1x1x32xf32> to vector<1x32xf32>
    %103 = vector.broadcast %102 : vector<1x32xf32> to vector<64x32xf32>
    %104 = arith.addf %100, %103 : vector<64x32xf32>
    %c0_43 = arith.constant 0 : index
    %c0_44 = arith.constant 0 : index
    %c0_45 = arith.constant 0 : index
    %105 = vector.load %arg9[%c0_43, %c0_44, %c0_45] : memref<2x1x32xf32, #tpu.memory_space<vmem>>, vector<1x1x32xf32>
    %106 = vector.shape_cast %105 : vector<1x1x32xf32> to vector<1x32xf32>
    %c0_46 = arith.constant 0 : index
    %c0_47 = arith.constant 0 : index
    %c0_48 = arith.constant 0 : index
    %107 = vector.load %arg10[%c0_46, %c0_47, %c0_48] : memref<2x1x32xf32, #tpu.memory_space<vmem>>, vector<1x1x32xf32>
    %108 = vector.shape_cast %107 : vector<1x1x32xf32> to vector<1x32xf32>
    %cst_49 = arith.constant dense<0.000000e+00> : vector<64xf32>
    %109 = vector.multi_reduction <add>, %104, %cst_49 [1] : vector<64x32xf32> to vector<64xf32>
    %110 = vector.shape_cast %109 : vector<64xf32> to vector<64x1xf32>
    %cst_50 = arith.constant 3.200000e+01 : f32
    %111 = vector.broadcast %cst_50 : f32 to vector<64x1xf32>
    %112 = arith.divf %110, %111 : vector<64x1xf32>
    %113 = vector.broadcast %112 : vector<64x1xf32> to vector<64x32xf32>
    %114 = arith.subf %104, %113 : vector<64x32xf32>
    %115 = arith.mulf %114, %114 : vector<64x32xf32>
    %cst_51 = arith.constant dense<0.000000e+00> : vector<64xf32>
    %116 = vector.multi_reduction <add>, %115, %cst_51 [1] : vector<64x32xf32> to vector<64xf32>
    %117 = vector.shape_cast %116 : vector<64xf32> to vector<64x1xf32>
    %cst_52 = arith.constant 3.200000e+01 : f32
    %118 = vector.broadcast %cst_52 : f32 to vector<64x1xf32>
    %119 = arith.divf %117, %118 : vector<64x1xf32>
    %120 = vector.broadcast %112 : vector<64x1xf32> to vector<64x32xf32>
    %121 = arith.subf %104, %120 : vector<64x32xf32>
    %cst_53 = arith.constant 9.99999974E-6 : f32
    %122 = vector.broadcast %cst_53 : f32 to vector<64x1xf32>
    %123 = arith.addf %119, %122 : vector<64x1xf32>
    %124 = math.rsqrt %123 : vector<64x1xf32>
    %125 = vector.broadcast %124 : vector<64x1xf32> to vector<64x32xf32>
    %126 = arith.mulf %121, %125 : vector<64x32xf32>
    %127 = vector.broadcast %106 : vector<1x32xf32> to vector<64x32xf32>
    %128 = arith.mulf %126, %127 : vector<64x32xf32>
    %129 = vector.broadcast %108 : vector<1x32xf32> to vector<64x32xf32>
    %130 = arith.addf %128, %129 : vector<64x32xf32>
    %c0_54 = arith.constant 0 : index
    %c0_55 = arith.constant 0 : index
    %c0_56 = arith.constant 0 : index
    %131 = vector.load %arg11[%c0_54, %c0_55, %c0_56] : memref<2x32x64xf32, #tpu.memory_space<vmem>>, vector<1x32x64xf32>
    %132 = vector.shape_cast %131 : vector<1x32x64xf32> to vector<32x64xf32>
    %cst_57 = arith.constant dense<0.000000e+00> : vector<64x64xf32>
    %133 = tpu.matmul %130, %132, %cst_57 {dimension_numbers = #tpu.dot_dimension_numbers<[1], [0], [0], [1], [0, 0, 1, 1], [], []>} : vector<64x32xf32>, vector<32x64xf32>, vector<64x64xf32> -> vector<64x64xf32>
    %c0_58 = arith.constant 0 : index
    %c0_59 = arith.constant 0 : index
    %c0_60 = arith.constant 0 : index
    %134 = vector.load %arg12[%c0_58, %c0_59, %c0_60] : memref<2x1x64xf32, #tpu.memory_space<vmem>>, vector<1x1x64xf32>
    %135 = vector.shape_cast %134 : vector<1x1x64xf32> to vector<1x64xf32>
    %136 = vector.broadcast %135 : vector<1x64xf32> to vector<64x64xf32>
    %137 = arith.addf %133, %136 : vector<64x64xf32>
    %cst_61 = arith.constant 5.000000e-01 : f32
    %138 = vector.broadcast %cst_61 : f32 to vector<64x64xf32>
    %139 = arith.mulf %138, %137 : vector<64x64xf32>
    %cst_62 = arith.constant 0.707106769 : f32
    %140 = vector.broadcast %cst_62 : f32 to vector<64x64xf32>
    %141 = arith.mulf %137, %140 : vector<64x64xf32>
    %142 = math.erf %141 : vector<64x64xf32>
    %cst_63 = arith.constant 1.000000e+00 : f32
    %143 = vector.broadcast %cst_63 : f32 to vector<64x64xf32>
    %144 = arith.addf %143, %142 : vector<64x64xf32>
    %145 = arith.mulf %139, %144 : vector<64x64xf32>
    %c0_64 = arith.constant 0 : index
    %c0_65 = arith.constant 0 : index
    %c0_66 = arith.constant 0 : index
    %146 = vector.load %arg13[%c0_64, %c0_65, %c0_66] : memref<2x64x32xf32, #tpu.memory_space<vmem>>, vector<1x64x32xf32>
    %147 = vector.shape_cast %146 : vector<1x64x32xf32> to vector<64x32xf32>
    %cst_67 = arith.constant dense<0.000000e+00> : vector<64x32xf32>
    %148 = tpu.matmul %145, %147, %cst_67 {dimension_numbers = #tpu.dot_dimension_numbers<[1], [0], [0], [1], [0, 0, 1, 1], [], []>} : vector<64x64xf32>, vector<64x32xf32>, vector<64x32xf32> -> vector<64x32xf32>
    %149 = arith.addf %104, %148 : vector<64x32xf32>
    %c0_68 = arith.constant 0 : index
    %c0_69 = arith.constant 0 : index
    %c0_70 = arith.constant 0 : index
    %150 = vector.load %arg14[%c0_68, %c0_69, %c0_70] : memref<2x1x32xf32, #tpu.memory_space<vmem>>, vector<1x1x32xf32>
    %151 = vector.shape_cast %150 : vector<1x1x32xf32> to vector<1x32xf32>
    %152 = vector.broadcast %151 : vector<1x32xf32> to vector<64x32xf32>
    %153 = arith.addf %149, %152 : vector<64x32xf32>
    %c1 = arith.constant 1 : index
    %c0_71 = arith.constant 0 : index
    %c0_72 = arith.constant 0 : index
    %154 = vector.load %arg4[%c1, %c0_71, %c0_72] : memref<2x1x32xf32, #tpu.memory_space<vmem>>, vector<1x1x32xf32>
    %155 = vector.shape_cast %154 : vector<1x1x32xf32> to vector<1x32xf32>
    %c1_73 = arith.constant 1 : index
    %c0_74 = arith.constant 0 : index
    %c0_75 = arith.constant 0 : index
    %156 = vector.load %arg5[%c1_73, %c0_74, %c0_75] : memref<2x1x32xf32, #tpu.memory_space<vmem>>, vector<1x1x32xf32>
    %157 = vector.shape_cast %156 : vector<1x1x32xf32> to vector<1x32xf32>
    %cst_76 = arith.constant dense<0.000000e+00> : vector<64xf32>
    %158 = vector.multi_reduction <add>, %153, %cst_76 [1] : vector<64x32xf32> to vector<64xf32>
    %159 = vector.shape_cast %158 : vector<64xf32> to vector<64x1xf32>
    %cst_77 = arith.constant 3.200000e+01 : f32
    %160 = vector.broadcast %cst_77 : f32 to vector<64x1xf32>
    %161 = arith.divf %159, %160 : vector<64x1xf32>
    %162 = vector.broadcast %161 : vector<64x1xf32> to vector<64x32xf32>
    %163 = arith.subf %153, %162 : vector<64x32xf32>
    %164 = arith.mulf %163, %163 : vector<64x32xf32>
    %cst_78 = arith.constant dense<0.000000e+00> : vector<64xf32>
    %165 = vector.multi_reduction <add>, %164, %cst_78 [1] : vector<64x32xf32> to vector<64xf32>
    %166 = vector.shape_cast %165 : vector<64xf32> to vector<64x1xf32>
    %cst_79 = arith.constant 3.200000e+01 : f32
    %167 = vector.broadcast %cst_79 : f32 to vector<64x1xf32>
    %168 = arith.divf %166, %167 : vector<64x1xf32>
    %169 = vector.broadcast %161 : vector<64x1xf32> to vector<64x32xf32>
    %170 = arith.subf %153, %169 : vector<64x32xf32>
    %cst_80 = arith.constant 9.99999974E-6 : f32
    %171 = vector.broadcast %cst_80 : f32 to vector<64x1xf32>
    %172 = arith.addf %168, %171 : vector<64x1xf32>
    %173 = math.rsqrt %172 : vector<64x1xf32>
    %174 = vector.broadcast %173 : vector<64x1xf32> to vector<64x32xf32>
    %175 = arith.mulf %170, %174 : vector<64x32xf32>
    %176 = vector.broadcast %155 : vector<1x32xf32> to vector<64x32xf32>
    %177 = arith.mulf %175, %176 : vector<64x32xf32>
    %178 = vector.broadcast %157 : vector<1x32xf32> to vector<64x32xf32>
    %179 = arith.addf %177, %178 : vector<64x32xf32>
    %c1_81 = arith.constant 1 : index
    %c0_82 = arith.constant 0 : index
    %c0_83 = arith.constant 0 : index
    %180 = vector.load %arg6[%c1_81, %c0_82, %c0_83] : memref<2x32x96xf32, #tpu.memory_space<vmem>>, vector<1x32x96xf32>
    %181 = vector.shape_cast %180 : vector<1x32x96xf32> to vector<32x96xf32>
    %cst_84 = arith.constant dense<0.000000e+00> : vector<64x96xf32>
    %182 = tpu.matmul %179, %181, %cst_84 {dimension_numbers = #tpu.dot_dimension_numbers<[1], [0], [0], [1], [0, 0, 1, 1], [], []>} : vector<64x32xf32>, vector<32x96xf32>, vector<64x96xf32> -> vector<64x96xf32>
    %183 = vector.extract_strided_slice %182 {offsets = [0, 0], sizes = [32, 16], strides = [1, 1]} : vector<64x96xf32> to vector<32x16xf32>
    %184 = vector.extract_strided_slice %182 {offsets = [0, 32], sizes = [32, 16], strides = [1, 1]} : vector<64x96xf32> to vector<32x16xf32>
    %185 = vector.extract_strided_slice %182 {offsets = [0, 64], sizes = [32, 16], strides = [1, 1]} : vector<64x96xf32> to vector<32x16xf32>
    %cst_85 = arith.constant dense<0.000000e+00> : vector<32x32xf32>
    %186 = tpu.matmul %183, %184, %cst_85 {dimension_numbers = #tpu.dot_dimension_numbers<[1], [1], [0], [0], [0, 0, 1, 0], [], []>} : vector<32x16xf32>, vector<32x16xf32>, vector<32x32xf32> -> vector<32x32xf32>
    %cst_86 = arith.constant dense<0xFF800000> : vector<32xf32>
    %187 = vector.multi_reduction <maximumf>, %186, %cst_86 [1] : vector<32x32xf32> to vector<32xf32>
    %188 = vector.shape_cast %187 : vector<32xf32> to vector<32x1xf32>
    %189 = vector.broadcast %188 : vector<32x1xf32> to vector<32x32xf32>
    %190 = arith.subf %186, %189 : vector<32x32xf32>
    %191 = math.exp %190 : vector<32x32xf32>
    %cst_87 = arith.constant dense<0.000000e+00> : vector<32xf32>
    %192 = vector.multi_reduction <add>, %191, %cst_87 [1] : vector<32x32xf32> to vector<32xf32>
    %193 = vector.shape_cast %192 : vector<32xf32> to vector<32x1xf32>
    %cst_88 = arith.constant dense<0.000000e+00> : vector<32x16xf32>
    %194 = tpu.matmul %191, %185, %cst_88 {dimension_numbers = #tpu.dot_dimension_numbers<[1], [0], [0], [1], [0, 0, 1, 1], [], []>} : vector<32x32xf32>, vector<32x16xf32>, vector<32x16xf32> -> vector<32x16xf32>
    %195 = tpu.reciprocal %193 {approx = true} : vector<32x1xf32> -> vector<32x1xf32>
    %196 = vector.broadcast %195 : vector<32x1xf32> to vector<32x16xf32>
    %197 = arith.mulf %194, %196 : vector<32x16xf32>
    %198 = vector.extract_strided_slice %182 {offsets = [0, 16], sizes = [32, 16], strides = [1, 1]} : vector<64x96xf32> to vector<32x16xf32>
    %199 = vector.extract_strided_slice %182 {offsets = [0, 48], sizes = [32, 16], strides = [1, 1]} : vector<64x96xf32> to vector<32x16xf32>
    %200 = vector.extract_strided_slice %182 {offsets = [0, 80], sizes = [32, 16], strides = [1, 1]} : vector<64x96xf32> to vector<32x16xf32>
    %cst_89 = arith.constant dense<0.000000e+00> : vector<32x32xf32>
    %201 = tpu.matmul %198, %199, %cst_89 {dimension_numbers = #tpu.dot_dimension_numbers<[1], [1], [0], [0], [0, 0, 1, 0], [], []>} : vector<32x16xf32>, vector<32x16xf32>, vector<32x32xf32> -> vector<32x32xf32>
    %cst_90 = arith.constant dense<0xFF800000> : vector<32xf32>
    %202 = vector.multi_reduction <maximumf>, %201, %cst_90 [1] : vector<32x32xf32> to vector<32xf32>
    %203 = vector.shape_cast %202 : vector<32xf32> to vector<32x1xf32>
    %204 = vector.broadcast %203 : vector<32x1xf32> to vector<32x32xf32>
    %205 = arith.subf %201, %204 : vector<32x32xf32>
    %206 = math.exp %205 : vector<32x32xf32>
    %cst_91 = arith.constant dense<0.000000e+00> : vector<32xf32>
    %207 = vector.multi_reduction <add>, %206, %cst_91 [1] : vector<32x32xf32> to vector<32xf32>
    %208 = vector.shape_cast %207 : vector<32xf32> to vector<32x1xf32>
    %cst_92 = arith.constant dense<0.000000e+00> : vector<32x16xf32>
    %209 = tpu.matmul %206, %200, %cst_92 {dimension_numbers = #tpu.dot_dimension_numbers<[1], [0], [0], [1], [0, 0, 1, 1], [], []>} : vector<32x32xf32>, vector<32x16xf32>, vector<32x16xf32> -> vector<32x16xf32>
    %210 = tpu.reciprocal %208 {approx = true} : vector<32x1xf32> -> vector<32x1xf32>
    %211 = vector.broadcast %210 : vector<32x1xf32> to vector<32x16xf32>
    %212 = arith.mulf %209, %211 : vector<32x16xf32>
    %213 = tpu.concatenate %197, %212 in 1 : vector<32x16xf32>, vector<32x16xf32> -> vector<32x32xf32>
    %214 = vector.extract_strided_slice %182 {offsets = [32, 0], sizes = [32, 16], strides = [1, 1]} : vector<64x96xf32> to vector<32x16xf32>
    %215 = vector.extract_strided_slice %182 {offsets = [32, 32], sizes = [32, 16], strides = [1, 1]} : vector<64x96xf32> to vector<32x16xf32>
    %216 = vector.extract_strided_slice %182 {offsets = [32, 64], sizes = [32, 16], strides = [1, 1]} : vector<64x96xf32> to vector<32x16xf32>
    %cst_93 = arith.constant dense<0.000000e+00> : vector<32x32xf32>
    %217 = tpu.matmul %214, %215, %cst_93 {dimension_numbers = #tpu.dot_dimension_numbers<[1], [1], [0], [0], [0, 0, 1, 0], [], []>} : vector<32x16xf32>, vector<32x16xf32>, vector<32x32xf32> -> vector<32x32xf32>
    %cst_94 = arith.constant dense<0xFF800000> : vector<32xf32>
    %218 = vector.multi_reduction <maximumf>, %217, %cst_94 [1] : vector<32x32xf32> to vector<32xf32>
    %219 = vector.shape_cast %218 : vector<32xf32> to vector<32x1xf32>
    %220 = vector.broadcast %219 : vector<32x1xf32> to vector<32x32xf32>
    %221 = arith.subf %217, %220 : vector<32x32xf32>
    %222 = math.exp %221 : vector<32x32xf32>
    %cst_95 = arith.constant dense<0.000000e+00> : vector<32xf32>
    %223 = vector.multi_reduction <add>, %222, %cst_95 [1] : vector<32x32xf32> to vector<32xf32>
    %224 = vector.shape_cast %223 : vector<32xf32> to vector<32x1xf32>
    %cst_96 = arith.constant dense<0.000000e+00> : vector<32x16xf32>
    %225 = tpu.matmul %222, %216, %cst_96 {dimension_numbers = #tpu.dot_dimension_numbers<[1], [0], [0], [1], [0, 0, 1, 1], [], []>} : vector<32x32xf32>, vector<32x16xf32>, vector<32x16xf32> -> vector<32x16xf32>
    %226 = tpu.reciprocal %224 {approx = true} : vector<32x1xf32> -> vector<32x1xf32>
    %227 = vector.broadcast %226 : vector<32x1xf32> to vector<32x16xf32>
    %228 = arith.mulf %225, %227 : vector<32x16xf32>
    %229 = vector.extract_strided_slice %182 {offsets = [32, 16], sizes = [32, 16], strides = [1, 1]} : vector<64x96xf32> to vector<32x16xf32>
    %230 = vector.extract_strided_slice %182 {offsets = [32, 48], sizes = [32, 16], strides = [1, 1]} : vector<64x96xf32> to vector<32x16xf32>
    %231 = vector.extract_strided_slice %182 {offsets = [32, 80], sizes = [32, 16], strides = [1, 1]} : vector<64x96xf32> to vector<32x16xf32>
    %cst_97 = arith.constant dense<0.000000e+00> : vector<32x32xf32>
    %232 = tpu.matmul %229, %230, %cst_97 {dimension_numbers = #tpu.dot_dimension_numbers<[1], [1], [0], [0], [0, 0, 1, 0], [], []>} : vector<32x16xf32>, vector<32x16xf32>, vector<32x32xf32> -> vector<32x32xf32>
    %cst_98 = arith.constant dense<0xFF800000> : vector<32xf32>
    %233 = vector.multi_reduction <maximumf>, %232, %cst_98 [1] : vector<32x32xf32> to vector<32xf32>
    %234 = vector.shape_cast %233 : vector<32xf32> to vector<32x1xf32>
    %235 = vector.broadcast %234 : vector<32x1xf32> to vector<32x32xf32>
    %236 = arith.subf %232, %235 : vector<32x32xf32>
    %237 = math.exp %236 : vector<32x32xf32>
    %cst_99 = arith.constant dense<0.000000e+00> : vector<32xf32>
    %238 = vector.multi_reduction <add>, %237, %cst_99 [1] : vector<32x32xf32> to vector<32xf32>
    %239 = vector.shape_cast %238 : vector<32xf32> to vector<32x1xf32>
    %cst_100 = arith.constant dense<0.000000e+00> : vector<32x16xf32>
    %240 = tpu.matmul %237, %231, %cst_100 {dimension_numbers = #tpu.dot_dimension_numbers<[1], [0], [0], [1], [0, 0, 1, 1], [], []>} : vector<32x32xf32>, vector<32x16xf32>, vector<32x16xf32> -> vector<32x16xf32>
    %241 = tpu.reciprocal %239 {approx = true} : vector<32x1xf32> -> vector<32x1xf32>
    %242 = vector.broadcast %241 : vector<32x1xf32> to vector<32x16xf32>
    %243 = arith.mulf %240, %242 : vector<32x16xf32>
    %244 = tpu.concatenate %228, %243 in 1 : vector<32x16xf32>, vector<32x16xf32> -> vector<32x32xf32>
    %245 = tpu.concatenate %213, %244 in 0 : vector<32x32xf32>, vector<32x32xf32> -> vector<64x32xf32>
    %c1_101 = arith.constant 1 : index
    %c0_102 = arith.constant 0 : index
    %c0_103 = arith.constant 0 : index
    %246 = vector.load %arg7[%c1_101, %c0_102, %c0_103] : memref<2x32x32xf32, #tpu.memory_space<vmem>>, vector<1x32x32xf32>
    %247 = vector.shape_cast %246 : vector<1x32x32xf32> to vector<32x32xf32>
    %cst_104 = arith.constant dense<0.000000e+00> : vector<64x32xf32>
    %248 = tpu.matmul %245, %247, %cst_104 {dimension_numbers = #tpu.dot_dimension_numbers<[1], [0], [0], [1], [0, 0, 1, 1], [], []>} : vector<64x32xf32>, vector<32x32xf32>, vector<64x32xf32> -> vector<64x32xf32>
    %249 = arith.addf %153, %248 : vector<64x32xf32>
    %c1_105 = arith.constant 1 : index
    %c0_106 = arith.constant 0 : index
    %c0_107 = arith.constant 0 : index
    %250 = vector.load %arg8[%c1_105, %c0_106, %c0_107] : memref<2x1x32xf32, #tpu.memory_space<vmem>>, vector<1x1x32xf32>
    %251 = vector.shape_cast %250 : vector<1x1x32xf32> to vector<1x32xf32>
    %252 = vector.broadcast %251 : vector<1x32xf32> to vector<64x32xf32>
    %253 = arith.addf %249, %252 : vector<64x32xf32>
    %c1_108 = arith.constant 1 : index
    %c0_109 = arith.constant 0 : index
    %c0_110 = arith.constant 0 : index
    %254 = vector.load %arg9[%c1_108, %c0_109, %c0_110] : memref<2x1x32xf32, #tpu.memory_space<vmem>>, vector<1x1x32xf32>
    %255 = vector.shape_cast %254 : vector<1x1x32xf32> to vector<1x32xf32>
    %c1_111 = arith.constant 1 : index
    %c0_112 = arith.constant 0 : index
    %c0_113 = arith.constant 0 : index
    %256 = vector.load %arg10[%c1_111, %c0_112, %c0_113] : memref<2x1x32xf32, #tpu.memory_space<vmem>>, vector<1x1x32xf32>
    %257 = vector.shape_cast %256 : vector<1x1x32xf32> to vector<1x32xf32>
    %cst_114 = arith.constant dense<0.000000e+00> : vector<64xf32>
    %258 = vector.multi_reduction <add>, %253, %cst_114 [1] : vector<64x32xf32> to vector<64xf32>
    %259 = vector.shape_cast %258 : vector<64xf32> to vector<64x1xf32>
    %cst_115 = arith.constant 3.200000e+01 : f32
    %260 = vector.broadcast %cst_115 : f32 to vector<64x1xf32>
    %261 = arith.divf %259, %260 : vector<64x1xf32>
    %262 = vector.broadcast %261 : vector<64x1xf32> to vector<64x32xf32>
    %263 = arith.subf %253, %262 : vector<64x32xf32>
    %264 = arith.mulf %263, %263 : vector<64x32xf32>
    %cst_116 = arith.constant dense<0.000000e+00> : vector<64xf32>
    %265 = vector.multi_reduction <add>, %264, %cst_116 [1] : vector<64x32xf32> to vector<64xf32>
    %266 = vector.shape_cast %265 : vector<64xf32> to vector<64x1xf32>
    %cst_117 = arith.constant 3.200000e+01 : f32
    %267 = vector.broadcast %cst_117 : f32 to vector<64x1xf32>
    %268 = arith.divf %266, %267 : vector<64x1xf32>
    %269 = vector.broadcast %261 : vector<64x1xf32> to vector<64x32xf32>
    %270 = arith.subf %253, %269 : vector<64x32xf32>
    %cst_118 = arith.constant 9.99999974E-6 : f32
    %271 = vector.broadcast %cst_118 : f32 to vector<64x1xf32>
    %272 = arith.addf %268, %271 : vector<64x1xf32>
    %273 = math.rsqrt %272 : vector<64x1xf32>
    %274 = vector.broadcast %273 : vector<64x1xf32> to vector<64x32xf32>
    %275 = arith.mulf %270, %274 : vector<64x32xf32>
    %276 = vector.broadcast %255 : vector<1x32xf32> to vector<64x32xf32>
    %277 = arith.mulf %275, %276 : vector<64x32xf32>
    %278 = vector.broadcast %257 : vector<1x32xf32> to vector<64x32xf32>
    %279 = arith.addf %277, %278 : vector<64x32xf32>
    %c1_119 = arith.constant 1 : index
    %c0_120 = arith.constant 0 : index
    %c0_121 = arith.constant 0 : index
    %280 = vector.load %arg11[%c1_119, %c0_120, %c0_121] : memref<2x32x64xf32, #tpu.memory_space<vmem>>, vector<1x32x64xf32>
    %281 = vector.shape_cast %280 : vector<1x32x64xf32> to vector<32x64xf32>
    %cst_122 = arith.constant dense<0.000000e+00> : vector<64x64xf32>
    %282 = tpu.matmul %279, %281, %cst_122 {dimension_numbers = #tpu.dot_dimension_numbers<[1], [0], [0], [1], [0, 0, 1, 1], [], []>} : vector<64x32xf32>, vector<32x64xf32>, vector<64x64xf32> -> vector<64x64xf32>
    %c1_123 = arith.constant 1 : index
    %c0_124 = arith.constant 0 : index
    %c0_125 = arith.constant 0 : index
    %283 = vector.load %arg12[%c1_123, %c0_124, %c0_125] : memref<2x1x64xf32, #tpu.memory_space<vmem>>, vector<1x1x64xf32>
    %284 = vector.shape_cast %283 : vector<1x1x64xf32> to vector<1x64xf32>
    %285 = vector.broadcast %284 : vector<1x64xf32> to vector<64x64xf32>
    %286 = arith.addf %282, %285 : vector<64x64xf32>
    %cst_126 = arith.constant 5.000000e-01 : f32
    %287 = vector.broadcast %cst_126 : f32 to vector<64x64xf32>
    %288 = arith.mulf %287, %286 : vector<64x64xf32>
    %cst_127 = arith.constant 0.707106769 : f32
    %289 = vector.broadcast %cst_127 : f32 to vector<64x64xf32>
    %290 = arith.mulf %286, %289 : vector<64x64xf32>
    %291 = math.erf %290 : vector<64x64xf32>
    %cst_128 = arith.constant 1.000000e+00 : f32
    %292 = vector.broadcast %cst_128 : f32 to vector<64x64xf32>
    %293 = arith.addf %292, %291 : vector<64x64xf32>
    %294 = arith.mulf %288, %293 : vector<64x64xf32>
    %c1_129 = arith.constant 1 : index
    %c0_130 = arith.constant 0 : index
    %c0_131 = arith.constant 0 : index
    %295 = vector.load %arg13[%c1_129, %c0_130, %c0_131] : memref<2x64x32xf32, #tpu.memory_space<vmem>>, vector<1x64x32xf32>
    %296 = vector.shape_cast %295 : vector<1x64x32xf32> to vector<64x32xf32>
    %cst_132 = arith.constant dense<0.000000e+00> : vector<64x32xf32>
    %297 = tpu.matmul %294, %296, %cst_132 {dimension_numbers = #tpu.dot_dimension_numbers<[1], [0], [0], [1], [0, 0, 1, 1], [], []>} : vector<64x64xf32>, vector<64x32xf32>, vector<64x32xf32> -> vector<64x32xf32>
    %298 = arith.addf %253, %297 : vector<64x32xf32>
    %c1_133 = arith.constant 1 : index
    %c0_134 = arith.constant 0 : index
    %c0_135 = arith.constant 0 : index
    %299 = vector.load %arg14[%c1_133, %c0_134, %c0_135] : memref<2x1x32xf32, #tpu.memory_space<vmem>>, vector<1x1x32xf32>
    %300 = vector.shape_cast %299 : vector<1x1x32xf32> to vector<1x32xf32>
    %301 = vector.broadcast %300 : vector<1x32xf32> to vector<64x32xf32>
    %302 = arith.addf %298, %301 : vector<64x32xf32>
    %303 = vector.extract_strided_slice %302 {offsets = [0, 0], sizes = [32, 32], strides = [1, 1]} : vector<64x32xf32> to vector<32x32xf32>
    %304 = tpu.transpose %303, [1, 0] : vector<32x32xf32> -> vector<32x32xf32>
    %cst_136 = arith.constant dense<0.000000e+00> : vector<32xf32>
    %305 = vector.multi_reduction <add>, %304, %cst_136 [0] : vector<32x32xf32> to vector<32xf32>
    %306 = vector.shape_cast %305 : vector<32xf32> to vector<1x32xf32>
    %cst_137 = arith.constant 3.200000e+01 : f32
    %307 = vector.broadcast %cst_137 : f32 to vector<1x32xf32>
    %308 = arith.divf %306, %307 : vector<1x32xf32>
    %309 = vector.shape_cast %308 : vector<1x32xf32> to vector<1x1x32xf32>
    %cst_138 = arith.constant dense<0.000000e+00> : vector<1xf32>
    %310 = vector.multi_reduction <add>, %309, %cst_138 [1, 2] : vector<1x1x32xf32> to vector<1xf32>
    %311 = vector.shape_cast %310 : vector<1xf32> to vector<1x1x1xf32>
    %312 = vector.extract %311[0, 0, 0] : f32 from vector<1x1x1xf32>
    %cst_139 = arith.constant 3.200000e+01 : f32
    %313 = arith.divf %312, %cst_139 : f32
    %314 = vector.broadcast %313 : f32 to vector<1x32xf32>
    %315 = arith.subf %308, %314 : vector<1x32xf32>
    %316 = arith.mulf %315, %315 : vector<1x32xf32>
    %317 = vector.shape_cast %316 : vector<1x32xf32> to vector<1x1x32xf32>
    %cst_140 = arith.constant dense<0.000000e+00> : vector<1xf32>
    %318 = vector.multi_reduction <add>, %317, %cst_140 [1, 2] : vector<1x1x32xf32> to vector<1xf32>
    %319 = vector.shape_cast %318 : vector<1xf32> to vector<1x1x1xf32>
    %320 = vector.extract %319[0, 0, 0] : f32 from vector<1x1x1xf32>
    %cst_141 = arith.constant 3.200000e+01 : f32
    %321 = arith.divf %320, %cst_141 : f32
    %322 = vector.broadcast %313 : f32 to vector<1x32xf32>
    %323 = arith.subf %308, %322 : vector<1x32xf32>
    %cst_142 = arith.constant 9.99999974E-6 : f32
    %324 = arith.addf %321, %cst_142 : f32
    %325 = math.rsqrt %324 : f32
    %326 = vector.broadcast %325 : f32 to vector<1x32xf32>
    %327 = arith.mulf %323, %326 : vector<1x32xf32>
    %c0_143 = arith.constant 0 : index
    %c0_144 = arith.constant 0 : index
    %328 = vector.load %arg15[%c0_143, %c0_144] : memref<1x32xf32, #tpu.memory_space<vmem>>, vector<1x32xf32>
    %329 = arith.mulf %327, %328 : vector<1x32xf32>
    %c0_145 = arith.constant 0 : index
    %c0_146 = arith.constant 0 : index
    %330 = vector.load %arg16[%c0_145, %c0_146] : memref<1x32xf32, #tpu.memory_space<vmem>>, vector<1x32xf32>
    %331 = arith.addf %329, %330 : vector<1x32xf32>
    %332 = vector.extract_strided_slice %302 {offsets = [32, 0], sizes = [32, 32], strides = [1, 1]} : vector<64x32xf32> to vector<32x32xf32>
    %333 = tpu.transpose %332, [1, 0] : vector<32x32xf32> -> vector<32x32xf32>
    %cst_147 = arith.constant dense<0.000000e+00> : vector<32xf32>
    %334 = vector.multi_reduction <add>, %333, %cst_147 [0] : vector<32x32xf32> to vector<32xf32>
    %335 = vector.shape_cast %334 : vector<32xf32> to vector<1x32xf32>
    %cst_148 = arith.constant 3.200000e+01 : f32
    %336 = vector.broadcast %cst_148 : f32 to vector<1x32xf32>
    %337 = arith.divf %335, %336 : vector<1x32xf32>
    %338 = vector.shape_cast %337 : vector<1x32xf32> to vector<1x1x32xf32>
    %cst_149 = arith.constant dense<0.000000e+00> : vector<1xf32>
    %339 = vector.multi_reduction <add>, %338, %cst_149 [1, 2] : vector<1x1x32xf32> to vector<1xf32>
    %340 = vector.shape_cast %339 : vector<1xf32> to vector<1x1x1xf32>
    %341 = vector.extract %340[0, 0, 0] : f32 from vector<1x1x1xf32>
    %cst_150 = arith.constant 3.200000e+01 : f32
    %342 = arith.divf %341, %cst_150 : f32
    %343 = vector.broadcast %342 : f32 to vector<1x32xf32>
    %344 = arith.subf %337, %343 : vector<1x32xf32>
    %345 = arith.mulf %344, %344 : vector<1x32xf32>
    %346 = vector.shape_cast %345 : vector<1x32xf32> to vector<1x1x32xf32>
    %cst_151 = arith.constant dense<0.000000e+00> : vector<1xf32>
    %347 = vector.multi_reduction <add>, %346, %cst_151 [1, 2] : vector<1x1x32xf32> to vector<1xf32>
    %348 = vector.shape_cast %347 : vector<1xf32> to vector<1x1x1xf32>
    %349 = vector.extract %348[0, 0, 0] : f32 from vector<1x1x1xf32>
    %cst_152 = arith.constant 3.200000e+01 : f32
    %350 = arith.divf %349, %cst_152 : f32
    %351 = vector.broadcast %342 : f32 to vector<1x32xf32>
    %352 = arith.subf %337, %351 : vector<1x32xf32>
    %cst_153 = arith.constant 9.99999974E-6 : f32
    %353 = arith.addf %350, %cst_153 : f32
    %354 = math.rsqrt %353 : f32
    %355 = vector.broadcast %354 : f32 to vector<1x32xf32>
    %356 = arith.mulf %352, %355 : vector<1x32xf32>
    %c0_154 = arith.constant 0 : index
    %c0_155 = arith.constant 0 : index
    %357 = vector.load %arg15[%c0_154, %c0_155] : memref<1x32xf32, #tpu.memory_space<vmem>>, vector<1x32xf32>
    %358 = arith.mulf %356, %357 : vector<1x32xf32>
    %c0_156 = arith.constant 0 : index
    %c0_157 = arith.constant 0 : index
    %359 = vector.load %arg16[%c0_156, %c0_157] : memref<1x32xf32, #tpu.memory_space<vmem>>, vector<1x32xf32>
    %360 = arith.addf %358, %359 : vector<1x32xf32>
    %361 = tpu.concatenate %331, %360 in 0 : vector<1x32xf32>, vector<1x32xf32> -> vector<2x32xf32>
    %c0_158 = arith.constant 0 : index
    %c0_159 = arith.constant 0 : index
    %c0_160 = arith.constant 0 : index
    %362 = vector.load %arg17[%c0_158, %c0_159, %c0_160] : memref<1x2x32xf32, #tpu.memory_space<vmem>>, vector<1x2x32xf32>
    %363 = vector.shape_cast %362 : vector<1x2x32xf32> to vector<2x32xf32>
    %364 = vector.shape_cast %361 : vector<2x32xf32> to vector<1x2x32xf32>
    tpu.vector_store %arg17[%c0_158, %c0_159, %c0_160], %364 {strides = array<i32>} : memref<1x2x32xf32, #tpu.memory_space<vmem>>, vector<1x2x32xf32>,
    return
  }
  func.func @transform_0(%arg0: i32) -> (i32, i32) {
    %c0_i32 = arith.constant 0 : i32
    %c0_i32_0 = arith.constant 0 : i32
    return %arg0, %c0_i32 : i32, i32
  }
  func.func @transform_1(%arg0: i32) -> (i32, i32) {
    %c0_i32 = arith.constant 0 : i32
    %c0_i32_0 = arith.constant 0 : i32
    %c0_i32_1 = arith.constant 0 : i32
    return %c0_i32, %c0_i32_0 : i32, i32
  }
  func.func @transform_2(%arg0: i32) -> (i32, i32) {
    %c0_i32 = arith.constant 0 : i32
    %c0_i32_0 = arith.constant 0 : i32
    %c0_i32_1 = arith.constant 0 : i32
    return %c0_i32, %c0_i32_0 : i32, i32
  }
  func.func @transform_3(%arg0: i32) -> (i32, i32, i32) {
    %c0_i32 = arith.constant 0 : i32
    %c0_i32_0 = arith.constant 0 : i32
    %c0_i32_1 = arith.constant 0 : i32
    %c0_i32_2 = arith.constant 0 : i32
    return %c0_i32, %c0_i32_0, %c0_i32_1 : i32, i32, i32
  }
  func.func @transform_4(%arg0: i32) -> (i32, i32, i32) {
    %c0_i32 = arith.constant 0 : i32
    %c0_i32_0 = arith.constant 0 : i32
    %c0_i32_1 = arith.constant 0 : i32
    %c0_i32_2 = arith.constant 0 : i32
    return %c0_i32, %c0_i32_0, %c0_i32_1 : i32, i32, i32
  }
  func.func @transform_5(%arg0: i32) -> (i32, i32, i32) {
    %c0_i32 = arith.constant 0 : i32
    %c0_i32_0 = arith.constant 0 : i32
    %c0_i32_1 = arith.constant 0 : i32
    %c0_i32_2 = arith.constant 0 : i32
    return %c0_i32, %c0_i32_0, %c0_i32_1 : i32, i32, i32
  }
  func.func @transform_6(%arg0: i32) -> (i32, i32, i32) {
    %c0_i32 = arith.constant 0 : i32
    %c0_i32_0 = arith.constant 0 : i32
    %c0_i32_1 = arith.constant 0 : i32
    %c0_i32_2 = arith.constant 0 : i32
    return %c0_i32, %c0_i32_0, %c0_i32_1 : i32, i32, i32
  }
  func.func @transform_7(%arg0: i32) -> (i32, i32, i32) {
    %c0_i32 = arith.constant 0 : i32
    %c0_i32_0 = arith.constant 0 : i32
    %c0_i32_1 = arith.constant 0 : i32
    %c0_i32_2 = arith.constant 0 : i32
    return %c0_i32, %c0_i32_0, %c0_i32_1 : i32, i32, i32
  }
  func.func @transform_8(%arg0: i32) -> (i32, i32, i32) {
    %c0_i32 = arith.constant 0 : i32
    %c0_i32_0 = arith.constant 0 : i32
    %c0_i32_1 = arith.constant 0 : i32
    %c0_i32_2 = arith.constant 0 : i32
    return %c0_i32, %c0_i32_0, %c0_i32_1 : i32, i32, i32
  }
  func.func @transform_9(%arg0: i32) -> (i32, i32, i32) {
    %c0_i32 = arith.constant 0 : i32
    %c0_i32_0 = arith.constant 0 : i32
    %c0_i32_1 = arith.constant 0 : i32
    %c0_i32_2 = arith.constant 0 : i32
    return %c0_i32, %c0_i32_0, %c0_i32_1 : i32, i32, i32
  }
  func.func @transform_10(%arg0: i32) -> (i32, i32, i32) {
    %c0_i32 = arith.constant 0 : i32
    %c0_i32_0 = arith.constant 0 : i32
    %c0_i32_1 = arith.constant 0 : i32
    %c0_i32_2 = arith.constant 0 : i32
    return %c0_i32, %c0_i32_0, %c0_i32_1 : i32, i32, i32
  }
  func.func @transform_11(%arg0: i32) -> (i32, i32, i32) {
    %c0_i32 = arith.constant 0 : i32
    %c0_i32_0 = arith.constant 0 : i32
    %c0_i32_1 = arith.constant 0 : i32
    %c0_i32_2 = arith.constant 0 : i32
    return %c0_i32, %c0_i32_0, %c0_i32_1 : i32, i32, i32
  }
  func.func @transform_12(%arg0: i32) -> (i32, i32, i32) {
    %c0_i32 = arith.constant 0 : i32
    %c0_i32_0 = arith.constant 0 : i32
    %c0_i32_1 = arith.constant 0 : i32
    %c0_i32_2 = arith.constant 0 : i32
    return %c0_i32, %c0_i32_0, %c0_i32_1 : i32, i32, i32
  }
  func.func @transform_13(%arg0: i32) -> (i32, i32, i32) {
    %c0_i32 = arith.constant 0 : i32
    %c0_i32_0 = arith.constant 0 : i32
    %c0_i32_1 = arith.constant 0 : i32
    %c0_i32_2 = arith.constant 0 : i32
    return %c0_i32, %c0_i32_0, %c0_i32_1 : i32, i32, i32
  }
  func.func @transform_14(%arg0: i32) -> (i32, i32) {
    %c0_i32 = arith.constant 0 : i32
    %c0_i32_0 = arith.constant 0 : i32
    %c0_i32_1 = arith.constant 0 : i32
    return %c0_i32, %c0_i32_0 : i32, i32
  }
  func.func @transform_15(%arg0: i32) -> (i32, i32) {
    %c0_i32 = arith.constant 0 : i32
    %c0_i32_0 = arith.constant 0 : i32
    %c0_i32_1 = arith.constant 0 : i32
    return %c0_i32, %c0_i32_0 : i32, i32
  }
  func.func @transform_16(%arg0: i32) -> (i32, i32, i32) {
    %c0_i32 = arith.constant 0 : i32
    %c0_i32_0 = arith.constant 0 : i32
    %c0_i32_1 = arith.constant 0 : i32
    return %arg0, %c0_i32, %c0_i32_0 : i32, i32, i32
  }
}

</mosaic_0001>

<llo_original>
// kernel: ct_forward.1
$region0: #{ct_forward.1}
  #allocation0 [shape = 'u32[]', space=smem, size = 0x4, offset = 0x4, fixed_abs, tag = 'smem constant byte address 0x4 - core index']
  #allocation1 [shape = 'u32[144,128]{1,0:T(1,128)}', space=vmem, size = 0x12000, scoped, tag = 'internal scratch']
  %s0 = inlined_call_operand.vmem [shape: f32[64,32], index: 0, kind: input, shape index: {}]
  %s1 = inlined_call_operand.vmem [shape: f32[32,32], index: 1, kind: input, shape index: {}]
  %s2 = inlined_call_operand.vmem [shape: f32[64,32], index: 2, kind: input, shape index: {}]
  %s3 = inlined_call_operand.vmem [shape: f32[2,1,32], index: 3, kind: input, shape index: {}]
  %s4 = inlined_call_operand.vmem [shape: f32[2,1,32], index: 4, kind: input, shape index: {}]
  %s5 = inlined_call_operand.vmem [shape: f32[2,32,96], index: 5, kind: input, shape index: {}]
  %s6 = inlined_call_operand.vmem [shape: f32[2,32,32], index: 6, kind: input, shape index: {}]
  %s7 = inlined_call_operand.vmem [shape: f32[2,1,32], index: 7, kind: input, shape index: {}]
  %s8 = inlined_call_operand.vmem [shape: f32[2,1,32], index: 8, kind: input, shape index: {}]
  %s9 = inlined_call_operand.vmem [shape: f32[2,1,32], index: 9, kind: input, shape index: {}]
  %s10 = inlined_call_operand.vmem [shape: f32[2,32,64], index: 10, kind: input, shape index: {}]
  %s11 = inlined_call_operand.vmem [shape: f32[2,1,64], index: 11, kind: input, shape index: {}]
  %s12 = inlined_call_operand.vmem [shape: f32[2,64,32], index: 12, kind: input, shape index: {}]
  %s13 = inlined_call_operand.vmem [shape: f32[2,1,32], index: 13, kind: input, shape index: {}]
  %s14 = inlined_call_operand.vmem [shape: f32[1,32], index: 14, kind: input, shape index: {}]
  %s15 = inlined_call_operand.vmem [shape: f32[1,32], index: 15, kind: input, shape index: {}]
  %s16 = inlined_call_operand.hbm [shape: f32[1,2,32], index: 16, kind: output, shape index: {}]
  %s17 = sld [smem:[#allocation0]]
  $region74: #{ct_forward.1} parent=0
    _
  %s19 = ssub.s32 1, %s17
  %s20 = scalar_select 0, %s19, %s17
  $region1: #{ct_forward.1} parent=0
    #allocation2 [shape = 'u8[1024]{0}', space=vmem, size = 0x400, scoped, tag = 'output window, operand 0, single buffered']
    #allocation3 [shape = 's32[1]{0}', space=sflag, size = 0x4, scoped, tag = 'scoped memory for ct_forward.1']
    %21 = vsyncpa [#allocation3], 0
    // Predicated region
    $region2: #{ct_forward.1} parent=1 // pred_check
      _
    $region3: #{ct_forward.1} parent=1 // pred_check_branch
      %23 = sbr.rel (0) target = $region5
    $region4: #{ct_forward.1} parent=1 // pred_region
      _
    $region5: #{ct_forward.1} parent=1 // pred_fallthru
      _
    // Predicated region
    $region6: #{ct_forward.1} parent=1 // pred_check
      _
    $region7: #{ct_forward.1} parent=1 // pred_check_branch
      %25 = sbr.rel (0) target = $region9
    $region8: #{ct_forward.1} parent=1 // pred_region
      _
    $region9: #{ct_forward.1} parent=1 // pred_fallthru
      _
    // Predicated region
    $region10: #{ct_forward.1} parent=1 // pred_check
      _
    $region11: #{ct_forward.1} parent=1 // pred_check_branch
      %27 = sbr.rel (0) target = $region13
    $region12: #{ct_forward.1} parent=1 // pred_region
      _
    $region13: #{ct_forward.1} parent=1 // pred_fallthru
      _
    // Predicated region
    $region14: #{ct_forward.1} parent=1 // pred_check
      _
    $region15: #{ct_forward.1} parent=1 // pred_check_branch
      %29 = sbr.rel (0) target = $region17
    $region16: #{ct_forward.1} parent=1 // pred_region
      _
    $region17: #{ct_forward.1} parent=1 // pred_fallthru
      _
    // Predicated region
    $region18: #{ct_forward.1} parent=1 // pred_check
      _
    $region19: #{ct_forward.1} parent=1 // pred_check_branch
      %31 = sbr.rel (0) target = $region21
    $region20: #{ct_forward.1} parent=1 // pred_region
      _
    $region21: #{ct_forward.1} parent=1 // pred_fallthru
      _
    // Predicated region
    $region22: #{ct_forward.1} parent=1 // pred_check
      _
    $region23: #{ct_forward.1} parent=1 // pred_check_branch
      %33 = sbr.rel (0) target = $region25
    $region24: #{ct_forward.1} parent=1 // pred_region
      _
    $region25: #{ct_forward.1} parent=1 // pred_fallthru
      _
    // Predicated region
    $region26: #{ct_forward.1} parent=1 // pred_check
      _
    $region27: #{ct_forward.1} parent=1 // pred_check_branch
      %35 = sbr.rel (0) target = $region29
    $region28: #{ct_forward.1} parent=1 // pred_region
      _
    $region29: #{ct_forward.1} parent=1 // pred_fallthru
      _
    // Predicated region
    $region30: #{ct_forward.1} parent=1 // pred_check
      _
    $region31: #{ct_forward.1} parent=1 // pred_check_branch
      %37 = sbr.rel (0) target = $region33
    $region32: #{ct_forward.1} parent=1 // pred_region
      _
    $region33: #{ct_forward.1} parent=1 // pred_fallthru
      _
    // Predicated region
    $region34: #{ct_forward.1} parent=1 // pred_check
      _
    $region35: #{ct_forward.1} parent=1 // pred_check_branch
      %39 = sbr.rel (0) target = $region37
    $region36: #{ct_forward.1} parent=1 // pred_region
      _
    $region37: #{ct_forward.1} parent=1 // pred_fallthru
      _
    // Predicated region
    $region38: #{ct_forward.1} parent=1 // pred_check
      _
    $region39: #{ct_forward.1} parent=1 // pred_check_branch
      %41 = sbr.rel (0) target = $region41
    $region40: #{ct_forward.1} parent=1 // pred_region
      _
    $region41: #{ct_forward.1} parent=1 // pred_fallthru
      _
    // Predicated region
    $region42: #{ct_forward.1} parent=1 // pred_check
      _
    $region43: #{ct_forward.1} parent=1 // pred_check_branch
      %43 = sbr.rel (0) target = $region45
    $region44: #{ct_forward.1} parent=1 // pred_region
      _
    $region45: #{ct_forward.1} parent=1 // pred_fallthru
      _
    // Predicated region
    $region46: #{ct_forward.1} parent=1 // pred_check
      _
    $region47: #{ct_forward.1} parent=1 // pred_check_branch
      %45 = sbr.rel (0) target = $region49
    $region48: #{ct_forward.1} parent=1 // pred_region
      _
    $region49: #{ct_forward.1} parent=1 // pred_fallthru
      _
    // Predicated region
    $region50: #{ct_forward.1} parent=1 // pred_check
      _
    $region51: #{ct_forward.1} parent=1 // pred_check_branch
      %47 = sbr.rel (0) target = $region53
    $region52: #{ct_forward.1} parent=1 // pred_region
      _
    $region53: #{ct_forward.1} parent=1 // pred_fallthru
      _
    // Predicated region
    $region54: #{ct_forward.1} parent=1 // pred_check
      _
    $region55: #{ct_forward.1} parent=1 // pred_check_branch
      %49 = sbr.rel (0) target = $region57
    $region56: #{ct_forward.1} parent=1 // pred_region
      _
    $region57: #{ct_forward.1} parent=1 // pred_fallthru
      _
    // Predicated region
    $region58: #{ct_forward.1} parent=1 // pred_check
      _
    $region59: #{ct_forward.1} parent=1 // pred_check_branch
      %51 = sbr.rel (0) target = $region61
    $region60: #{ct_forward.1} parent=1 // pred_region
      _
    $region61: #{ct_forward.1} parent=1 // pred_fallthru
      _
    // Predicated region
    $region62: #{ct_forward.1} parent=1 // pred_check
      _
    $region63: #{ct_forward.1} parent=1 // pred_check_branch
      %53 = sbr.rel (0) target = $region65
    $region64: #{ct_forward.1} parent=1 // pred_region
      _
    $region65: #{ct_forward.1} parent=1 // pred_fallthru
      _
    %v54 = vld [vmem:[%s0] sm:$0xff]
    %v55 = vld [vmem:[%s0 + $0x8] sm:$0xff]
    %v56 = vld [vmem:[%s0 + $0x10] sm:$0xff]
    %v57 = vld [vmem:[%s0 + $0x18] sm:$0xff]
    %v58 = vld [vmem:[%s0 + $0x20] sm:$0xff]
    %v59 = vld [vmem:[%s0 + $0x28] sm:$0xff]
    %v60 = vld [vmem:[%s0 + $0x30] sm:$0xff]
    %v61 = vld [vmem:[%s0 + $0x38] sm:$0xff]
    %v62 = vld [vmem:[%s1] sm:$0xff]
    %v63 = vld [vmem:[%s1 + $0x8] sm:$0xff]
    %v64 = vld [vmem:[%s1 + $0x10] sm:$0xff]
    %v65 = vld [vmem:[%s1 + $0x18] sm:$0xff]
    %v66 = vld [vmem:[%s2] sm:$0xff]
    %v67 = vld [vmem:[%s2 + $0x8] sm:$0xff]
    %v68 = vld [vmem:[%s2 + $0x10] sm:$0xff]
    %v69 = vld [vmem:[%s2 + $0x18] sm:$0xff]
    %v70 = vld [vmem:[%s2 + $0x20] sm:$0xff]
    %v71 = vld [vmem:[%s2 + $0x28] sm:$0xff]
    %v72 = vld [vmem:[%s2 + $0x30] sm:$0xff]
    %v73 = vld [vmem:[%s2 + $0x38] sm:$0xff]
    %vm74 = vcmask 261120
    %v76 = vsel %vm74, %v54, 0
    %v79 = vsel %vm74, %v55, 0
    %v82 = vsel %vm74, %v56, 0
    %v85 = vsel %vm74, %v57, 0
    %v88 = vsel %vm74, %v58, 0
    %v91 = vsel %vm74, %v59, 0
    %v94 = vsel %vm74, %v60, 0
    %v97 = vsel %vm74, %v61, 0
    %99 = vmatprep.subr.mxu0 0.0
    %100 = vmatpush1.msra.mxu0 %v62
    %101 = vmatprep.subr.mxu0 0.0
    %102 = vmatpush1.msra.mxu0 %v63
    %103 = vmatprep.subr.mxu0 0.0
    %104 = vmatpush1.msra.mxu0 %v64
    %105 = vmatprep.subr.mxu0 0.0
    %106 = vmatpush1.msra.mxu0 %v65
    %107 = vmatprep.subr.mxu0 0.0
    %108 = vmatpush1.msra.mxu0 0.0
    %109 = vmatprep.subr.mxu0 0.0
    %110 = vmatpush1.msra.mxu0 0.0
    %111 = vmatprep.subr.mxu0 0.0
    %112 = vmatpush1.msra.mxu0 0.0
    %113 = vmatprep.subr.mxu0 0.0
    %114 = vmatpush1.msra.mxu0 0.0
    %115 = vmatprep.subr.mxu0 0.0
    %116 = vmatpush1.msra.mxu0 0.0
    %117 = vmatprep.subr.mxu0 0.0
    %118 = vmatpush1.msra.mxu0 0.0
    %119 = vmatprep.subr.mxu0 0.0
    %120 = vmatpush1.msra.mxu0 0.0
    %121 = vmatprep.subr.mxu0 0.0
    %122 = vmatpush1.msra.mxu0 0.0
    %123 = vmatprep.subr.mxu0 0.0
    %124 = vmatpush1.msra.mxu0 0.0
    %125 = vmatprep.subr.mxu0 0.0
    %126 = vmatpush1.msra.mxu0 0.0
    %127 = vmatprep.subr.mxu0 0.0
    %128 = vmatpush1.msra.mxu0 0.0
    %129 = vmatprep.subr.mxu0 0.0
    %130 = vmatpush1.msra.mxu0 0.0
    %131 = vmatprep.subr.mxu0 0.0
    %132 = vmatpush1.msra.mxu0 0.0
    %133 = vmatprep.subr.mxu0 0.0
    %134 = vmatpush1.msra.mxu0 0.0
    %135 = vmatprep.subr.mxu0 0.0
    %136 = vmatpush1.msra.mxu0 0.0
    %137 = vmatprep.subr.mxu0 0.0
    %138 = vmatpush1.msra.mxu0 0.0
    %139 = vmatprep.subr.mxu0 0.0
    %140 = vmatpush1.msra.mxu0 0.0
    %141 = vmatprep.subr.mxu0 0.0
    %142 = vmatpush1.msra.mxu0 0.0
    %143 = vmatprep.subr.mxu0 0.0
    %144 = vmatpush1.msra.mxu0 0.0
    %145 = vmatprep.subr.mxu0 0.0
    %146 = vmatpush1.msra.mxu0 0.0
    %147 = vmatprep.subr.mxu0 0.0
    %148 = vmatpush1.msra.mxu0 0.0
    %149 = vmatprep.subr.mxu0 0.0
    %150 = vmatpush1.msra.mxu0 0.0
    %151 = vmatprep.subr.mxu0 0.0
    %152 = vmatpush1.msra.mxu0 0.0
    %153 = vmatprep.subr.mxu0 0.0
    %154 = vmatpush1.msra.mxu0 0.0
    %155 = vmatprep.subr.mxu0 0.0
    %156 = vmatpush1.msra.mxu0 0.0
    %157 = vmatprep.subr.mxu0 0.0
    %158 = vmatpush1.msra.mxu0 0.0
    %159 = vmatprep.subr.mxu0 0.0
    %160 = vmatpush1.msra.mxu0 0.0
    %161 = vmatprep.subr.mxu0 0.0
    %162 = vmatpush1.msra.mxu0 0.0
    %163 = vmatprep.mubr.f32.mxu0 0.0
    %164 = vmatmul.mubr.f32.gmra.mrb[0].mxu0 %v76
    %v165 = vpop.f32.mrb[0].mxu0
    %v166 = vadd.f32 %v66, %v165
    %v167 = vpop.f32.mrb[0].mxu0
    %168 = vmatprep.mubr.f32.mxu0 0.0
    %169 = vmatmul.mubr.f32.gmra.mrb[0].mxu0 %v79
    %v170 = vpop.f32.mrb[0].mxu0
    %v171 = vadd.f32 %v67, %v170
    %v172 = vpop.f32.mrb[0].mxu0
    %173 = vmatprep.mubr.f32.mxu0 0.0
    %174 = vmatmul.mubr.f32.gmra.mrb[0].mxu0 %v82
    %v175 = vpop.f32.mrb[0].mxu0
    %v176 = vadd.f32 %v68, %v175
    %v177 = vpop.f32.mrb[0].mxu0
    %178 = vmatprep.mubr.f32.mxu0 0.0
    %179 = vmatmul.mubr.f32.gmra.mrb[0].mxu0 %v85
    %v180 = vpop.f32.mrb[0].mxu0
    %v181 = vadd.f32 %v69, %v180
    %v182 = vpop.f32.mrb[0].mxu0
    %183 = vmatprep.mubr.f32.mxu0 0.0
    %184 = vmatmul.mubr.f32.gmra.mrb[0].mxu0 %v88
    %v185 = vpop.f32.mrb[0].mxu0
    %v186 = vadd.f32 %v70, %v185
    %v187 = vpop.f32.mrb[0].mxu0
    %188 = vmatprep.mubr.f32.mxu0 0.0
    %189 = vmatmul.mubr.f32.gmra.mrb[0].mxu0 %v91
    %v190 = vpop.f32.mrb[0].mxu0
    %v191 = vadd.f32 %v71, %v190
    %v192 = vpop.f32.mrb[0].mxu0
    %193 = vmatprep.mubr.f32.mxu0 0.0
    %194 = vmatmul.mubr.f32.gmra.mrb[0].mxu0 %v94
    %v195 = vpop.f32.mrb[0].mxu0
    %v196 = vadd.f32 %v72, %v195
    %v197 = vpop.f32.mrb[0].mxu0
    %198 = vmatprep.mubr.f32.mxu0 0.0
    %199 = vmatmul.mubr.f32.gmra.mrb[0].mxu0 %v97
    %v200 = vpop.f32.mrb[0].mxu0
    %v201 = vadd.f32 %v73, %v200
    %v202 = vpop.f32.mrb[0].mxu0
    %203 = vdwg.mxu0
    %v204 = vld [vmem:[%s3] sm:$0x1]
    %v205 = vld [vmem:[%s4] sm:$0x1]
    %v206 = vsel %vm74, %v166, 0.0
    %207 = vadd.xlane.f32.xlu0 %v206
    %v208 = vpop.xlane.xlu0 %207
    %v209 = vsel %vm74, %v171, 0.0
    %210 = vadd.xlane.f32.xlu0 %v209
    %v211 = vpop.xlane.xlu0 %210
    %v212 = vsel %vm74, %v176, 0.0
    %213 = vadd.xlane.f32.xlu0 %v212
    %v214 = vpop.xlane.xlu0 %213
    %v215 = vsel %vm74, %v181, 0.0
    %216 = vadd.xlane.f32.xlu0 %v215
    %v217 = vpop.xlane.xlu0 %216
    %v218 = vsel %vm74, %v186, 0.0
    %219 = vadd.xlane.f32.xlu0 %v218
    %v220 = vpop.xlane.xlu0 %219
    %v221 = vsel %vm74, %v191, 0.0
    %222 = vadd.xlane.f32.xlu0 %v221
    %v223 = vpop.xlane.xlu0 %222
    %v224 = vsel %vm74, %v196, 0.0
    %225 = vadd.xlane.f32.xlu0 %v224
    %v226 = vpop.xlane.xlu0 %225
    %v227 = vsel %vm74, %v201, 0.0
    %228 = vadd.xlane.f32.xlu0 %v227
    %v229 = vpop.xlane.xlu0 %228
    %v230 = vrcp.pop 32.0
    %v231 = vmul.f32 %v208, %v230
    %v232 = vmul.f32 %v211, %v230
    %v233 = vmul.f32 %v214, %v230
    %v234 = vmul.f32 %v217, %v230
    %v235 = vmul.f32 %v220, %v230
    %v236 = vmul.f32 %v223, %v230
    %v237 = vmul.f32 %v226, %v230
    %v238 = vmul.f32 %v229, %v230
    %v239 = vsub.f32 %v166, %v231
    %v240 = vsub.f32 %v171, %v232
    %v241 = vsub.f32 %v176, %v233
    %v242 = vsub.f32 %v181, %v234
    %v243 = vsub.f32 %v186, %v235
    %v244 = vsub.f32 %v191, %v236
    %v245 = vsub.f32 %v196, %v237
    %v246 = vsub.f32 %v201, %v238
    %v247 = vmul.f32 %v239, %v239
    %v248 = vmul.f32 %v240, %v240
    %v249 = vmul.f32 %v241, %v241
    %v250 = vmul.f32 %v242, %v242
    %v251 = vmul.f32 %v243, %v243
    %v252 = vmul.f32 %v244, %v244
    %v253 = vmul.f32 %v245, %v245
    %v254 = vmul.f32 %v246, %v246
    %v255 = vsel %vm74, %v247, 0.0
    %256 = vadd.xlane.f32.xlu0 %v255
    %v257 = vpop.xlane.xlu0 %256
    %v258 = vsel %vm74, %v248, 0.0
    %259 = vadd.xlane.f32.xlu0 %v258
    %v260 = vpop.xlane.xlu0 %259
    %v261 = vsel %vm74, %v249, 0.0
    %262 = vadd.xlane.f32.xlu0 %v261
    %v263 = vpop.xlane.xlu0 %262
    %v264 = vsel %vm74, %v250, 0.0
    %265 = vadd.xlane.f32.xlu0 %v264
    %v266 = vpop.xlane.xlu0 %265
    %v267 = vsel %vm74, %v251, 0.0
    %268 = vadd.xlane.f32.xlu0 %v267
    %v269 = vpop.xlane.xlu0 %268
    %v270 = vsel %vm74, %v252, 0.0
    %271 = vadd.xlane.f32.xlu0 %v270
    %v272 = vpop.xlane.xlu0 %271
    %v273 = vsel %vm74, %v253, 0.0
    %274 = vadd.xlane.f32.xlu0 %v273
    %v275 = vpop.xlane.xlu0 %274
    %v276 = vsel %vm74, %v254, 0.0
    %277 = vadd.xlane.f32.xlu0 %v276
    %v278 = vpop.xlane.xlu0 %277
    %v279 = vmul.f32 %v257, %v230
    %v280 = vmul.f32 %v260, %v230
    %v281 = vmul.f32 %v263, %v230
    %v282 = vmul.f32 %v266, %v230
    %v283 = vmul.f32 %v269, %v230
    %v284 = vmul.f32 %v272, %v230
    %v285 = vmul.f32 %v275, %v230
    %v286 = vmul.f32 %v278, %v230
    %v287 = vadd.f32 %v279, 1e-05
    %v288 = vadd.f32 %v280, 1e-05
    %v289 = vadd.f32 %v281, 1e-05
    %v290 = vadd.f32 %v282, 1e-05
    %v291 = vadd.f32 %v283, 1e-05
    %v292 = vadd.f32 %v284, 1e-05
    %v293 = vadd.f32 %v285, 1e-05
    %v294 = vadd.f32 %v286, 1e-05
    %v295 = vrsqrt.pop %v287
    %v296 = vrsqrt.pop %v288
    %v297 = vrsqrt.pop %v289
    %v298 = vrsqrt.pop %v290
    %v299 = vrsqrt.pop %v291
    %v300 = vrsqrt.pop %v292
    %v301 = vrsqrt.pop %v293
    %v302 = vrsqrt.pop %v294
    %v303 = vmul.f32 %v239, %v295
    %v304 = vmul.f32 %v240, %v296
    %v305 = vmul.f32 %v241, %v297
    %v306 = vmul.f32 %v242, %v298
    %v307 = vmul.f32 %v243, %v299
    %v308 = vmul.f32 %v244, %v300
    %v309 = vmul.f32 %v245, %v301
    %v310 = vmul.f32 %v246, %v302
    %v312 = vlaneseq
    %v313 = vshrl.u32 %v312, 7
    %v314 = vsub.s32 0, %v313
    %v315 = vrot.slane %v204, %v314
    %v317 = vmul.f32 %v303, %v315
    %v318 = vmul.f32 %v304, %v315
    %v319 = vmul.f32 %v305, %v315
    %v320 = vmul.f32 %v306, %v315
    %v321 = vmul.f32 %v307, %v315
    %v322 = vmul.f32 %v308, %v315
    %v323 = vmul.f32 %v309, %v315
    %v324 = vmul.f32 %v310, %v315
    %v326 = vlaneseq
    %v327 = vshrl.u32 %v326, 7
    %v328 = vsub.s32 0, %v327
    %v329 = vrot.slane %v205, %v328
    %v331 = vadd.f32 %v317, %v329
    %v332 = vadd.f32 %v318, %v329
    %v333 = vadd.f32 %v319, %v329
    %v334 = vadd.f32 %v320, %v329
    %v335 = vadd.f32 %v321, %v329
    %v336 = vadd.f32 %v322, %v329
    %v337 = vadd.f32 %v323, %v329
    %v338 = vadd.f32 %v324, %v329
    %v339 = vld [vmem:[%s5] sm:$0xff]
    %v340 = vld [vmem:[%s5 + $0x8] sm:$0xff]
    %v341 = vld [vmem:[%s5 + $0x10] sm:$0xff]
    %v342 = vld [vmem:[%s5 + $0x18] sm:$0xff]
    %v344 = vsel %vm74, %v331, 0
    %v347 = vsel %vm74, %v332, 0
    %v350 = vsel %vm74, %v333, 0
    %v353 = vsel %vm74, %v334, 0
    %v356 = vsel %vm74, %v335, 0
    %v359 = vsel %vm74, %v336, 0
    %v362 = vsel %vm74, %v337, 0
    %v365 = vsel %vm74, %v338, 0
    %367 = vmatprep.subr.mxu0 0.0
    %368 = vmatpush1.msra.mxu0 %v339
    %369 = vmatprep.subr.mxu0 0.0
    %370 = vmatpush1.msra.mxu0 %v340
    %371 = vmatprep.subr.mxu0 0.0
    %372 = vmatpush1.msra.mxu0 %v341
    %373 = vmatprep.subr.mxu0 0.0
    %374 = vmatpush1.msra.mxu0 %v342
    %375 = vmatprep.subr.mxu0 0.0
    %376 = vmatpush1.msra.mxu0 0.0
    %377 = vmatprep.subr.mxu0 0.0
    %378 = vmatpush1.msra.mxu0 0.0
    %379 = vmatprep.subr.mxu0 0.0
    %380 = vmatpush1.msra.mxu0 0.0
    %381 = vmatprep.subr.mxu0 0.0
    %382 = vmatpush1.msra.mxu0 0.0
    %383 = vmatprep.subr.mxu0 0.0
    %384 = vmatpush1.msra.mxu0 0.0
    %385 = vmatprep.subr.mxu0 0.0
    %386 = vmatpush1.msra.mxu0 0.0
    %387 = vmatprep.subr.mxu0 0.0
    %388 = vmatpush1.msra.mxu0 0.0
    %389 = vmatprep.subr.mxu0 0.0
    %390 = vmatpush1.msra.mxu0 0.0
    %391 = vmatprep.subr.mxu0 0.0
    %392 = vmatpush1.msra.mxu0 0.0
    %393 = vmatprep.subr.mxu0 0.0
    %394 = vmatpush1.msra.mxu0 0.0
    %395 = vmatprep.subr.mxu0 0.0
    %396 = vmatpush1.msra.mxu0 0.0
    %397 = vmatprep.subr.mxu0 0.0
    %398 = vmatpush1.msra.mxu0 0.0
    %399 = vmatprep.subr.mxu0 0.0
    %400 = vmatpush1.msra.mxu0 0.0
    %401 = vmatprep.subr.mxu0 0.0
    %402 = vmatpush1.msra.mxu0 0.0
    %403 = vmatprep.subr.mxu0 0.0
    %404 = vmatpush1.msra.mxu0 0.0
    %405 = vmatprep.subr.mxu0 0.0
    %406 = vmatpush1.msra.mxu0 0.0
    %407 = vmatprep.subr.mxu0 0.0
    %408 = vmatpush1.msra.mxu0 0.0
    %409 = vmatprep.subr.mxu0 0.0
    %410 = vmatpush1.msra.mxu0 0.0
    %411 = vmatprep.subr.mxu0 0.0
    %412 = vmatpush1.msra.mxu0 0.0
    %413 = vmatprep.subr.mxu0 0.0
    %414 = vmatpush1.msra.mxu0 0.0
    %415 = vmatprep.subr.mxu0 0.0
    %416 = vmatpush1.msra.mxu0 0.0
    %417 = vmatprep.subr.mxu0 0.0
    %418 = vmatpush1.msra.mxu0 0.0
    %419 = vmatprep.subr.mxu0 0.0
    %420 = vmatpush1.msra.mxu0 0.0
    %421 = vmatprep.subr.mxu0 0.0
    %422 = vmatpush1.msra.mxu0 0.0
    %423 = vmatprep.subr.mxu0 0.0
    %424 = vmatpush1.msra.mxu0 0.0
    %425 = vmatprep.subr.mxu0 0.0
    %426 = vmatpush1.msra.mxu0 0.0
    %427 = vmatprep.subr.mxu0 0.0
    %428 = vmatpush1.msra.mxu0 0.0
    %429 = vmatprep.subr.mxu0 0.0
    %430 = vmatpush1.msra.mxu0 0.0
    %431 = vmatprep.mubr.f32.mxu0 0.0
    %432 = vmatmul.mubr.f32.gmra.mrb[0].mxu0 %v344
    %v433 = vpop.f32.mrb[0].mxu0
    %v434 = vadd.f32 0.0, %v433
    %v435 = vpop.f32.mrb[0].mxu0
    %436 = vmatprep.mubr.f32.mxu0 0.0
    %437 = vmatmul.mubr.f32.gmra.mrb[0].mxu0 %v347
    %v438 = vpop.f32.mrb[0].mxu0
    %v439 = vadd.f32 0.0, %v438
    %v440 = vpop.f32.mrb[0].mxu0
    %441 = vmatprep.mubr.f32.mxu0 0.0
    %442 = vmatmul.mubr.f32.gmra.mrb[0].mxu0 %v350
    %v443 = vpop.f32.mrb[0].mxu0
    %v444 = vadd.f32 0.0, %v443
    %v445 = vpop.f32.mrb[0].mxu0
    %446 = vmatprep.mubr.f32.mxu0 0.0
    %447 = vmatmul.mubr.f32.gmra.mrb[0].mxu0 %v353
    %v448 = vpop.f32.mrb[0].mxu0
    %v449 = vadd.f32 0.0, %v448
    %v450 = vpop.f32.mrb[0].mxu0
    %451 = vmatprep.mubr.f32.mxu0 0.0
    %452 = vmatmul.mubr.f32.gmra.mrb[0].mxu0 %v356
    %v453 = vpop.f32.mrb[0].mxu0
    %v454 = vadd.f32 0.0, %v453
    %v455 = vpop.f32.mrb[0].mxu0
    %456 = vmatprep.mubr.f32.mxu0 0.0
    %457 = vmatmul.mubr.f32.gmra.mrb[0].mxu0 %v359
    %v458 = vpop.f32.mrb[0].mxu0
    %v459 = vadd.f32 0.0, %v458
    %v460 = vpop.f32.mrb[0].mxu0
    %461 = vmatprep.mubr.f32.mxu0 0.0
    %462 = vmatmul.mubr.f32.gmra.mrb[0].mxu0 %v362
    %v463 = vpop.f32.mrb[0].mxu0
    %v464 = vadd.f32 0.0, %v463
    %v465 = vpop.f32.mrb[0].mxu0
    %466 = vmatprep.mubr.f32.mxu0 0.0
    %467 = vmatmul.mubr.f32.gmra.mrb[0].mxu0 %v365
    %v468 = vpop.f32.mrb[0].mxu0
    %v469 = vadd.f32 0.0, %v468
    %v470 = vpop.f32.mrb[0].mxu0
    %471 = vdwg.mxu0
    %476 = vrot.lane.b32.xlu0 %v434, 96
    %v477 = vpop.permute.xlu0 %476
    %478 = vrot.lane.b32.xlu0 %v439, 96
    %v479 = vpop.permute.xlu0 %478
    %480 = vrot.lane.b32.xlu0 %v444, 96
    %v481 = vpop.permute.xlu0 %480
    %482 = vrot.lane.b32.xlu0 %v449, 96
    %v483 = vpop.permute.xlu0 %482
    %vm484 = vcmask 130048
    %v485 = vsel %vm484, %v434, 0
    %v487 = vsel %vm484, %v439, 0
    %v489 = vsel %vm484, %v444, 0
    %v491 = vsel %vm484, %v449, 0
    %v493 = vsel %vm484, %v477, 0
    %v495 = vsel %vm484, %v479, 0
    %v497 = vsel %vm484, %v481, 0
    %v499 = vsel %vm484, %v483, 0
    %501 = vmatprep.subr.mxu0 0.0
    %502 = vmatpush1.xpose.msra.mxu0 %v493
    %503 = vmatprep.subr.mxu0 0.0
    %504 = vmatpush1.xpose.msra.mxu0 %v495
    %505 = vmatprep.subr.mxu0 0.0
    %506 = vmatpush1.xpose.msra.mxu0 %v497
    %507 = vmatprep.subr.mxu0 0.0
    %508 = vmatpush1.xpose.msra.mxu0 %v499
    %509 = vmatprep.subr.mxu0 0.0
    %510 = vmatpush1.xpose.msra.mxu0 0.0
    %511 = vmatprep.subr.mxu0 0.0
    %512 = vmatpush1.xpose.msra.mxu0 0.0
    %513 = vmatprep.subr.mxu0 0.0
    %514 = vmatpush1.xpose.msra.mxu0 0.0
    %515 = vmatprep.subr.mxu0 0.0
    %516 = vmatpush1.xpose.msra.mxu0 0.0
    %517 = vmatprep.subr.mxu0 0.0
    %518 = vmatpush1.xpose.msra.mxu0 0.0
    %519 = vmatprep.subr.mxu0 0.0
    %520 = vmatpush1.xpose.msra.mxu0 0.0
    %521 = vmatprep.subr.mxu0 0.0
    %522 = vmatpush1.xpose.msra.mxu0 0.0
    %523 = vmatprep.subr.mxu0 0.0
    %524 = vmatpush1.xpose.msra.mxu0 0.0
    %525 = vmatprep.subr.mxu0 0.0
    %526 = vmatpush1.xpose.msra.mxu0 0.0
    %527 = vmatprep.subr.mxu0 0.0
    %528 = vmatpush1.xpose.msra.mxu0 0.0
    %529 = vmatprep.subr.mxu0 0.0
    %530 = vmatpush1.xpose.msra.mxu0 0.0
    %531 = vmatprep.subr.mxu0 0.0
    %532 = vmatpush1.xpose.msra.mxu0 0.0
    %533 = vmatprep.subr.mxu0 0.0
    %534 = vmatpush1.xpose.msra.mxu0 0.0
    %535 = vmatprep.subr.mxu0 0.0
    %536 = vmatpush1.xpose.msra.mxu0 0.0
    %537 = vmatprep.subr.mxu0 0.0
    %538 = vmatpush1.xpose.msra.mxu0 0.0
    %539 = vmatprep.subr.mxu0 0.0
    %540 = vmatpush1.xpose.msra.mxu0 0.0
    %541 = vmatprep.subr.mxu0 0.0
    %542 = vmatpush1.xpose.msra.mxu0 0.0
    %543 = vmatprep.subr.mxu0 0.0
    %544 = vmatpush1.xpose.msra.mxu0 0.0
    %545 = vmatprep.subr.mxu0 0.0
    %546 = vmatpush1.xpose.msra.mxu0 0.0
    %547 = vmatprep.subr.mxu0 0.0
    %548 = vmatpush1.xpose.msra.mxu0 0.0
    %549 = vmatprep.subr.mxu0 0.0
    %550 = vmatpush1.xpose.msra.mxu0 0.0
    %551 = vmatprep.subr.mxu0 0.0
    %552 = vmatpush1.xpose.msra.mxu0 0.0
    %553 = vmatprep.subr.mxu0 0.0
    %554 = vmatpush1.xpose.msra.mxu0 0.0
    %555 = vmatprep.subr.mxu0 0.0
    %556 = vmatpush1.xpose.msra.mxu0 0.0
    %557 = vmatprep.subr.mxu0 0.0
    %558 = vmatpush1.xpose.msra.mxu0 0.0
    %559 = vmatprep.subr.mxu0 0.0
    %560 = vmatpush1.xpose.msra.mxu0 0.0
    %561 = vmatprep.subr.mxu0 0.0
    %562 = vmatpush1.xpose.msra.mxu0 0.0
    %563 = vmatprep.subr.mxu0 0.0
    %564 = vmatpush1.xpose.msra.mxu0 0.0
    %565 = vmatprep.mubr.f32.mxu0 0.0
    %566 = vmatmul.mubr.f32.gmra.mrb[0].mxu0 %v485
    %v567 = vpop.f32.mrb[0].mxu0
    %v568 = vadd.f32 0.0, %v567
    %v569 = vpop.f32.mrb[0].mxu0
    %570 = vmatprep.mubr.f32.mxu0 0.0
    %571 = vmatmul.mubr.f32.gmra.mrb[0].mxu0 %v487
    %v572 = vpop.f32.mrb[0].mxu0
    %v573 = vadd.f32 0.0, %v572
    %v574 = vpop.f32.mrb[0].mxu0
    %575 = vmatprep.mubr.f32.mxu0 0.0
    %576 = vmatmul.mubr.f32.gmra.mrb[0].mxu0 %v489
    %v577 = vpop.f32.mrb[0].mxu0
    %v578 = vadd.f32 0.0, %v577
    %v579 = vpop.f32.mrb[0].mxu0
    %580 = vmatprep.mubr.f32.mxu0 0.0
    %581 = vmatmul.mubr.f32.gmra.mrb[0].mxu0 %v491
    %v582 = vpop.f32.mrb[0].mxu0
    %v583 = vadd.f32 0.0, %v582
    %v584 = vpop.f32.mrb[0].mxu0
    %585 = vdwg.mxu0
    %v586 = vsel %vm74, %v568, -inf
    %587 = vmax.xlane.f32.xlu0 %v586
    %v588 = vpop.xlane.xlu0 %587
    %v589 = vsel %vm74, %v573, -inf
    %590 = vmax.xlane.f32.xlu0 %v589
    %v591 = vpop.xlane.xlu0 %590
    %v592 = vsel %vm74, %v578, -inf
    %593 = vmax.xlane.f32.xlu0 %v592
    %v594 = vpop.xlane.xlu0 %593
    %v595 = vsel %vm74, %v583, -inf
    %596 = vmax.xlane.f32.xlu0 %v595
    %v597 = vpop.xlane.xlu0 %596
    %v598 = vsub.f32 %v568, %v588
    %v599 = vsub.f32 %v573, %v591
    %v600 = vsub.f32 %v578, %v594
    %v601 = vsub.f32 %v583, %v597
    %v602 = vmul.f32 %v598, 1.442695
    %v603 = vpow.pop %v602
    %v604 = vmul.f32 %v599, 1.442695
    %v605 = vpow.pop %v604
    %v606 = vmul.f32 %v600, 1.442695
    %v607 = vpow.pop %v606
    %v608 = vmul.f32 %v601, 1.442695
    %v609 = vpow.pop %v608
    %v610 = vsel %vm74, %v603, 0.0
    %611 = vadd.xlane.f32.xlu0 %v610
    %v612 = vpop.xlane.xlu0 %611
    %v613 = vsel %vm74, %v605, 0.0
    %614 = vadd.xlane.f32.xlu0 %v613
    %v615 = vpop.xlane.xlu0 %614
    %v616 = vsel %vm74, %v607, 0.0
    %617 = vadd.xlane.f32.xlu0 %v616
    %v618 = vpop.xlane.xlu0 %617
    %v619 = vsel %vm74, %v609, 0.0
    %620 = vadd.xlane.f32.xlu0 %v619
    %v621 = vpop.xlane.xlu0 %620
    %622 = vrot.lane.b32.xlu0 %v434, 64
    %v623 = vpop.permute.xlu0 %622
    %624 = vrot.lane.b32.xlu0 %v439, 64
    %v625 = vpop.permute.xlu0 %624
    %626 = vrot.lane.b32.xlu0 %v444, 64
    %v627 = vpop.permute.xlu0 %626
    %628 = vrot.lane.b32.xlu0 %v449, 64
    %v629 = vpop.permute.xlu0 %628
    %v635 = vsel %vm74, %v603, 0
    %v638 = vsel %vm74, %v605, 0
    %v641 = vsel %vm74, %v607, 0
    %v644 = vsel %vm74, %v609, 0
    %646 = vmatprep.subr.mxu0 0.0
    %647 = vmatpush1.msra.mxu0 %v623
    %648 = vmatprep.subr.mxu0 0.0
    %649 = vmatpush1.msra.mxu0 %v625
    %650 = vmatprep.subr.mxu0 0.0
    %651 = vmatpush1.msra.mxu0 %v627
    %652 = vmatprep.subr.mxu0 0.0
    %653 = vmatpush1.msra.mxu0 %v629
    %654 = vmatprep.subr.mxu0 0.0
    %655 = vmatpush1.msra.mxu0 0.0
    %656 = vmatprep.subr.mxu0 0.0
    %657 = vmatpush1.msra.mxu0 0.0
    %658 = vmatprep.subr.mxu0 0.0
    %659 = vmatpush1.msra.mxu0 0.0
    %660 = vmatprep.subr.mxu0 0.0
    %661 = vmatpush1.msra.mxu0 0.0
    %662 = vmatprep.subr.mxu0 0.0
    %663 = vmatpush1.msra.mxu0 0.0
    %664 = vmatprep.subr.mxu0 0.0
    %665 = vmatpush1.msra.mxu0 0.0
    %666 = vmatprep.subr.mxu0 0.0
    %667 = vmatpush1.msra.mxu0 0.0
    %668 = vmatprep.subr.mxu0 0.0
    %669 = vmatpush1.msra.mxu0 0.0
    %670 = vmatprep.subr.mxu0 0.0
    %671 = vmatpush1.msra.mxu0 0.0
    %672 = vmatprep.subr.mxu0 0.0
    %673 = vmatpush1.msra.mxu0 0.0
    %674 = vmatprep.subr.mxu0 0.0
    %675 = vmatpush1.msra.mxu0 0.0
    %676 = vmatprep.subr.mxu0 0.0
    %677 = vmatpush1.msra.mxu0 0.0
    %678 = vmatprep.subr.mxu0 0.0
    %679 = vmatpush1.msra.mxu0 0.0
    %680 = vmatprep.subr.mxu0 0.0
    %681 = vmatpush1.msra.mxu0 0.0
    %682 = vmatprep.subr.mxu0 0.0
    %683 = vmatpush1.msra.mxu0 0.0
    %684 = vmatprep.subr.mxu0 0.0
    %685 = vmatpush1.msra.mxu0 0.0
    %686 = vmatprep.subr.mxu0 0.0
    %687 = vmatpush1.msra.mxu0 0.0
    %688 = vmatprep.subr.mxu0 0.0
    %689 = vmatpush1.msra.mxu0 0.0
    %690 = vmatprep.subr.mxu0 0.0
    %691 = vmatpush1.msra.mxu0 0.0
    %692 = vmatprep.subr.mxu0 0.0
    %693 = vmatpush1.msra.mxu0 0.0
    %694 = vmatprep.subr.mxu0 0.0
    %695 = vmatpush1.msra.mxu0 0.0
    %696 = vmatprep.subr.mxu0 0.0
    %697 = vmatpush1.msra.mxu0 0.0
    %698 = vmatprep.subr.mxu0 0.0
    %699 = vmatpush1.msra.mxu0 0.0
    %700 = vmatprep.subr.mxu0 0.0
    %701 = vmatpush1.msra.mxu0 0.0
    %702 = vmatprep.subr.mxu0 0.0
    %703 = vmatpush1.msra.mxu0 0.0
    %704 = vmatprep.subr.mxu0 0.0
    %705 = vmatpush1.msra.mxu0 0.0
    %706 = vmatprep.subr.mxu0 0.0
    %707 = vmatpush1.msra.mxu0 0.0
    %708 = vmatprep.subr.mxu0 0.0
    %709 = vmatpush1.msra.mxu0 0.0
    %710 = vmatprep.mubr.f32.mxu0 0.0
    %711 = vmatmul.mubr.f32.gmra.mrb[0].mxu0 %v635
    %v712 = vpop.f32.mrb[0].mxu0
    %v713 = vadd.f32 0.0, %v712
    %v714 = vpop.f32.mrb[0].mxu0
    %715 = vmatprep.mubr.f32.mxu0 0.0
    %716 = vmatmul.mubr.f32.gmra.mrb[0].mxu0 %v638
    %v717 = vpop.f32.mrb[0].mxu0
    %v718 = vadd.f32 0.0, %v717
    %v719 = vpop.f32.mrb[0].mxu0
    %720 = vmatprep.mubr.f32.mxu0 0.0
    %721 = vmatmul.mubr.f32.gmra.mrb[0].mxu0 %v641
    %v722 = vpop.f32.mrb[0].mxu0
    %v723 = vadd.f32 0.0, %v722
    %v724 = vpop.f32.mrb[0].mxu0
    %725 = vmatprep.mubr.f32.mxu0 0.0
    %726 = vmatmul.mubr.f32.gmra.mrb[0].mxu0 %v644
    %v727 = vpop.f32.mrb[0].mxu0
    %v728 = vadd.f32 0.0, %v727
    %v729 = vpop.f32.mrb[0].mxu0
    %730 = vdwg.mxu0
    %v731 = vrcp.pop %v612
    %v732 = vrcp.pop %v615
    %v733 = vrcp.pop %v618
    %v734 = vrcp.pop %v621
    %v735 = vmul.f32 %v713, %v731
    %v736 = vmul.f32 %v718, %v732
    %v737 = vmul.f32 %v723, %v733
    %v738 = vmul.f32 %v728, %v734
    %739 = vrot.lane.b32.xlu0 %v434, 112
    %v740 = vpop.permute.xlu0 %739
    %741 = vrot.lane.b32.xlu0 %v439, 112
    %v742 = vpop.permute.xlu0 %741
    %743 = vrot.lane.b32.xlu0 %v444, 112
    %v744 = vpop.permute.xlu0 %743
    %745 = vrot.lane.b32.xlu0 %v449, 112
    %v746 = vpop.permute.xlu0 %745
    %747 = vrot.lane.b32.xlu0 %v434, 80
    %v748 = vpop.permute.xlu0 %747
    %749 = vrot.lane.b32.xlu0 %v439, 80
    %v750 = vpop.permute.xlu0 %749
    %751 = vrot.lane.b32.xlu0 %v444, 80
    %v752 = vpop.permute.xlu0 %751
    %753 = vrot.lane.b32.xlu0 %v449, 80
    %v754 = vpop.permute.xlu0 %753
    %v755 = vsel %vm484, %v740, 0
    %v757 = vsel %vm484, %v742, 0
    %v759 = vsel %vm484, %v744, 0
    %v761 = vsel %vm484, %v746, 0
    %v763 = vsel %vm484, %v748, 0
    %v765 = vsel %vm484, %v750, 0
    %v767 = vsel %vm484, %v752, 0
    %v769 = vsel %vm484, %v754, 0
    %771 = vmatprep.subr.mxu0 0.0
    %772 = vmatpush1.xpose.msra.mxu0 %v763
    %773 = vmatprep.subr.mxu0 0.0
    %774 = vmatpush1.xpose.msra.mxu0 %v765
    %775 = vmatprep.subr.mxu0 0.0
    %776 = vmatpush1.xpose.msra.mxu0 %v767
    %777 = vmatprep.subr.mxu0 0.0
    %778 = vmatpush1.xpose.msra.mxu0 %v769
    %779 = vmatprep.subr.mxu0 0.0
    %780 = vmatpush1.xpose.msra.mxu0 0.0
    %781 = vmatprep.subr.mxu0 0.0
    %782 = vmatpush1.xpose.msra.mxu0 0.0
    %783 = vmatprep.subr.mxu0 0.0
    %784 = vmatpush1.xpose.msra.mxu0 0.0
    %785 = vmatprep.subr.mxu0 0.0
    %786 = vmatpush1.xpose.msra.mxu0 0.0
    %787 = vmatprep.subr.mxu0 0.0
    %788 = vmatpush1.xpose.msra.mxu0 0.0
    %789 = vmatprep.subr.mxu0 0.0
    %790 = vmatpush1.xpose.msra.mxu0 0.0
    %791 = vmatprep.subr.mxu0 0.0
    %792 = vmatpush1.xpose.msra.mxu0 0.0
    %793 = vmatprep.subr.mxu0 0.0
    %794 = vmatpush1.xpose.msra.mxu0 0.0
    %795 = vmatprep.subr.mxu0 0.0
    %796 = vmatpush1.xpose.msra.mxu0 0.0
    %797 = vmatprep.subr.mxu0 0.0
    %798 = vmatpush1.xpose.msra.mxu0 0.0
    %799 = vmatprep.subr.mxu0 0.0
    %800 = vmatpush1.xpose.msra.mxu0 0.0
    %801 = vmatprep.subr.mxu0 0.0
    %802 = vmatpush1.xpose.msra.mxu0 0.0
    %803 = vmatprep.subr.mxu0 0.0
    %804 = vmatpush1.xpose.msra.mxu0 0.0
    %805 = vmatprep.subr.mxu0 0.0
    %806 = vmatpush1.xpose.msra.mxu0 0.0
    %807 = vmatprep.subr.mxu0 0.0
    %808 = vmatpush1.xpose.msra.mxu0 0.0
    %809 = vmatprep.subr.mxu0 0.0
    %810 = vmatpush1.xpose.msra.mxu0 0.0
    %811 = vmatprep.subr.mxu0 0.0
    %812 = vmatpush1.xpose.msra.mxu0 0.0
    %813 = vmatprep.subr.mxu0 0.0
    %814 = vmatpush1.xpose.msra.mxu0 0.0
    %815 = vmatprep.subr.mxu0 0.0
    %816 = vmatpush1.xpose.msra.mxu0 0.0
    %817 = vmatprep.subr.mxu0 0.0
    %818 = vmatpush1.xpose.msra.mxu0 0.0
    %819 = vmatprep.subr.mxu0 0.0
    %820 = vmatpush1.xpose.msra.mxu0 0.0
    %821 = vmatprep.subr.mxu0 0.0
    %822 = vmatpush1.xpose.msra.mxu0 0.0
    %823 = vmatprep.subr.mxu0 0.0
    %824 = vmatpush1.xpose.msra.mxu0 0.0
    %825 = vmatprep.subr.mxu0 0.0
    %826 = vmatpush1.xpose.msra.mxu0 0.0
    %827 = vmatprep.subr.mxu0 0.0
    %828 = vmatpush1.xpose.msra.mxu0 0.0
    %829 = vmatprep.subr.mxu0 0.0
    %830 = vmatpush1.xpose.msra.mxu0 0.0
    %831 = vmatprep.subr.mxu0 0.0
    %832 = vmatpush1.xpose.msra.mxu0 0.0
    %833 = vmatprep.subr.mxu0 0.0
    %834 = vmatpush1.xpose.msra.mxu0 0.0
    %835 = vmatprep.mubr.f32.mxu0 0.0
    %836 = vmatmul.mubr.f32.gmra.mrb[0].mxu0 %v755
    %v837 = vpop.f32.mrb[0].mxu0
    %v838 = vadd.f32 0.0, %v837
    %v839 = vpop.f32.mrb[0].mxu0
    %840 = vmatprep.mubr.f32.mxu0 0.0
    %841 = vmatmul.mubr.f32.gmra.mrb[0].mxu0 %v757
    %v842 = vpop.f32.mrb[0].mxu0
    %v843 = vadd.f32 0.0, %v842
    %v844 = vpop.f32.mrb[0].mxu0
    %845 = vmatprep.mubr.f32.mxu0 0.0
    %846 = vmatmul.mubr.f32.gmra.mrb[0].mxu0 %v759
    %v847 = vpop.f32.mrb[0].mxu0
    %v848 = vadd.f32 0.0, %v847
    %v849 = vpop.f32.mrb[0].mxu0
    %850 = vmatprep.mubr.f32.mxu0 0.0
    %851 = vmatmul.mubr.f32.gmra.mrb[0].mxu0 %v761
    %v852 = vpop.f32.mrb[0].mxu0
    %v853 = vadd.f32 0.0, %v852
    %v854 = vpop.f32.mrb[0].mxu0
    %855 = vdwg.mxu0
    %v856 = vsel %vm74, %v838, -inf
    %857 = vmax.xlane.f32.xlu0 %v856
    %v858 = vpop.xlane.xlu0 %857
    %v859 = vsel %vm74, %v843, -inf
    %860 = vmax.xlane.f32.xlu0 %v859
    %v861 = vpop.xlane.xlu0 %860
    %v862 = vsel %vm74, %v848, -inf
    %863 = vmax.xlane.f32.xlu0 %v862
    %v864 = vpop.xlane.xlu0 %863
    %v865 = vsel %vm74, %v853, -inf
    %866 = vmax.xlane.f32.xlu0 %v865
    %v867 = vpop.xlane.xlu0 %866
    %v868 = vsub.f32 %v838, %v858
    %v869 = vsub.f32 %v843, %v861
    %v870 = vsub.f32 %v848, %v864
    %v871 = vsub.f32 %v853, %v867
    %v872 = vmul.f32 %v868, 1.442695
    %v873 = vpow.pop %v872
    %v874 = vmul.f32 %v869, 1.442695
    %v875 = vpow.pop %v874
    %v876 = vmul.f32 %v870, 1.442695
    %v877 = vpow.pop %v876
    %v878 = vmul.f32 %v871, 1.442695
    %v879 = vpow.pop %v878
    %v880 = vsel %vm74, %v873, 0.0
    %881 = vadd.xlane.f32.xlu0 %v880
    %v882 = vpop.xlane.xlu0 %881
    %v883 = vsel %vm74, %v875, 0.0
    %884 = vadd.xlane.f32.xlu0 %v883
    %v885 = vpop.xlane.xlu0 %884
    %v886 = vsel %vm74, %v877, 0.0
    %887 = vadd.xlane.f32.xlu0 %v886
    %v888 = vpop.xlane.xlu0 %887
    %v889 = vsel %vm74, %v879, 0.0
    %890 = vadd.xlane.f32.xlu0 %v889
    %v891 = vpop.xlane.xlu0 %890
    %892 = vrot.lane.b32.xlu0 %v434, 48
    %v893 = vpop.permute.xlu0 %892
    %894 = vrot.lane.b32.xlu0 %v439, 48
    %v895 = vpop.permute.xlu0 %894
    %896 = vrot.lane.b32.xlu0 %v444, 48
    %v897 = vpop.permute.xlu0 %896
    %898 = vrot.lane.b32.xlu0 %v449, 48
    %v899 = vpop.permute.xlu0 %898
    %v905 = vsel %vm74, %v873, 0
    %v908 = vsel %vm74, %v875, 0
    %v911 = vsel %vm74, %v877, 0
    %v914 = vsel %vm74, %v879, 0
    %916 = vmatprep.subr.mxu0 0.0
    %917 = vmatpush1.msra.mxu0 %v893
    %918 = vmatprep.subr.mxu0 0.0
    %919 = vmatpush1.msra.mxu0 %v895
    %920 = vmatprep.subr.mxu0 0.0
    %921 = vmatpush1.msra.mxu0 %v897
    %922 = vmatprep.subr.mxu0 0.0
    %923 = vmatpush1.msra.mxu0 %v899
    %924 = vmatprep.subr.mxu0 0.0
    %925 = vmatpush1.msra.mxu0 0.0
    %926 = vmatprep.subr.mxu0 0.0
    %927 = vmatpush1.msra.mxu0 0.0
    %928 = vmatprep.subr.mxu0 0.0
    %929 = vmatpush1.msra.mxu0 0.0
    %930 = vmatprep.subr.mxu0 0.0
    %931 = vmatpush1.msra.mxu0 0.0
    %932 = vmatprep.subr.mxu0 0.0
    %933 = vmatpush1.msra.mxu0 0.0
    %934 = vmatprep.subr.mxu0 0.0
    %935 = vmatpush1.msra.mxu0 0.0
    %936 = vmatprep.subr.mxu0 0.0
    %937 = vmatpush1.msra.mxu0 0.0
    %938 = vmatprep.subr.mxu0 0.0
    %939 = vmatpush1.msra.mxu0 0.0
    %940 = vmatprep.subr.mxu0 0.0
    %941 = vmatpush1.msra.mxu0 0.0
    %942 = vmatprep.subr.mxu0 0.0
    %943 = vmatpush1.msra.mxu0 0.0
    %944 = vmatprep.subr.mxu0 0.0
    %945 = vmatpush1.msra.mxu0 0.0
    %946 = vmatprep.subr.mxu0 0.0
    %947 = vmatpush1.msra.mxu0 0.0
    %948 = vmatprep.subr.mxu0 0.0
    %949 = vmatpush1.msra.mxu0 0.0
    %950 = vmatprep.subr.mxu0 0.0
    %951 = vmatpush1.msra.mxu0 0.0
    %952 = vmatprep.subr.mxu0 0.0
    %953 = vmatpush1.msra.mxu0 0.0
    %954 = vmatprep.subr.mxu0 0.0
    %955 = vmatpush1.msra.mxu0 0.0
    %956 = vmatprep.subr.mxu0 0.0
    %957 = vmatpush1.msra.mxu0 0.0
    %958 = vmatprep.subr.mxu0 0.0
    %959 = vmatpush1.msra.mxu0 0.0
    %960 = vmatprep.subr.mxu0 0.0
    %961 = vmatpush1.msra.mxu0 0.0
    %962 = vmatprep.subr.mxu0 0.0
    %963 = vmatpush1.msra.mxu0 0.0
    %964 = vmatprep.subr.mxu0 0.0
    %965 = vmatpush1.msra.mxu0 0.0
    %966 = vmatprep.subr.mxu0 0.0
    %967 = vmatpush1.msra.mxu0 0.0
    %968 = vmatprep.subr.mxu0 0.0
    %969 = vmatpush1.msra.mxu0 0.0
    %970 = vmatprep.subr.mxu0 0.0
    %971 = vmatpush1.msra.mxu0 0.0
    %972 = vmatprep.subr.mxu0 0.0
    %973 = vmatpush1.msra.mxu0 0.0
    %974 = vmatprep.subr.mxu0 0.0
    %975 = vmatpush1.msra.mxu0 0.0
    %976 = vmatprep.subr.mxu0 0.0
    %977 = vmatpush1.msra.mxu0 0.0
    %978 = vmatprep.subr.mxu0 0.0
    %979 = vmatpush1.msra.mxu0 0.0
    %980 = vmatprep.mubr.f32.mxu0 0.0
    %981 = vmatmul.mubr.f32.gmra.mrb[0].mxu0 %v905
    %v982 = vpop.f32.mrb[0].mxu0
    %v983 = vadd.f32 0.0, %v982
    %v984 = vpop.f32.mrb[0].mxu0
    %985 = vmatprep.mubr.f32.mxu0 0.0
    %986 = vmatmul.mubr.f32.gmra.mrb[0].mxu0 %v908
    %v987 = vpop.f32.mrb[0].mxu0
    %v988 = vadd.f32 0.0, %v987
    %v989 = vpop.f32.mrb[0].mxu0
    %990 = vmatprep.mubr.f32.mxu0 0.0
    %991 = vmatmul.mubr.f32.gmra.mrb[0].mxu0 %v911
    %v992 = vpop.f32.mrb[0].mxu0
    %v993 = vadd.f32 0.0, %v992
    %v994 = vpop.f32.mrb[0].mxu0
    %995 = vmatprep.mubr.f32.mxu0 0.0
    %996 = vmatmul.mubr.f32.gmra.mrb[0].mxu0 %v914
    %v997 = vpop.f32.mrb[0].mxu0
    %v998 = vadd.f32 0.0, %v997
    %v999 = vpop.f32.mrb[0].mxu0
    %1000 = vdwg.mxu0
    %v1001 = vrcp.pop %v882
    %v1002 = vrcp.pop %v885
    %v1003 = vrcp.pop %v888
    %v1004 = vrcp.pop %v891
    %v1005 = vmul.f32 %v983, %v1001
    %v1006 = vmul.f32 %v988, %v1002
    %v1007 = vmul.f32 %v993, %v1003
    %v1008 = vmul.f32 %v998, %v1004
    %1013 = vrot.lane.b32.xlu0 %v1005, 16
    %v1014 = vpop.permute.xlu0 %1013
    %1015 = vrot.lane.b32.xlu0 %v1006, 16
    %v1016 = vpop.permute.xlu0 %1015
    %1017 = vrot.lane.b32.xlu0 %v1007, 16
    %v1018 = vpop.permute.xlu0 %1017
    %1019 = vrot.lane.b32.xlu0 %v1008, 16
    %v1020 = vpop.permute.xlu0 %1019
    %v1025 = vsel %vm484, %v735, %v1014
    %v1026 = vsel %vm484, %v736, %v1016
    %v1027 = vsel %vm484, %v737, %v1018
    %v1028 = vsel %vm484, %v738, %v1020
    %1033 = vrot.lane.b32.xlu0 %v454, 96
    %v1034 = vpop.permute.xlu0 %1033
    %1035 = vrot.lane.b32.xlu0 %v459, 96
    %v1036 = vpop.permute.xlu0 %1035
    %1037 = vrot.lane.b32.xlu0 %v464, 96
    %v1038 = vpop.permute.xlu0 %1037
    %1039 = vrot.lane.b32.xlu0 %v469, 96
    %v1040 = vpop.permute.xlu0 %1039
    %v1041 = vsel %vm484, %v454, 0
    %v1043 = vsel %vm484, %v459, 0
    %v1045 = vsel %vm484, %v464, 0
    %v1047 = vsel %vm484, %v469, 0
    %v1049 = vsel %vm484, %v1034, 0
    %v1051 = vsel %vm484, %v1036, 0
    %v1053 = vsel %vm484, %v1038, 0
    %v1055 = vsel %vm484, %v1040, 0
    %1057 = vmatprep.subr.mxu0 0.0
    %1058 = vmatpush1.xpose.msra.mxu0 %v1049
    %1059 = vmatprep.subr.mxu0 0.0
    %1060 = vmatpush1.xpose.msra.mxu0 %v1051
    %1061 = vmatprep.subr.mxu0 0.0
    %1062 = vmatpush1.xpose.msra.mxu0 %v1053
    %1063 = vmatprep.subr.mxu0 0.0
    %1064 = vmatpush1.xpose.msra.mxu0 %v1055
    %1065 = vmatprep.subr.mxu0 0.0
    %1066 = vmatpush1.xpose.msra.mxu0 0.0
    %1067 = vmatprep.subr.mxu0 0.0
    %1068 = vmatpush1.xpose.msra.mxu0 0.0
    %1069 = vmatprep.subr.mxu0 0.0
    %1070 = vmatpush1.xpose.msra.mxu0 0.0
    %1071 = vmatprep.subr.mxu0 0.0
    %1072 = vmatpush1.xpose.msra.mxu0 0.0
    %1073 = vmatprep.subr.mxu0 0.0
    %1074 = vmatpush1.xpose.msra.mxu0 0.0
    %1075 = vmatprep.subr.mxu0 0.0
    %1076 = vmatpush1.xpose.msra.mxu0 0.0
    %1077 = vmatprep.subr.mxu0 0.0
    %1078 = vmatpush1.xpose.msra.mxu0 0.0
    %1079 = vmatprep.subr.mxu0 0.0
    %1080 = vmatpush1.xpose.msra.mxu0 0.0
    %1081 = vmatprep.subr.mxu0 0.0
    %1082 = vmatpush1.xpose.msra.mxu0 0.0
    %1083 = vmatprep.subr.mxu0 0.0
    %1084 = vmatpush1.xpose.msra.mxu0 0.0
    %1085 = vmatprep.subr.mxu0 0.0
    %1086 = vmatpush1.xpose.msra.mxu0 0.0
    %1087 = vmatprep.subr.mxu0 0.0
    %1088 = vmatpush1.xpose.msra.mxu0 0.0
    %1089 = vmatprep.subr.mxu0 0.0
    %1090 = vmatpush1.xpose.msra.mxu0 0.0
    %1091 = vmatprep.subr.mxu0 0.0
    %1092 = vmatpush1.xpose.msra.mxu0 0.0
    %1093 = vmatprep.subr.mxu0 0.0
    %1094 = vmatpush1.xpose.msra.mxu0 0.0
    %1095 = vmatprep.subr.mxu0 0.0
    %1096 = vmatpush1.xpose.msra.mxu0 0.0
    %1097 = vmatprep.subr.mxu0 0.0
    %1098 = vmatpush1.xpose.msra.mxu0 0.0
    %1099 = vmatprep.subr.mxu0 0.0
    %1100 = vmatpush1.xpose.msra.mxu0 0.0
    %1101 = vmatprep.subr.mxu0 0.0
    %1102 = vmatpush1.xpose.msra.mxu0 0.0
    %1103 = vmatprep.subr.mxu0 0.0
    %1104 = vmatpush1.xpose.msra.mxu0 0.0
    %1105 = vmatprep.subr.mxu0 0.0
    %1106 = vmatpush1.xpose.msra.mxu0 0.0
    %1107 = vmatprep.subr.mxu0 0.0
    %1108 = vmatpush1.xpose.msra.mxu0 0.0
    %1109 = vmatprep.subr.mxu0 0.0
    %1110 = vmatpush1.xpose.msra.mxu0 0.0
    %1111 = vmatprep.subr.mxu0 0.0
    %1112 = vmatpush1.xpose.msra.mxu0 0.0
    %1113 = vmatprep.subr.mxu0 0.0
    %1114 = vmatpush1.xpose.msra.mxu0 0.0
    %1115 = vmatprep.subr.mxu0 0.0
    %1116 = vmatpush1.xpose.msra.mxu0 0.0
    %1117 = vmatprep.subr.mxu0 0.0
    %1118 = vmatpush1.xpose.msra.mxu0 0.0
    %1119 = vmatprep.subr.mxu0 0.0
    %1120 = vmatpush1.xpose.msra.mxu0 0.0
    %1121 = vmatprep.mubr.f32.mxu0 0.0
    %1122 = vmatmul.mubr.f32.gmra.mrb[0].mxu0 %v1041
    %v1123 = vpop.f32.mrb[0].mxu0
    %v1124 = vadd.f32 0.0, %v1123
    %v1125 = vpop.f32.mrb[0].mxu0
    %1126 = vmatprep.mubr.f32.mxu0 0.0
    %1127 = vmatmul.mubr.f32.gmra.mrb[0].mxu0 %v1043
    %v1128 = vpop.f32.mrb[0].mxu0
    %v1129 = vadd.f32 0.0, %v1128
    %v1130 = vpop.f32.mrb[0].mxu0
    %1131 = vmatprep.mubr.f32.mxu0 0.0
    %1132 = vmatmul.mubr.f32.gmra.mrb[0].mxu0 %v1045
    %v1133 = vpop.f32.mrb[0].mxu0
    %v1134 = vadd.f32 0.0, %v1133
    %v1135 = vpop.f32.mrb[0].mxu0
    %1136 = vmatprep.mubr.f32.mxu0 0.0
    %1137 = vmatmul.mubr.f32.gmra.mrb[0].mxu0 %v1047
    %v1138 = vpop.f32.mrb[0].mxu0
    %v1139 = vadd.f32 0.0, %v1138
    %v1140 = vpop.f32.mrb[0].mxu0
    %1141 = vdwg.mxu0
    %v1142 = vsel %vm74, %v1124, -inf
    %1143 = vmax.xlane.f32.xlu0 %v1142
    %v1144 = vpop.xlane.xlu0 %1143
    %v1145 = vsel %vm74, %v1129, -inf
    %1146 = vmax.xlane.f32.xlu0 %v1145
    %v1147 = vpop.xlane.xlu0 %1146
    %v1148 = vsel %vm74, %v1134, -inf
    %1149 = vmax.xlane.f32.xlu0 %v1148
    %v1150 = vpop.xlane.xlu0 %1149
    %v1151 = vsel %vm74, %v1139, -inf
    %1152 = vmax.xlane.f32.xlu0 %v1151
    %v1153 = vpop.xlane.xlu0 %1152
    %v1154 = vsub.f32 %v1124, %v1144
    %v1155 = vsub.f32 %v1129, %v1147
    %v1156 = vsub.f32 %v1134, %v1150
    %v1157 = vsub.f32 %v1139, %v1153
    %v1158 = vmul.f32 %v1154, 1.442695
    %v1159 = vpow.pop %v1158
    %v1160 = vmul.f32 %v1155, 1.442695
    %v1161 = vpow.pop %v1160
    %v1162 = vmul.f32 %v1156, 1.442695
    %v1163 = vpow.pop %v1162
    %v1164 = vmul.f32 %v1157, 1.442695
    %v1165 = vpow.pop %v1164
    %v1166 = vsel %vm74, %v1159, 0.0
    %1167 = vadd.xlane.f32.xlu0 %v1166
    %v1168 = vpop.xlane.xlu0 %1167
    %v1169 = vsel %vm74, %v1161, 0.0
    %1170 = vadd.xlane.f32.xlu0 %v1169
    %v1171 = vpop.xlane.xlu0 %1170
    %v1172 = vsel %vm74, %v1163, 0.0
    %1173 = vadd.xlane.f32.xlu0 %v1172
    %v1174 = vpop.xlane.xlu0 %1173
    %v1175 = vsel %vm74, %v1165, 0.0
    %1176 = vadd.xlane.f32.xlu0 %v1175
    %v1177 = vpop.xlane.xlu0 %1176
    %1178 = vrot.lane.b32.xlu0 %v454, 64
    %v1179 = vpop.permute.xlu0 %1178
    %1180 = vrot.lane.b32.xlu0 %v459, 64
    %v1181 = vpop.permute.xlu0 %1180
    %1182 = vrot.lane.b32.xlu0 %v464, 64
    %v1183 = vpop.permute.xlu0 %1182
    %1184 = vrot.lane.b32.xlu0 %v469, 64
    %v1185 = vpop.permute.xlu0 %1184
    %v1191 = vsel %vm74, %v1159, 0
    %v1194 = vsel %vm74, %v1161, 0
    %v1197 = vsel %vm74, %v1163, 0
    %v1200 = vsel %vm74, %v1165, 0
    %1202 = vmatprep.subr.mxu0 0.0
    %1203 = vmatpush1.msra.mxu0 %v1179
    %1204 = vmatprep.subr.mxu0 0.0
    %1205 = vmatpush1.msra.mxu0 %v1181
    %1206 = vmatprep.subr.mxu0 0.0
    %1207 = vmatpush1.msra.mxu0 %v1183
    %1208 = vmatprep.subr.mxu0 0.0
    %1209 = vmatpush1.msra.mxu0 %v1185
    %1210 = vmatprep.subr.mxu0 0.0
    %1211 = vmatpush1.msra.mxu0 0.0
    %1212 = vmatprep.subr.mxu0 0.0
    %1213 = vmatpush1.msra.mxu0 0.0
    %1214 = vmatprep.subr.mxu0 0.0
    %1215 = vmatpush1.msra.mxu0 0.0
    %1216 = vmatprep.subr.mxu0 0.0
    %1217 = vmatpush1.msra.mxu0 0.0
    %1218 = vmatprep.subr.mxu0 0.0
    %1219 = vmatpush1.msra.mxu0 0.0
    %1220 = vmatprep.subr.mxu0 0.0
    %1221 = vmatpush1.msra.mxu0 0.0
    %1222 = vmatprep.subr.mxu0 0.0
    %1223 = vmatpush1.msra.mxu0 0.0
    %1224 = vmatprep.subr.mxu0 0.0
    %1225 = vmatpush1.msra.mxu0 0.0
    %1226 = vmatprep.subr.mxu0 0.0
    %1227 = vmatpush1.msra.mxu0 0.0
    %1228 = vmatprep.subr.mxu0 0.0
    %1229 = vmatpush1.msra.mxu0 0.0
    %1230 = vmatprep.subr.mxu0 0.0
    %1231 = vmatpush1.msra.mxu0 0.0
    %1232 = vmatprep.subr.mxu0 0.0
    %1233 = vmatpush1.msra.mxu0 0.0
    %1234 = vmatprep.subr.mxu0 0.0
    %1235 = vmatpush1.msra.mxu0 0.0
    %1236 = vmatprep.subr.mxu0 0.0
    %1237 = vmatpush1.msra.mxu0 0.0
    %1238 = vmatprep.subr.mxu0 0.0
    %1239 = vmatpush1.msra.mxu0 0.0
    %1240 = vmatprep.subr.mxu0 0.0
    %1241 = vmatpush1.msra.mxu0 0.0
    %1242 = vmatprep.subr.mxu0 0.0
    %1243 = vmatpush1.msra.mxu0 0.0
    %1244 = vmatprep.subr.mxu0 0.0
    %1245 = vmatpush1.msra.mxu0 0.0
    %1246 = vmatprep.subr.mxu0 0.0
    %1247 = vmatpush1.msra.mxu0 0.0
    %1248 = vmatprep.subr.mxu0 0.0
    %1249 = vmatpush1.msra.mxu0 0.0
    %1250 = vmatprep.subr.mxu0 0.0
    %1251 = vmatpush1.msra.mxu0 0.0
    %1252 = vmatprep.subr.mxu0 0.0
    %1253 = vmatpush1.msra.mxu0 0.0
    %1254 = vmatprep.subr.mxu0 0.0
    %1255 = vmatpush1.msra.mxu0 0.0
    %1256 = vmatprep.subr.mxu0 0.0
    %1257 = vmatpush1.msra.mxu0 0.0
    %1258 = vmatprep.subr.mxu0 0.0
    %1259 = vmatpush1.msra.mxu0 0.0
    %1260 = vmatprep.subr.mxu0 0.0
    %1261 = vmatpush1.msra.mxu0 0.0
    %1262 = vmatprep.subr.mxu0 0.0
    %1263 = vmatpush1.msra.mxu0 0.0
    %1264 = vmatprep.subr.mxu0 0.0
    %1265 = vmatpush1.msra.mxu0 0.0
    %1266 = vmatprep.mubr.f32.mxu0 0.0
    %1267 = vmatmul.mubr.f32.gmra.mrb[0].mxu0 %v1191
    %v1268 = vpop.f32.mrb[0].mxu0
    %v1269 = vadd.f32 0.0, %v1268
    %v1270 = vpop.f32.mrb[0].mxu0
    %1271 = vmatprep.mubr.f32.mxu0 0.0
    %1272 = vmatmul.mubr.f32.gmra.mrb[0].mxu0 %v1194
    %v1273 = vpop.f32.mrb[0].mxu0
    %v1274 = vadd.f32 0.0, %v1273
    %v1275 = vpop.f32.mrb[0].mxu0
    %1276 = vmatprep.mubr.f32.mxu0 0.0
    %1277 = vmatmul.mubr.f32.gmra.mrb[0].mxu0 %v1197
    %v1278 = vpop.f32.mrb[0].mxu0
    %v1279 = vadd.f32 0.0, %v1278
    %v1280 = vpop.f32.mrb[0].mxu0
    %1281 = vmatprep.mubr.f32.mxu0 0.0
    %1282 = vmatmul.mubr.f32.gmra.mrb[0].mxu0 %v1200
    %v1283 = vpop.f32.mrb[0].mxu0
    %v1284 = vadd.f32 0.0, %v1283
    %v1285 = vpop.f32.mrb[0].mxu0
    %1286 = vdwg.mxu0
    %v1287 = vrcp.pop %v1168
    %v1288 = vrcp.pop %v1171
    %v1289 = vrcp.pop %v1174
    %v1290 = vrcp.pop %v1177
    %v1291 = vmul.f32 %v1269, %v1287
    %v1292 = vmul.f32 %v1274, %v1288
    %v1293 = vmul.f32 %v1279, %v1289
    %v1294 = vmul.f32 %v1284, %v1290
    %1295 = vrot.lane.b32.xlu0 %v454, 112
    %v1296 = vpop.permute.xlu0 %1295
    %1297 = vrot.lane.b32.xlu0 %v459, 112
    %v1298 = vpop.permute.xlu0 %1297
    %1299 = vrot.lane.b32.xlu0 %v464, 112
    %v1300 = vpop.permute.xlu0 %1299
    %1301 = vrot.lane.b32.xlu0 %v469, 112
    %v1302 = vpop.permute.xlu0 %1301
    %1303 = vrot.lane.b32.xlu0 %v454, 80
    %v1304 = vpop.permute.xlu0 %1303
    %1305 = vrot.lane.b32.xlu0 %v459, 80
    %v1306 = vpop.permute.xlu0 %1305
    %1307 = vrot.lane.b32.xlu0 %v464, 80
    %v1308 = vpop.permute.xlu0 %1307
    %1309 = vrot.lane.b32.xlu0 %v469, 80
    %v1310 = vpop.permute.xlu0 %1309
    %v1311 = vsel %vm484, %v1296, 0
    %v1313 = vsel %vm484, %v1298, 0
    %v1315 = vsel %vm484, %v1300, 0
    %v1317 = vsel %vm484, %v1302, 0
    %v1319 = vsel %vm484, %v1304, 0
    %v1321 = vsel %vm484, %v1306, 0
    %v1323 = vsel %vm484, %v1308, 0
    %v1325 = vsel %vm484, %v1310, 0
    %1327 = vmatprep.subr.mxu0 0.0
    %1328 = vmatpush1.xpose.msra.mxu0 %v1319
    %1329 = vmatprep.subr.mxu0 0.0
    %1330 = vmatpush1.xpose.msra.mxu0 %v1321
    %1331 = vmatprep.subr.mxu0 0.0
    %1332 = vmatpush1.xpose.msra.mxu0 %v1323
    %1333 = vmatprep.subr.mxu0 0.0
    %1334 = vmatpush1.xpose.msra.mxu0 %v1325
    %1335 = vmatprep.subr.mxu0 0.0
    %1336 = vmatpush1.xpose.msra.mxu0 0.0
    %1337 = vmatprep.subr.mxu0 0.0
    %1338 = vmatpush1.xpose.msra.mxu0 0.0
    %1339 = vmatprep.subr.mxu0 0.0
    %1340 = vmatpush1.xpose.msra.mxu0 0.0
    %1341 = vmatprep.subr.mxu0 0.0
    %1342 = vmatpush1.xpose.msra.mxu0 0.0
    %1343 = vmatprep.subr.mxu0 0.0
    %1344 = vmatpush1.xpose.msra.mxu0 0.0
    %1345 = vmatprep.subr.mxu0 0.0
    %1346 = vmatpush1.xpose.msra.mxu0 0.0
    %1347 = vmatprep.subr.mxu0 0.0
    %1348 = vmatpush1.xpose.msra.mxu0 0.0
    %1349 = vmatprep.subr.mxu0 0.0
    %1350 = vmatpush1.xpose.msra.mxu0 0.0
    %1351 = vmatprep.subr.mxu0 0.0
    %1352 = vmatpush1.xpose.msra.mxu0 0.0
    %1353 = vmatprep.subr.mxu0 0.0
    %1354 = vmatpush1.xpose.msra.mxu0 0.0
    %1355 = vmatprep.subr.mxu0 0.0
    %1356 = vmatpush1.xpose.msra.mxu0 0.0
    %1357 = vmatprep.subr.mxu0 0.0
    %1358 = vmatpush1.xpose.msra.mxu0 0.0
    %1359 = vmatprep.subr.mxu0 0.0
    %1360 = vmatpush1.xpose.msra.mxu0 0.0
    %1361 = vmatprep.subr.mxu0 0.0
    %1362 = vmatpush1.xpose.msra.mxu0 0.0
    %1363 = vmatprep.subr.mxu0 0.0
    %1364 = vmatpush1.xpose.msra.mxu0 0.0
    %1365 = vmatprep.subr.mxu0 0.0
    %1366 = vmatpush1.xpose.msra.mxu0 0.0
    %1367 = vmatprep.subr.mxu0 0.0
    %1368 = vmatpush1.xpose.msra.mxu0 0.0
    %1369 = vmatprep.subr.mxu0 0.0
    %1370 = vmatpush1.xpose.msra.mxu0 0.0
    %1371 = vmatprep.subr.mxu0 0.0
    %1372 = vmatpush1.xpose.msra.mxu0 0.0
    %1373 = vmatprep.subr.mxu0 0.0
    %1374 = vmatpush1.xpose.msra.mxu0 0.0
    %1375 = vmatprep.subr.mxu0 0.0
    %1376 = vmatpush1.xpose.msra.mxu0 0.0
    %1377 = vmatprep.subr.mxu0 0.0
    %1378 = vmatpush1.xpose.msra.mxu0 0.0
    %1379 = vmatprep.subr.mxu0 0.0
    %1380 = vmatpush1.xpose.msra.mxu0 0.0
    %1381 = vmatprep.subr.mxu0 0.0
    %1382 = vmatpush1.xpose.msra.mxu0 0.0
    %1383 = vmatprep.subr.mxu0 0.0
    %1384 = vmatpush1.xpose.msra.mxu0 0.0
    %1385 = vmatprep.subr.mxu0 0.0
    %1386 = vmatpush1.xpose.msra.mxu0 0.0
    %1387 = vmatprep.subr.mxu0 0.0
    %1388 = vmatpush1.xpose.msra.mxu0 0.0
    %1389 = vmatprep.subr.mxu0 0.0
    %1390 = vmatpush1.xpose.msra.mxu0 0.0
    %1391 = vmatprep.mubr.f32.mxu0 0.0
    %1392 = vmatmul.mubr.f32.gmra.mrb[0].mxu0 %v1311
    %v1393 = vpop.f32.mrb[0].mxu0
    %v1394 = vadd.f32 0.0, %v1393
    %v1395 = vpop.f32.mrb[0].mxu0
    %1396 = vmatprep.mubr.f32.mxu0 0.0
    %1397 = vmatmul.mubr.f32.gmra.mrb[0].mxu0 %v1313
    %v1398 = vpop.f32.mrb[0].mxu0
    %v1399 = vadd.f32 0.0, %v1398
    %v1400 = vpop.f32.mrb[0].mxu0
    %1401 = vmatprep.mubr.f32.mxu0 0.0
    %1402 = vmatmul.mubr.f32.gmra.mrb[0].mxu0 %v1315
    %v1403 = vpop.f32.mrb[0].mxu0
    %v1404 = vadd.f32 0.0, %v1403
    %v1405 = vpop.f32.mrb[0].mxu0
    %1406 = vmatprep.mubr.f32.mxu0 0.0
    %1407 = vmatmul.mubr.f32.gmra.mrb[0].mxu0 %v1317
    %v1408 = vpop.f32.mrb[0].mxu0
    %v1409 = vadd.f32 0.0, %v1408
    %v1410 = vpop.f32.mrb[0].mxu0
    %1411 = vdwg.mxu0
    %v1412 = vsel %vm74, %v1394, -inf
    %1413 = vmax.xlane.f32.xlu0 %v1412
    %v1414 = vpop.xlane.xlu0 %1413
    %v1415 = vsel %vm74, %v1399, -inf
    %1416 = vmax.xlane.f32.xlu0 %v1415
    %v1417 = vpop.xlane.xlu0 %1416
    %v1418 = vsel %vm74, %v1404, -inf
    %1419 = vmax.xlane.f32.xlu0 %v1418
    %v1420 = vpop.xlane.xlu0 %1419
    %v1421 = vsel %vm74, %v1409, -inf
    %1422 = vmax.xlane.f32.xlu0 %v1421
    %v1423 = vpop.xlane.xlu0 %1422
    %v1424 = vsub.f32 %v1394, %v1414
    %v1425 = vsub.f32 %v1399, %v1417
    %v1426 = vsub.f32 %v1404, %v1420
    %v1427 = vsub.f32 %v1409, %v1423
    %v1428 = vmul.f32 %v1424, 1.442695
    %v1429 = vpow.pop %v1428
    %v1430 = vmul.f32 %v1425, 1.442695
    %v1431 = vpow.pop %v1430
    %v1432 = vmul.f32 %v1426, 1.442695
    %v1433 = vpow.pop %v1432
    %v1434 = vmul.f32 %v1427, 1.442695
    %v1435 = vpow.pop %v1434
    %v1436 = vsel %vm74, %v1429, 0.0
    %1437 = vadd.xlane.f32.xlu0 %v1436
    %v1438 = vpop.xlane.xlu0 %1437
    %v1439 = vsel %vm74, %v1431, 0.0
    %1440 = vadd.xlane.f32.xlu0 %v1439
    %v1441 = vpop.xlane.xlu0 %1440
    %v1442 = vsel %vm74, %v1433, 0.0
    %1443 = vadd.xlane.f32.xlu0 %v1442
    %v1444 = vpop.xlane.xlu0 %1443
    %v1445 = vsel %vm74, %v1435, 0.0
    %1446 = vadd.xlane.f32.xlu0 %v1445
    %v1447 = vpop.xlane.xlu0 %1446
    %1448 = vrot.lane.b32.xlu0 %v454, 48
    %v1449 = vpop.permute.xlu0 %1448
    %1450 = vrot.lane.b32.xlu0 %v459, 48
    %v1451 = vpop.permute.xlu0 %1450
    %1452 = vrot.lane.b32.xlu0 %v464, 48
    %v1453 = vpop.permute.xlu0 %1452
    %1454 = vrot.lane.b32.xlu0 %v469, 48
    %v1455 = vpop.permute.xlu0 %1454
    %v1461 = vsel %vm74, %v1429, 0
    %v1464 = vsel %vm74, %v1431, 0
    %v1467 = vsel %vm74, %v1433, 0
    %v1470 = vsel %vm74, %v1435, 0
    %1472 = vmatprep.subr.mxu0 0.0
    %1473 = vmatpush1.msra.mxu0 %v1449
    %1474 = vmatprep.subr.mxu0 0.0
    %1475 = vmatpush1.msra.mxu0 %v1451
    %1476 = vmatprep.subr.mxu0 0.0
    %1477 = vmatpush1.msra.mxu0 %v1453
    %1478 = vmatprep.subr.mxu0 0.0
    %1479 = vmatpush1.msra.mxu0 %v1455
    %1480 = vmatprep.subr.mxu0 0.0
    %1481 = vmatpush1.msra.mxu0 0.0
    %1482 = vmatprep.subr.mxu0 0.0
    %1483 = vmatpush1.msra.mxu0 0.0
    %1484 = vmatprep.subr.mxu0 0.0
    %1485 = vmatpush1.msra.mxu0 0.0
    %1486 = vmatprep.subr.mxu0 0.0
    %1487 = vmatpush1.msra.mxu0 0.0
    %1488 = vmatprep.subr.mxu0 0.0
    %1489 = vmatpush1.msra.mxu0 0.0
    %1490 = vmatprep.subr.mxu0 0.0
    %1491 = vmatpush1.msra.mxu0 0.0
    %1492 = vmatprep.subr.mxu0 0.0
    %1493 = vmatpush1.msra.mxu0 0.0
    %1494 = vmatprep.subr.mxu0 0.0
    %1495 = vmatpush1.msra.mxu0 0.0
    %1496 = vmatprep.subr.mxu0 0.0
    %1497 = vmatpush1.msra.mxu0 0.0
    %1498 = vmatprep.subr.mxu0 0.0
    %1499 = vmatpush1.msra.mxu0 0.0
    %1500 = vmatprep.subr.mxu0 0.0
    %1501 = vmatpush1.msra.mxu0 0.0
    %1502 = vmatprep.subr.mxu0 0.0
    %1503 = vmatpush1.msra.mxu0 0.0
    %1504 = vmatprep.subr.mxu0 0.0
    %1505 = vmatpush1.msra.mxu0 0.0
    %1506 = vmatprep.subr.mxu0 0.0
    %1507 = vmatpush1.msra.mxu0 0.0
    %1508 = vmatprep.subr.mxu0 0.0
    %1509 = vmatpush1.msra.mxu0 0.0
    %1510 = vmatprep.subr.mxu0 0.0
    %1511 = vmatpush1.msra.mxu0 0.0
    %1512 = vmatprep.subr.mxu0 0.0
    %1513 = vmatpush1.msra.mxu0 0.0
    %1514 = vmatprep.subr.mxu0 0.0
    %1515 = vmatpush1.msra.mxu0 0.0
    %1516 = vmatprep.subr.mxu0 0.0
    %1517 = vmatpush1.msra.mxu0 0.0
    %1518 = vmatprep.subr.mxu0 0.0
    %1519 = vmatpush1.msra.mxu0 0.0
    %1520 = vmatprep.subr.mxu0 0.0
    %1521 = vmatpush1.msra.mxu0 0.0
    %1522 = vmatprep.subr.mxu0 0.0
    %1523 = vmatpush1.msra.mxu0 0.0
    %1524 = vmatprep.subr.mxu0 0.0
    %1525 = vmatpush1.msra.mxu0 0.0
    %1526 = vmatprep.subr.mxu0 0.0
    %1527 = vmatpush1.msra.mxu0 0.0
    %1528 = vmatprep.subr.mxu0 0.0
    %1529 = vmatpush1.msra.mxu0 0.0
    %1530 = vmatprep.subr.mxu0 0.0
    %1531 = vmatpush1.msra.mxu0 0.0
    %1532 = vmatprep.subr.mxu0 0.0
    %1533 = vmatpush1.msra.mxu0 0.0
    %1534 = vmatprep.subr.mxu0 0.0
    %1535 = vmatpush1.msra.mxu0 0.0
    %1536 = vmatprep.mubr.f32.mxu0 0.0
    %1537 = vmatmul.mubr.f32.gmra.mrb[0].mxu0 %v1461
    %v1538 = vpop.f32.mrb[0].mxu0
    %v1539 = vadd.f32 0.0, %v1538
    %v1540 = vpop.f32.mrb[0].mxu0
    %1541 = vmatprep.mubr.f32.mxu0 0.0
    %1542 = vmatmul.mubr.f32.gmra.mrb[0].mxu0 %v1464
    %v1543 = vpop.f32.mrb[0].mxu0
    %v1544 = vadd.f32 0.0, %v1543
    %v1545 = vpop.f32.mrb[0].mxu0
    %1546 = vmatprep.mubr.f32.mxu0 0.0
    %1547 = vmatmul.mubr.f32.gmra.mrb[0].mxu0 %v1467
    %v1548 = vpop.f32.mrb[0].mxu0
    %v1549 = vadd.f32 0.0, %v1548
    %v1550 = vpop.f32.mrb[0].mxu0
    %1551 = vmatprep.mubr.f32.mxu0 0.0
    %1552 = vmatmul.mubr.f32.gmra.mrb[0].mxu0 %v1470
    %v1553 = vpop.f32.mrb[0].mxu0
    %v1554 = vadd.f32 0.0, %v1553
    %v1555 = vpop.f32.mrb[0].mxu0
    %1556 = vdwg.mxu0
    %v1557 = vrcp.pop %v1438
    %v1558 = vrcp.pop %v1441
    %v1559 = vrcp.pop %v1444
    %v1560 = vrcp.pop %v1447
    %v1561 = vmul.f32 %v1539, %v1557
    %v1562 = vmul.f32 %v1544, %v1558
    %v1563 = vmul.f32 %v1549, %v1559
    %v1564 = vmul.f32 %v1554, %v1560
    %1569 = vrot.lane.b32.xlu0 %v1561, 16
    %v1570 = vpop.permute.xlu0 %1569
    %1571 = vrot.lane.b32.xlu0 %v1562, 16
    %v1572 = vpop.permute.xlu0 %1571
    %1573 = vrot.lane.b32.xlu0 %v1563, 16
    %v1574 = vpop.permute.xlu0 %1573
    %1575 = vrot.lane.b32.xlu0 %v1564, 16
    %v1576 = vpop.permute.xlu0 %1575
    %v1581 = vsel %vm484, %v1291, %v1570
    %v1582 = vsel %vm484, %v1292, %v1572
    %v1583 = vsel %vm484, %v1293, %v1574
    %v1584 = vsel %vm484, %v1294, %v1576
    %v1585 = vld [vmem:[%s6] sm:$0xff]
    %v1586 = vld [vmem:[%s6 + $0x8] sm:$0xff]
    %v1587 = vld [vmem:[%s6 + $0x10] sm:$0xff]
    %v1588 = vld [vmem:[%s6 + $0x18] sm:$0xff]
    %v1590 = vsel %vm74, %v1025, 0
    %v1593 = vsel %vm74, %v1026, 0
    %v1596 = vsel %vm74, %v1027, 0
    %v1599 = vsel %vm74, %v1028, 0
    %v1602 = vsel %vm74, %v1581, 0
    %v1605 = vsel %vm74, %v1582, 0
    %v1608 = vsel %vm74, %v1583, 0
    %v1611 = vsel %vm74, %v1584, 0
    %1613 = vmatprep.subr.mxu0 0.0
    %1614 = vmatpush1.msra.mxu0 %v1585
    %1615 = vmatprep.subr.mxu0 0.0
    %1616 = vmatpush1.msra.mxu0 %v1586
    %1617 = vmatprep.subr.mxu0 0.0
    %1618 = vmatpush1.msra.mxu0 %v1587
    %1619 = vmatprep.subr.mxu0 0.0
    %1620 = vmatpush1.msra.mxu0 %v1588
    %1621 = vmatprep.subr.mxu0 0.0
    %1622 = vmatpush1.msra.mxu0 0.0
    %1623 = vmatprep.subr.mxu0 0.0
    %1624 = vmatpush1.msra.mxu0 0.0
    %1625 = vmatprep.subr.mxu0 0.0
    %1626 = vmatpush1.msra.mxu0 0.0
    %1627 = vmatprep.subr.mxu0 0.0
    %1628 = vmatpush1.msra.mxu0 0.0
    %1629 = vmatprep.subr.mxu0 0.0
    %1630 = vmatpush1.msra.mxu0 0.0
    %1631 = vmatprep.subr.mxu0 0.0
    %1632 = vmatpush1.msra.mxu0 0.0
    %1633 = vmatprep.subr.mxu0 0.0
    %1634 = vmatpush1.msra.mxu0 0.0
    %1635 = vmatprep.subr.mxu0 0.0
    %1636 = vmatpush1.msra.mxu0 0.0
    %1637 = vmatprep.subr.mxu0 0.0
    %1638 = vmatpush1.msra.mxu0 0.0
    %1639 = vmatprep.subr.mxu0 0.0
    %1640 = vmatpush1.msra.mxu0 0.0
    %1641 = vmatprep.subr.mxu0 0.0
    %1642 = vmatpush1.msra.mxu0 0.0
    %1643 = vmatprep.subr.mxu0 0.0
    %1644 = vmatpush1.msra.mxu0 0.0
    %1645 = vmatprep.subr.mxu0 0.0
    %1646 = vmatpush1.msra.mxu0 0.0
    %1647 = vmatprep.subr.mxu0 0.0
    %1648 = vmatpush1.msra.mxu0 0.0
    %1649 = vmatprep.subr.mxu0 0.0
    %1650 = vmatpush1.msra.mxu0 0.0
    %1651 = vmatprep.subr.mxu0 0.0
    %1652 = vmatpush1.msra.mxu0 0.0
    %1653 = vmatprep.subr.mxu0 0.0
    %1654 = vmatpush1.msra.mxu0 0.0
    %1655 = vmatprep.subr.mxu0 0.0
    %1656 = vmatpush1.msra.mxu0 0.0
    %1657 = vmatprep.subr.mxu0 0.0
    %1658 = vmatpush1.msra.mxu0 0.0
    %1659 = vmatprep.subr.mxu0 0.0
    %1660 = vmatpush1.msra.mxu0 0.0
    %1661 = vmatprep.subr.mxu0 0.0
    %1662 = vmatpush1.msra.mxu0 0.0
    %1663 = vmatprep.subr.mxu0 0.0
    %1664 = vmatpush1.msra.mxu0 0.0
    %1665 = vmatprep.subr.mxu0 0.0
    %1666 = vmatpush1.msra.mxu0 0.0
    %1667 = vmatprep.subr.mxu0 0.0
    %1668 = vmatpush1.msra.mxu0 0.0
    %1669 = vmatprep.subr.mxu0 0.0
    %1670 = vmatpush1.msra.mxu0 0.0
    %1671 = vmatprep.subr.mxu0 0.0
    %1672 = vmatpush1.msra.mxu0 0.0
    %1673 = vmatprep.subr.mxu0 0.0
    %1674 = vmatpush1.msra.mxu0 0.0
    %1675 = vmatprep.subr.mxu0 0.0
    %1676 = vmatpush1.msra.mxu0 0.0
    %1677 = vmatprep.mubr.f32.mxu0 0.0
    %1678 = vmatmul.mubr.f32.gmra.mrb[0].mxu0 %v1590
    %v1679 = vpop.f32.mrb[0].mxu0
    %v1680 = vadd.f32 0.0, %v1679
    %v1681 = vpop.f32.mrb[0].mxu0
    %1682 = vmatprep.mubr.f32.mxu0 0.0
    %1683 = vmatmul.mubr.f32.gmra.mrb[0].mxu0 %v1593
    %v1684 = vpop.f32.mrb[0].mxu0
    %v1685 = vadd.f32 0.0, %v1684
    %v1686 = vpop.f32.mrb[0].mxu0
    %1687 = vmatprep.mubr.f32.mxu0 0.0
    %1688 = vmatmul.mubr.f32.gmra.mrb[0].mxu0 %v1596
    %v1689 = vpop.f32.mrb[0].mxu0
    %v1690 = vadd.f32 0.0, %v1689
    %v1691 = vpop.f32.mrb[0].mxu0
    %1692 = vmatprep.mubr.f32.mxu0 0.0
    %1693 = vmatmul.mubr.f32.gmra.mrb[0].mxu0 %v1599
    %v1694 = vpop.f32.mrb[0].mxu0
    %v1695 = vadd.f32 0.0, %v1694
    %v1696 = vpop.f32.mrb[0].mxu0
    %1697 = vmatprep.mubr.f32.mxu0 0.0
    %1698 = vmatmul.mubr.f32.gmra.mrb[0].mxu0 %v1602
    %v1699 = vpop.f32.mrb[0].mxu0
    %v1700 = vadd.f32 0.0, %v1699
    %v1701 = vpop.f32.mrb[0].mxu0
    %1702 = vmatprep.mubr.f32.mxu0 0.0
    %1703 = vmatmul.mubr.f32.gmra.mrb[0].mxu0 %v1605
    %v1704 = vpop.f32.mrb[0].mxu0
    %v1705 = vadd.f32 0.0, %v1704
    %v1706 = vpop.f32.mrb[0].mxu0
    %1707 = vmatprep.mubr.f32.mxu0 0.0
    %1708 = vmatmul.mubr.f32.gmra.mrb[0].mxu0 %v1608
    %v1709 = vpop.f32.mrb[0].mxu0
    %v1710 = vadd.f32 0.0, %v1709
    %v1711 = vpop.f32.mrb[0].mxu0
    %1712 = vmatprep.mubr.f32.mxu0 0.0
    %1713 = vmatmul.mubr.f32.gmra.mrb[0].mxu0 %v1611
    %v1714 = vpop.f32.mrb[0].mxu0
    %v1715 = vadd.f32 0.0, %v1714
    %v1716 = vpop.f32.mrb[0].mxu0
    %1717 = vdwg.mxu0
    %v1718 = vadd.f32 %v166, %v1680
    %v1719 = vadd.f32 %v171, %v1685
    %v1720 = vadd.f32 %v176, %v1690
    %v1721 = vadd.f32 %v181, %v1695
    %v1722 = vadd.f32 %v186, %v1700
    %v1723 = vadd.f32 %v191, %v1705
    %v1724 = vadd.f32 %v196, %v1710
    %v1725 = vadd.f32 %v201, %v1715
    %v1726 = vld [vmem:[%s7] sm:$0x1]
    %v1728 = vlaneseq
    %v1729 = vshrl.u32 %v1728, 7
    %v1730 = vsub.s32 0, %v1729
    %v1731 = vrot.slane %v1726, %v1730
    %v1733 = vadd.f32 %v1718, %v1731
    %v1734 = vadd.f32 %v1719, %v1731
    %v1735 = vadd.f32 %v1720, %v1731
    %v1736 = vadd.f32 %v1721, %v1731
    %v1737 = vadd.f32 %v1722, %v1731
    %v1738 = vadd.f32 %v1723, %v1731
    %v1739 = vadd.f32 %v1724, %v1731
    %v1740 = vadd.f32 %v1725, %v1731
    %v1741 = vld [vmem:[%s8] sm:$0x1]
    %v1742 = vld [vmem:[%s9] sm:$0x1]
    %v1743 = vsel %vm74, %v1733, 0.0
    %1744 = vadd.xlane.f32.xlu0 %v1743
    %v1745 = vpop.xlane.xlu0 %1744
    %v1746 = vsel %vm74, %v1734, 0.0
    %1747 = vadd.xlane.f32.xlu0 %v1746
    %v1748 = vpop.xlane.xlu0 %1747
    %v1749 = vsel %vm74, %v1735, 0.0
    %1750 = vadd.xlane.f32.xlu0 %v1749
    %v1751 = vpop.xlane.xlu0 %1750
    %v1752 = vsel %vm74, %v1736, 0.0
    %1753 = vadd.xlane.f32.xlu0 %v1752
    %v1754 = vpop.xlane.xlu0 %1753
    %v1755 = vsel %vm74, %v1737, 0.0
    %1756 = vadd.xlane.f32.xlu0 %v1755
    %v1757 = vpop.xlane.xlu0 %1756
    %v1758 = vsel %vm74, %v1738, 0.0
    %1759 = vadd.xlane.f32.xlu0 %v1758
    %v1760 = vpop.xlane.xlu0 %1759
    %v1761 = vsel %vm74, %v1739, 0.0
    %1762 = vadd.xlane.f32.xlu0 %v1761
    %v1763 = vpop.xlane.xlu0 %1762
    %v1764 = vsel %vm74, %v1740, 0.0
    %1765 = vadd.xlane.f32.xlu0 %v1764
    %v1766 = vpop.xlane.xlu0 %1765
    %v1767 = vmul.f32 %v1745, %v230
    %v1768 = vmul.f32 %v1748, %v230
    %v1769 = vmul.f32 %v1751, %v230
    %v1770 = vmul.f32 %v1754, %v230
    %v1771 = vmul.f32 %v1757, %v230
    %v1772 = vmul.f32 %v1760, %v230
    %v1773 = vmul.f32 %v1763, %v230
    %v1774 = vmul.f32 %v1766, %v230
    %v1775 = vsub.f32 %v1733, %v1767
    %v1776 = vsub.f32 %v1734, %v1768
    %v1777 = vsub.f32 %v1735, %v1769
    %v1778 = vsub.f32 %v1736, %v1770
    %v1779 = vsub.f32 %v1737, %v1771
    %v1780 = vsub.f32 %v1738, %v1772
    %v1781 = vsub.f32 %v1739, %v1773
    %v1782 = vsub.f32 %v1740, %v1774
    %v1783 = vmul.f32 %v1775, %v1775
    %v1784 = vmul.f32 %v1776, %v1776
    %v1785 = vmul.f32 %v1777, %v1777
    %v1786 = vmul.f32 %v1778, %v1778
    %v1787 = vmul.f32 %v1779, %v1779
    %v1788 = vmul.f32 %v1780, %v1780
    %v1789 = vmul.f32 %v1781, %v1781
    %v1790 = vmul.f32 %v1782, %v1782
    %v1791 = vsel %vm74, %v1783, 0.0
    %1792 = vadd.xlane.f32.xlu0 %v1791
    %v1793 = vpop.xlane.xlu0 %1792
    %v1794 = vsel %vm74, %v1784, 0.0
    %1795 = vadd.xlane.f32.xlu0 %v1794
    %v1796 = vpop.xlane.xlu0 %1795
    %v1797 = vsel %vm74, %v1785, 0.0
    %1798 = vadd.xlane.f32.xlu0 %v1797
    %v1799 = vpop.xlane.xlu0 %1798
    %v1800 = vsel %vm74, %v1786, 0.0
    %1801 = vadd.xlane.f32.xlu0 %v1800
    %v1802 = vpop.xlane.xlu0 %1801
    %v1803 = vsel %vm74, %v1787, 0.0
    %1804 = vadd.xlane.f32.xlu0 %v1803
    %v1805 = vpop.xlane.xlu0 %1804
    %v1806 = vsel %vm74, %v1788, 0.0
    %1807 = vadd.xlane.f32.xlu0 %v1806
    %v1808 = vpop.xlane.xlu0 %1807
    %v1809 = vsel %vm74, %v1789, 0.0
    %1810 = vadd.xlane.f32.xlu0 %v1809
    %v1811 = vpop.xlane.xlu0 %1810
    %v1812 = vsel %vm74, %v1790, 0.0
    %1813 = vadd.xlane.f32.xlu0 %v1812
    %v1814 = vpop.xlane.xlu0 %1813
    %v1815 = vmul.f32 %v1793, %v230
    %v1816 = vmul.f32 %v1796, %v230
    %v1817 = vmul.f32 %v1799, %v230
    %v1818 = vmul.f32 %v1802, %v230
    %v1819 = vmul.f32 %v1805, %v230
    %v1820 = vmul.f32 %v1808, %v230
    %v1821 = vmul.f32 %v1811, %v230
    %v1822 = vmul.f32 %v1814, %v230
    %v1823 = vadd.f32 %v1815, 1e-05
    %v1824 = vadd.f32 %v1816, 1e-05
    %v1825 = vadd.f32 %v1817, 1e-05
    %v1826 = vadd.f32 %v1818, 1e-05
    %v1827 = vadd.f32 %v1819, 1e-05
    %v1828 = vadd.f32 %v1820, 1e-05
    %v1829 = vadd.f32 %v1821, 1e-05
    %v1830 = vadd.f32 %v1822, 1e-05
    %v1831 = vrsqrt.pop %v1823
    %v1832 = vrsqrt.pop %v1824
    %v1833 = vrsqrt.pop %v1825
    %v1834 = vrsqrt.pop %v1826
    %v1835 = vrsqrt.pop %v1827
    %v1836 = vrsqrt.pop %v1828
    %v1837 = vrsqrt.pop %v1829
    %v1838 = vrsqrt.pop %v1830
    %v1839 = vmul.f32 %v1775, %v1831
    %v1840 = vmul.f32 %v1776, %v1832
    %v1841 = vmul.f32 %v1777, %v1833
    %v1842 = vmul.f32 %v1778, %v1834
    %v1843 = vmul.f32 %v1779, %v1835
    %v1844 = vmul.f32 %v1780, %v1836
    %v1845 = vmul.f32 %v1781, %v1837
    %v1846 = vmul.f32 %v1782, %v1838
    %v1848 = vlaneseq
    %v1849 = vshrl.u32 %v1848, 7
    %v1850 = vsub.s32 0, %v1849
    %v1851 = vrot.slane %v1741, %v1850
    %v1853 = vmul.f32 %v1839, %v1851
    %v1854 = vmul.f32 %v1840, %v1851
    %v1855 = vmul.f32 %v1841, %v1851
    %v1856 = vmul.f32 %v1842, %v1851
    %v1857 = vmul.f32 %v1843, %v1851
    %v1858 = vmul.f32 %v1844, %v1851
    %v1859 = vmul.f32 %v1845, %v1851
    %v1860 = vmul.f32 %v1846, %v1851
    %v1862 = vlaneseq
    %v1863 = vshrl.u32 %v1862, 7
    %v1864 = vsub.s32 0, %v1863
    %v1865 = vrot.slane %v1742, %v1864
    %v1867 = vadd.f32 %v1853, %v1865
    %v1868 = vadd.f32 %v1854, %v1865
    %v1869 = vadd.f32 %v1855, %v1865
    %v1870 = vadd.f32 %v1856, %v1865
    %v1871 = vadd.f32 %v1857, %v1865
    %v1872 = vadd.f32 %v1858, %v1865
    %v1873 = vadd.f32 %v1859, %v1865
    %v1874 = vadd.f32 %v1860, %v1865
    %v1875 = vld [vmem:[%s10] sm:$0xff]
    %v1876 = vld [vmem:[%s10 + $0x8] sm:$0xff]
    %v1877 = vld [vmem:[%s10 + $0x10] sm:$0xff]
    %v1878 = vld [vmem:[%s10 + $0x18] sm:$0xff]
    %v1879 = vld [vmem:[%s11] sm:$0x1]
    %v1881 = vlaneseq
    %v1882 = vshrl.u32 %v1881, 7
    %v1883 = vsub.s32 0, %v1882
    %v1884 = vrot.slane %v1879, %v1883
    %v1887 = vsel %vm74, %v1867, 0
    %v1890 = vsel %vm74, %v1868, 0
    %v1893 = vsel %vm74, %v1869, 0
    %v1896 = vsel %vm74, %v1870, 0
    %v1899 = vsel %vm74, %v1871, 0
    %v1902 = vsel %vm74, %v1872, 0
    %v1905 = vsel %vm74, %v1873, 0
    %v1908 = vsel %vm74, %v1874, 0
    %1910 = vmatprep.subr.mxu0 0.0
    %1911 = vmatpush1.msra.mxu0 %v1875
    %1912 = vmatprep.subr.mxu0 0.0
    %1913 = vmatpush1.msra.mxu0 %v1876
    %1914 = vmatprep.subr.mxu0 0.0
    %1915 = vmatpush1.msra.mxu0 %v1877
    %1916 = vmatprep.subr.mxu0 0.0
    %1917 = vmatpush1.msra.mxu0 %v1878
    %1918 = vmatprep.subr.mxu0 0.0
    %1919 = vmatpush1.msra.mxu0 0.0
    %1920 = vmatprep.subr.mxu0 0.0
    %1921 = vmatpush1.msra.mxu0 0.0
    %1922 = vmatprep.subr.mxu0 0.0
    %1923 = vmatpush1.msra.mxu0 0.0
    %1924 = vmatprep.subr.mxu0 0.0
    %1925 = vmatpush1.msra.mxu0 0.0
    %1926 = vmatprep.subr.mxu0 0.0
    %1927 = vmatpush1.msra.mxu0 0.0
    %1928 = vmatprep.subr.mxu0 0.0
    %1929 = vmatpush1.msra.mxu0 0.0
    %1930 = vmatprep.subr.mxu0 0.0
    %1931 = vmatpush1.msra.mxu0 0.0
    %1932 = vmatprep.subr.mxu0 0.0
    %1933 = vmatpush1.msra.mxu0 0.0
    %1934 = vmatprep.subr.mxu0 0.0
    %1935 = vmatpush1.msra.mxu0 0.0
    %1936 = vmatprep.subr.mxu0 0.0
    %1937 = vmatpush1.msra.mxu0 0.0
    %1938 = vmatprep.subr.mxu0 0.0
    %1939 = vmatpush1.msra.mxu0 0.0
    %1940 = vmatprep.subr.mxu0 0.0
    %1941 = vmatpush1.msra.mxu0 0.0
    %1942 = vmatprep.subr.mxu0 0.0
    %1943 = vmatpush1.msra.mxu0 0.0
    %1944 = vmatprep.subr.mxu0 0.0
    %1945 = vmatpush1.msra.mxu0 0.0
    %1946 = vmatprep.subr.mxu0 0.0
    %1947 = vmatpush1.msra.mxu0 0.0
    %1948 = vmatprep.subr.mxu0 0.0
    %1949 = vmatpush1.msra.mxu0 0.0
    %1950 = vmatprep.subr.mxu0 0.0
    %1951 = vmatpush1.msra.mxu0 0.0
    %1952 = vmatprep.subr.mxu0 0.0
    %1953 = vmatpush1.msra.mxu0 0.0
    %1954 = vmatprep.subr.mxu0 0.0
    %1955 = vmatpush1.msra.mxu0 0.0
    %1956 = vmatprep.subr.mxu0 0.0
    %1957 = vmatpush1.msra.mxu0 0.0
    %1958 = vmatprep.subr.mxu0 0.0
    %1959 = vmatpush1.msra.mxu0 0.0
    %1960 = vmatprep.subr.mxu0 0.0
    %1961 = vmatpush1.msra.mxu0 0.0
    %1962 = vmatprep.subr.mxu0 0.0
    %1963 = vmatpush1.msra.mxu0 0.0
    %1964 = vmatprep.subr.mxu0 0.0
    %1965 = vmatpush1.msra.mxu0 0.0
    %1966 = vmatprep.subr.mxu0 0.0
    %1967 = vmatpush1.msra.mxu0 0.0
    %1968 = vmatprep.subr.mxu0 0.0
    %1969 = vmatpush1.msra.mxu0 0.0
    %1970 = vmatprep.subr.mxu0 0.0
    %1971 = vmatpush1.msra.mxu0 0.0
    %1972 = vmatprep.subr.mxu0 0.0
    %1973 = vmatpush1.msra.mxu0 0.0
    %1974 = vmatprep.mubr.f32.mxu0 0.0
    %1975 = vmatmul.mubr.f32.gmra.mrb[0].mxu0 %v1887
    %v1976 = vpop.f32.mrb[0].mxu0
    %v1977 = vadd.f32 %v1884, %v1976
    %v1978 = vpop.f32.mrb[0].mxu0
    %1979 = vmatprep.mubr.f32.mxu0 0.0
    %1980 = vmatmul.mubr.f32.gmra.mrb[0].mxu0 %v1890
    %v1981 = vpop.f32.mrb[0].mxu0
    %v1982 = vadd.f32 %v1884, %v1981
    %v1983 = vpop.f32.mrb[0].mxu0
    %1984 = vmatprep.mubr.f32.mxu0 0.0
    %1985 = vmatmul.mubr.f32.gmra.mrb[0].mxu0 %v1893
    %v1986 = vpop.f32.mrb[0].mxu0
    %v1987 = vadd.f32 %v1884, %v1986
    %v1988 = vpop.f32.mrb[0].mxu0
    %1989 = vmatprep.mubr.f32.mxu0 0.0
    %1990 = vmatmul.mubr.f32.gmra.mrb[0].mxu0 %v1896
    %v1991 = vpop.f32.mrb[0].mxu0
    %v1992 = vadd.f32 %v1884, %v1991
    %v1993 = vpop.f32.mrb[0].mxu0
    %1994 = vmatprep.mubr.f32.mxu0 0.0
    %1995 = vmatmul.mubr.f32.gmra.mrb[0].mxu0 %v1899
    %v1996 = vpop.f32.mrb[0].mxu0
    %v1997 = vadd.f32 %v1884, %v1996
    %v1998 = vpop.f32.mrb[0].mxu0
    %1999 = vmatprep.mubr.f32.mxu0 0.0
    %2000 = vmatmul.mubr.f32.gmra.mrb[0].mxu0 %v1902
    %v2001 = vpop.f32.mrb[0].mxu0
    %v2002 = vadd.f32 %v1884, %v2001
    %v2003 = vpop.f32.mrb[0].mxu0
    %2004 = vmatprep.mubr.f32.mxu0 0.0
    %2005 = vmatmul.mubr.f32.gmra.mrb[0].mxu0 %v1905
    %v2006 = vpop.f32.mrb[0].mxu0
    %v2007 = vadd.f32 %v1884, %v2006
    %v2008 = vpop.f32.mrb[0].mxu0
    %2009 = vmatprep.mubr.f32.mxu0 0.0
    %2010 = vmatmul.mubr.f32.gmra.mrb[0].mxu0 %v1908
    %v2011 = vpop.f32.mrb[0].mxu0
    %v2012 = vadd.f32 %v1884, %v2011
    %v2013 = vpop.f32.mrb[0].mxu0
    %2014 = vdwg.mxu0
    %v2015 = vmul.f32 %v1977, 0.5
    %v2016 = vmul.f32 %v1982, 0.5
    %v2017 = vmul.f32 %v1987, 0.5
    %v2018 = vmul.f32 %v1992, 0.5
    %v2019 = vmul.f32 %v1997, 0.5
    %v2020 = vmul.f32 %v2002, 0.5
    %v2021 = vmul.f32 %v2007, 0.5
    %v2022 = vmul.f32 %v2012, 0.5
    %v2023 = vmul.f32 %v1977, 0.70710677
    %v2024 = vmul.f32 %v1982, 0.70710677
    %v2025 = vmul.f32 %v1987, 0.70710677
    %v2026 = vmul.f32 %v1992, 0.70710677
    %v2027 = vmul.f32 %v1997, 0.70710677
    %v2028 = vmul.f32 %v2002, 0.70710677
    %v2029 = vmul.f32 %v2007, 0.70710677
    %v2030 = vmul.f32 %v2012, 0.70710677
    %v2031 = verf.f32.pop %v2023
    %v2032 = verf.f32.pop %v2024
    %v2033 = verf.f32.pop %v2025
    %v2034 = verf.f32.pop %v2026
    %v2035 = verf.f32.pop %v2027
    %v2036 = verf.f32.pop %v2028
    %v2037 = verf.f32.pop %v2029
    %v2038 = verf.f32.pop %v2030
    %v2039 = vadd.f32 %v2031, 1.0
    %v2040 = vadd.f32 %v2032, 1.0
    %v2041 = vadd.f32 %v2033, 1.0
    %v2042 = vadd.f32 %v2034, 1.0
    %v2043 = vadd.f32 %v2035, 1.0
    %v2044 = vadd.f32 %v2036, 1.0
    %v2045 = vadd.f32 %v2037, 1.0
    %v2046 = vadd.f32 %v2038, 1.0
    %v2047 = vmul.f32 %v2015, %v2039
    %v2048 = vmul.f32 %v2016, %v2040
    %v2049 = vmul.f32 %v2017, %v2041
    %v2050 = vmul.f32 %v2018, %v2042
    %v2051 = vmul.f32 %v2019, %v2043
    %v2052 = vmul.f32 %v2020, %v2044
    %v2053 = vmul.f32 %v2021, %v2045
    %v2054 = vmul.f32 %v2022, %v2046
    %v2055 = vld [vmem:[%s12] sm:$0xff]
    %v2056 = vld [vmem:[%s12 + $0x8] sm:$0xff]
    %v2057 = vld [vmem:[%s12 + $0x10] sm:$0xff]
    %v2058 = vld [vmem:[%s12 + $0x18] sm:$0xff]
    %v2059 = vld [vmem:[%s12 + $0x20] sm:$0xff]
    %v2060 = vld [vmem:[%s12 + $0x28] sm:$0xff]
    %v2061 = vld [vmem:[%s12 + $0x30] sm:$0xff]
    %v2062 = vld [vmem:[%s12 + $0x38] sm:$0xff]
    %vm2063 = vcmask 523264
    %v2065 = vsel %vm2063, %v2047, 0
    %v2068 = vsel %vm2063, %v2048, 0
    %v2071 = vsel %vm2063, %v2049, 0
    %v2074 = vsel %vm2063, %v2050, 0
    %v2077 = vsel %vm2063, %v2051, 0
    %v2080 = vsel %vm2063, %v2052, 0
    %v2083 = vsel %vm2063, %v2053, 0
    %v2086 = vsel %vm2063, %v2054, 0
    %2088 = vmatprep.subr.mxu0 0.0
    %2089 = vmatpush1.msra.mxu0 %v2055
    %2090 = vmatprep.subr.mxu0 0.0
    %2091 = vmatpush1.msra.mxu0 %v2056
    %2092 = vmatprep.subr.mxu0 0.0
    %2093 = vmatpush1.msra.mxu0 %v2057
    %2094 = vmatprep.subr.mxu0 0.0
    %2095 = vmatpush1.msra.mxu0 %v2058
    %2096 = vmatprep.subr.mxu0 0.0
    %2097 = vmatpush1.msra.mxu0 %v2059
    %2098 = vmatprep.subr.mxu0 0.0
    %2099 = vmatpush1.msra.mxu0 %v2060
    %2100 = vmatprep.subr.mxu0 0.0
    %2101 = vmatpush1.msra.mxu0 %v2061
    %2102 = vmatprep.subr.mxu0 0.0
    %2103 = vmatpush1.msra.mxu0 %v2062
    %2104 = vmatprep.subr.mxu0 0.0
    %2105 = vmatpush1.msra.mxu0 0.0
    %2106 = vmatprep.subr.mxu0 0.0
    %2107 = vmatpush1.msra.mxu0 0.0
    %2108 = vmatprep.subr.mxu0 0.0
    %2109 = vmatpush1.msra.mxu0 0.0
    %2110 = vmatprep.subr.mxu0 0.0
    %2111 = vmatpush1.msra.mxu0 0.0
    %2112 = vmatprep.subr.mxu0 0.0
    %2113 = vmatpush1.msra.mxu0 0.0
    %2114 = vmatprep.subr.mxu0 0.0
    %2115 = vmatpush1.msra.mxu0 0.0
    %2116 = vmatprep.subr.mxu0 0.0
    %2117 = vmatpush1.msra.mxu0 0.0
    %2118 = vmatprep.subr.mxu0 0.0
    %2119 = vmatpush1.msra.mxu0 0.0
    %2120 = vmatprep.subr.mxu0 0.0
    %2121 = vmatpush1.msra.mxu0 0.0
    %2122 = vmatprep.subr.mxu0 0.0
    %2123 = vmatpush1.msra.mxu0 0.0
    %2124 = vmatprep.subr.mxu0 0.0
    %2125 = vmatpush1.msra.mxu0 0.0
    %2126 = vmatprep.subr.mxu0 0.0
    %2127 = vmatpush1.msra.mxu0 0.0
    %2128 = vmatprep.subr.mxu0 0.0
    %2129 = vmatpush1.msra.mxu0 0.0
    %2130 = vmatprep.subr.mxu0 0.0
    %2131 = vmatpush1.msra.mxu0 0.0
    %2132 = vmatprep.subr.mxu0 0.0
    %2133 = vmatpush1.msra.mxu0 0.0
    %2134 = vmatprep.subr.mxu0 0.0
    %2135 = vmatpush1.msra.mxu0 0.0
    %2136 = vmatprep.subr.mxu0 0.0
    %2137 = vmatpush1.msra.mxu0 0.0
    %2138 = vmatprep.subr.mxu0 0.0
    %2139 = vmatpush1.msra.mxu0 0.0
    %2140 = vmatprep.subr.mxu0 0.0
    %2141 = vmatpush1.msra.mxu0 0.0
    %2142 = vmatprep.subr.mxu0 0.0
    %2143 = vmatpush1.msra.mxu0 0.0
    %2144 = vmatprep.subr.mxu0 0.0
    %2145 = vmatpush1.msra.mxu0 0.0
    %2146 = vmatprep.subr.mxu0 0.0
    %2147 = vmatpush1.msra.mxu0 0.0
    %2148 = vmatprep.subr.mxu0 0.0
    %2149 = vmatpush1.msra.mxu0 0.0
    %2150 = vmatprep.subr.mxu0 0.0
    %2151 = vmatpush1.msra.mxu0 0.0
    %2152 = vmatprep.mubr.f32.mxu0 0.0
    %2153 = vmatmul.mubr.f32.gmra.mrb[0].mxu0 %v2065
    %v2154 = vpop.f32.mrb[0].mxu0
    %v2155 = vadd.f32 0.0, %v2154
    %v2156 = vpop.f32.mrb[0].mxu0
    %2157 = vmatprep.mubr.f32.mxu0 0.0
    %2158 = vmatmul.mubr.f32.gmra.mrb[0].mxu0 %v2068
    %v2159 = vpop.f32.mrb[0].mxu0
    %v2160 = vadd.f32 0.0, %v2159
    %v2161 = vpop.f32.mrb[0].mxu0
    %2162 = vmatprep.mubr.f32.mxu0 0.0
    %2163 = vmatmul.mubr.f32.gmra.mrb[0].mxu0 %v2071
    %v2164 = vpop.f32.mrb[0].mxu0
    %v2165 = vadd.f32 0.0, %v2164
    %v2166 = vpop.f32.mrb[0].mxu0
    %2167 = vmatprep.mubr.f32.mxu0 0.0
    %2168 = vmatmul.mubr.f32.gmra.mrb[0].mxu0 %v2074
    %v2169 = vpop.f32.mrb[0].mxu0
    %v2170 = vadd.f32 0.0, %v2169
    %v2171 = vpop.f32.mrb[0].mxu0
    %2172 = vmatprep.mubr.f32.mxu0 0.0
    %2173 = vmatmul.mubr.f32.gmra.mrb[0].mxu0 %v2077
    %v2174 = vpop.f32.mrb[0].mxu0
    %v2175 = vadd.f32 0.0, %v2174
    %v2176 = vpop.f32.mrb[0].mxu0
    %2177 = vmatprep.mubr.f32.mxu0 0.0
    %2178 = vmatmul.mubr.f32.gmra.mrb[0].mxu0 %v2080
    %v2179 = vpop.f32.mrb[0].mxu0
    %v2180 = vadd.f32 0.0, %v2179
    %v2181 = vpop.f32.mrb[0].mxu0
    %2182 = vmatprep.mubr.f32.mxu0 0.0
    %2183 = vmatmul.mubr.f32.gmra.mrb[0].mxu0 %v2083
    %v2184 = vpop.f32.mrb[0].mxu0
    %v2185 = vadd.f32 0.0, %v2184
    %v2186 = vpop.f32.mrb[0].mxu0
    %2187 = vmatprep.mubr.f32.mxu0 0.0
    %2188 = vmatmul.mubr.f32.gmra.mrb[0].mxu0 %v2086
    %v2189 = vpop.f32.mrb[0].mxu0
    %v2190 = vadd.f32 0.0, %v2189
    %v2191 = vpop.f32.mrb[0].mxu0
    %2192 = vdwg.mxu0
    %v2193 = vadd.f32 %v1733, %v2155
    %v2194 = vadd.f32 %v1734, %v2160
    %v2195 = vadd.f32 %v1735, %v2165
    %v2196 = vadd.f32 %v1736, %v2170
    %v2197 = vadd.f32 %v1737, %v2175
    %v2198 = vadd.f32 %v1738, %v2180
    %v2199 = vadd.f32 %v1739, %v2185
    %v2200 = vadd.f32 %v1740, %v2190
    %v2201 = vld [vmem:[%s13] sm:$0x1]
    %v2203 = vlaneseq
    %v2204 = vshrl.u32 %v2203, 7
    %v2205 = vsub.s32 0, %v2204
    %v2206 = vrot.slane %v2201, %v2205
    %v2208 = vadd.f32 %v2193, %v2206
    %v2209 = vadd.f32 %v2194, %v2206
    %v2210 = vadd.f32 %v2195, %v2206
    %v2211 = vadd.f32 %v2196, %v2206
    %v2212 = vadd.f32 %v2197, %v2206
    %v2213 = vadd.f32 %v2198, %v2206
    %v2214 = vadd.f32 %v2199, %v2206
    %v2215 = vadd.f32 %v2200, %v2206
    %s2216 = scalar_lea.vmem %s3, 1
    %v2217 = vld [vmem:[%s2216] sm:$0x1]
    %s2218 = scalar_lea.vmem %s4, 1
    %v2219 = vld [vmem:[%s2218] sm:$0x1]
    %v2220 = vsel %vm74, %v2208, 0.0
    %2221 = vadd.xlane.f32.xlu0 %v2220
    %v2222 = vpop.xlane.xlu0 %2221
    %v2223 = vsel %vm74, %v2209, 0.0
    %2224 = vadd.xlane.f32.xlu0 %v2223
    %v2225 = vpop.xlane.xlu0 %2224
    %v2226 = vsel %vm74, %v2210, 0.0
    %2227 = vadd.xlane.f32.xlu0 %v2226
    %v2228 = vpop.xlane.xlu0 %2227
    %v2229 = vsel %vm74, %v2211, 0.0
    %2230 = vadd.xlane.f32.xlu0 %v2229
    %v2231 = vpop.xlane.xlu0 %2230
    %v2232 = vsel %vm74, %v2212, 0.0
    %2233 = vadd.xlane.f32.xlu0 %v2232
    %v2234 = vpop.xlane.xlu0 %2233
    %v2235 = vsel %vm74, %v2213, 0.0
    %2236 = vadd.xlane.f32.xlu0 %v2235
    %v2237 = vpop.xlane.xlu0 %2236
    %v2238 = vsel %vm74, %v2214, 0.0
    %2239 = vadd.xlane.f32.xlu0 %v2238
    %v2240 = vpop.xlane.xlu0 %2239
    %v2241 = vsel %vm74, %v2215, 0.0
    %2242 = vadd.xlane.f32.xlu0 %v2241
    %v2243 = vpop.xlane.xlu0 %2242
    %v2244 = vmul.f32 %v2222, %v230
    %v2245 = vmul.f32 %v2225, %v230
    %v2246 = vmul.f32 %v2228, %v230
    %v2247 = vmul.f32 %v2231, %v230
    %v2248 = vmul.f32 %v2234, %v230
    %v2249 = vmul.f32 %v2237, %v230
    %v2250 = vmul.f32 %v2240, %v230
    %v2251 = vmul.f32 %v2243, %v230
    %v2252 = vsub.f32 %v2208, %v2244
    %v2253 = vsub.f32 %v2209, %v2245
    %v2254 = vsub.f32 %v2210, %v2246
    %v2255 = vsub.f32 %v2211, %v2247
    %v2256 = vsub.f32 %v2212, %v2248
    %v2257 = vsub.f32 %v2213, %v2249
    %v2258 = vsub.f32 %v2214, %v2250
    %v2259 = vsub.f32 %v2215, %v2251
    %v2260 = vmul.f32 %v2252, %v2252
    %v2261 = vmul.f32 %v2253, %v2253
    %v2262 = vmul.f32 %v2254, %v2254
    %v2263 = vmul.f32 %v2255, %v2255
    %v2264 = vmul.f32 %v2256, %v2256
    %v2265 = vmul.f32 %v2257, %v2257
    %v2266 = vmul.f32 %v2258, %v2258
    %v2267 = vmul.f32 %v2259, %v2259
    %v2268 = vsel %vm74, %v2260, 0.0
    %2269 = vadd.xlane.f32.xlu0 %v2268
    %v2270 = vpop.xlane.xlu0 %2269
    %v2271 = vsel %vm74, %v2261, 0.0
    %2272 = vadd.xlane.f32.xlu0 %v2271
    %v2273 = vpop.xlane.xlu0 %2272
    %v2274 = vsel %vm74, %v2262, 0.0
    %2275 = vadd.xlane.f32.xlu0 %v2274
    %v2276 = vpop.xlane.xlu0 %2275
    %v2277 = vsel %vm74, %v2263, 0.0
    %2278 = vadd.xlane.f32.xlu0 %v2277
    %v2279 = vpop.xlane.xlu0 %2278
    %v2280 = vsel %vm74, %v2264, 0.0
    %2281 = vadd.xlane.f32.xlu0 %v2280
    %v2282 = vpop.xlane.xlu0 %2281
    %v2283 = vsel %vm74, %v2265, 0.0
    %2284 = vadd.xlane.f32.xlu0 %v2283
    %v2285 = vpop.xlane.xlu0 %2284
    %v2286 = vsel %vm74, %v2266, 0.0
    %2287 = vadd.xlane.f32.xlu0 %v2286
    %v2288 = vpop.xlane.xlu0 %2287
    %v2289 = vsel %vm74, %v2267, 0.0
    %2290 = vadd.xlane.f32.xlu0 %v2289
    %v2291 = vpop.xlane.xlu0 %2290
    %v2292 = vmul.f32 %v2270, %v230
    %v2293 = vmul.f32 %v2273, %v230
    %v2294 = vmul.f32 %v2276, %v230
    %v2295 = vmul.f32 %v2279, %v230
    %v2296 = vmul.f32 %v2282, %v230
    %v2297 = vmul.f32 %v2285, %v230
    %v2298 = vmul.f32 %v2288, %v230
    %v2299 = vmul.f32 %v2291, %v230
    %v2300 = vadd.f32 %v2292, 1e-05
    %v2301 = vadd.f32 %v2293, 1e-05
    %v2302 = vadd.f32 %v2294, 1e-05
    %v2303 = vadd.f32 %v2295, 1e-05
    %v2304 = vadd.f32 %v2296, 1e-05
    %v2305 = vadd.f32 %v2297, 1e-05
    %v2306 = vadd.f32 %v2298, 1e-05
    %v2307 = vadd.f32 %v2299, 1e-05
    %v2308 = vrsqrt.pop %v2300
    %v2309 = vrsqrt.pop %v2301
    %v2310 = vrsqrt.pop %v2302
    %v2311 = vrsqrt.pop %v2303
    %v2312 = vrsqrt.pop %v2304
    %v2313 = vrsqrt.pop %v2305
    %v2314 = vrsqrt.pop %v2306
    %v2315 = vrsqrt.pop %v2307
    %v2316 = vmul.f32 %v2252, %v2308
    %v2317 = vmul.f32 %v2253, %v2309
    %v2318 = vmul.f32 %v2254, %v2310
    %v2319 = vmul.f32 %v2255, %v2311
    %v2320 = vmul.f32 %v2256, %v2312
    %v2321 = vmul.f32 %v2257, %v2313
    %v2322 = vmul.f32 %v2258, %v2314
    %v2323 = vmul.f32 %v2259, %v2315
    %v2325 = vlaneseq
    %v2326 = vshrl.u32 %v2325, 7
    %v2327 = vsub.s32 0, %v2326
    %v2328 = vrot.slane %v2217, %v2327
    %v2330 = vmul.f32 %v2316, %v2328
    %v2331 = vmul.f32 %v2317, %v2328
    %v2332 = vmul.f32 %v2318, %v2328
    %v2333 = vmul.f32 %v2319, %v2328
    %v2334 = vmul.f32 %v2320, %v2328
    %v2335 = vmul.f32 %v2321, %v2328
    %v2336 = vmul.f32 %v2322, %v2328
    %v2337 = vmul.f32 %v2323, %v2328
    %v2339 = vlaneseq
    %v2340 = vshrl.u32 %v2339, 7
    %v2341 = vsub.s32 0, %v2340
    %v2342 = vrot.slane %v2219, %v2341
    %v2344 = vadd.f32 %v2330, %v2342
    %v2345 = vadd.f32 %v2331, %v2342
    %v2346 = vadd.f32 %v2332, %v2342
    %v2347 = vadd.f32 %v2333, %v2342
    %v2348 = vadd.f32 %v2334, %v2342
    %v2349 = vadd.f32 %v2335, %v2342
    %v2350 = vadd.f32 %v2336, %v2342
    %v2351 = vadd.f32 %v2337, %v2342
    %s2352 = scalar_lea.vmem %s5, 32
    %v2353 = vld [vmem:[%s2352] sm:$0xff]
    %v2354 = vld [vmem:[%s2352 + $0x8] sm:$0xff]
    %v2355 = vld [vmem:[%s2352 + $0x10] sm:$0xff]
    %v2356 = vld [vmem:[%s2352 + $0x18] sm:$0xff]
    %v2358 = vsel %vm74, %v2344, 0
    %v2361 = vsel %vm74, %v2345, 0
    %v2364 = vsel %vm74, %v2346, 0
    %v2367 = vsel %vm74, %v2347, 0
    %v2370 = vsel %vm74, %v2348, 0
    %v2373 = vsel %vm74, %v2349, 0
    %v2376 = vsel %vm74, %v2350, 0
    %v2379 = vsel %vm74, %v2351, 0
    %2381 = vmatprep.subr.mxu0 0.0
    %2382 = vmatpush1.msra.mxu0 %v2353
    %2383 = vmatprep.subr.mxu0 0.0
    %2384 = vmatpush1.msra.mxu0 %v2354
    %2385 = vmatprep.subr.mxu0 0.0
    %2386 = vmatpush1.msra.mxu0 %v2355
    %2387 = vmatprep.subr.mxu0 0.0
    %2388 = vmatpush1.msra.mxu0 %v2356
    %2389 = vmatprep.subr.mxu0 0.0
    %2390 = vmatpush1.msra.mxu0 0.0
    %2391 = vmatprep.subr.mxu0 0.0
    %2392 = vmatpush1.msra.mxu0 0.0
    %2393 = vmatprep.subr.mxu0 0.0
    %2394 = vmatpush1.msra.mxu0 0.0
    %2395 = vmatprep.subr.mxu0 0.0
    %2396 = vmatpush1.msra.mxu0 0.0
    %2397 = vmatprep.subr.mxu0 0.0
    %2398 = vmatpush1.msra.mxu0 0.0
    %2399 = vmatprep.subr.mxu0 0.0
    %2400 = vmatpush1.msra.mxu0 0.0
    %2401 = vmatprep.subr.mxu0 0.0
    %2402 = vmatpush1.msra.mxu0 0.0
    %2403 = vmatprep.subr.mxu0 0.0
    %2404 = vmatpush1.msra.mxu0 0.0
    %2405 = vmatprep.subr.mxu0 0.0
    %2406 = vmatpush1.msra.mxu0 0.0
    %2407 = vmatprep.subr.mxu0 0.0
    %2408 = vmatpush1.msra.mxu0 0.0
    %2409 = vmatprep.subr.mxu0 0.0
    %2410 = vmatpush1.msra.mxu0 0.0
    %2411 = vmatprep.subr.mxu0 0.0
    %2412 = vmatpush1.msra.mxu0 0.0
    %2413 = vmatprep.subr.mxu0 0.0
    %2414 = vmatpush1.msra.mxu0 0.0
    %2415 = vmatprep.subr.mxu0 0.0
    %2416 = vmatpush1.msra.mxu0 0.0
    %2417 = vmatprep.subr.mxu0 0.0
    %2418 = vmatpush1.msra.mxu0 0.0
    %2419 = vmatprep.subr.mxu0 0.0
    %2420 = vmatpush1.msra.mxu0 0.0
    %2421 = vmatprep.subr.mxu0 0.0
    %2422 = vmatpush1.msra.mxu0 0.0
    %2423 = vmatprep.subr.mxu0 0.0
    %2424 = vmatpush1.msra.mxu0 0.0
    %2425 = vmatprep.subr.mxu0 0.0
    %2426 = vmatpush1.msra.mxu0 0.0
    %2427 = vmatprep.subr.mxu0 0.0
    %2428 = vmatpush1.msra.mxu0 0.0
    %2429 = vmatprep.subr.mxu0 0.0
    %2430 = vmatpush1.msra.mxu0 0.0
    %2431 = vmatprep.subr.mxu0 0.0
    %2432 = vmatpush1.msra.mxu0 0.0
    %2433 = vmatprep.subr.mxu0 0.0
    %2434 = vmatpush1.msra.mxu0 0.0
    %2435 = vmatprep.subr.mxu0 0.0
    %2436 = vmatpush1.msra.mxu0 0.0
    %2437 = vmatprep.subr.mxu0 0.0
    %2438 = vmatpush1.msra.mxu0 0.0
    %2439 = vmatprep.subr.mxu0 0.0
    %2440 = vmatpush1.msra.mxu0 0.0
    %2441 = vmatprep.subr.mxu0 0.0
    %2442 = vmatpush1.msra.mxu0 0.0
    %2443 = vmatprep.subr.mxu0 0.0
    %2444 = vmatpush1.msra.mxu0 0.0
    %2445 = vmatprep.mubr.f32.mxu0 0.0
    %2446 = vmatmul.mubr.f32.gmra.mrb[0].mxu0 %v2358
    %v2447 = vpop.f32.mrb[0].mxu0
    %v2448 = vadd.f32 0.0, %v2447
    %v2449 = vpop.f32.mrb[0].mxu0
    %2450 = vmatprep.mubr.f32.mxu0 0.0
    %2451 = vmatmul.mubr.f32.gmra.mrb[0].mxu0 %v2361
    %v2452 = vpop.f32.mrb[0].mxu0
    %v2453 = vadd.f32 0.0, %v2452
    %v2454 = vpop.f32.mrb[0].mxu0
    %2455 = vmatprep.mubr.f32.mxu0 0.0
    %2456 = vmatmul.mubr.f32.gmra.mrb[0].mxu0 %v2364
    %v2457 = vpop.f32.mrb[0].mxu0
    %v2458 = vadd.f32 0.0, %v2457
    %v2459 = vpop.f32.mrb[0].mxu0
    %2460 = vmatprep.mubr.f32.mxu0 0.0
    %2461 = vmatmul.mubr.f32.gmra.mrb[0].mxu0 %v2367
    %v2462 = vpop.f32.mrb[0].mxu0
    %v2463 = vadd.f32 0.0, %v2462
    %v2464 = vpop.f32.mrb[0].mxu0
    %2465 = vmatprep.mubr.f32.mxu0 0.0
    %2466 = vmatmul.mubr.f32.gmra.mrb[0].mxu0 %v2370
    %v2467 = vpop.f32.mrb[0].mxu0
    %v2468 = vadd.f32 0.0, %v2467
    %v2469 = vpop.f32.mrb[0].mxu0
    %2470 = vmatprep.mubr.f32.mxu0 0.0
    %2471 = vmatmul.mubr.f32.gmra.mrb[0].mxu0 %v2373
    %v2472 = vpop.f32.mrb[0].mxu0
    %v2473 = vadd.f32 0.0, %v2472
    %v2474 = vpop.f32.mrb[0].mxu0
    %2475 = vmatprep.mubr.f32.mxu0 0.0
    %2476 = vmatmul.mubr.f32.gmra.mrb[0].mxu0 %v2376
    %v2477 = vpop.f32.mrb[0].mxu0
    %v2478 = vadd.f32 0.0, %v2477
    %v2479 = vpop.f32.mrb[0].mxu0
    %2480 = vmatprep.mubr.f32.mxu0 0.0
    %2481 = vmatmul.mubr.f32.gmra.mrb[0].mxu0 %v2379
    %v2482 = vpop.f32.mrb[0].mxu0
    %v2483 = vadd.f32 0.0, %v2482
    %v2484 = vpop.f32.mrb[0].mxu0
    %2485 = vdwg.mxu0
    %2490 = vrot.lane.b32.xlu0 %v2448, 96
    %v2491 = vpop.permute.xlu0 %2490
    %2492 = vrot.lane.b32.xlu0 %v2453, 96
    %v2493 = vpop.permute.xlu0 %2492
    %2494 = vrot.lane.b32.xlu0 %v2458, 96
    %v2495 = vpop.permute.xlu0 %2494
    %2496 = vrot.lane.b32.xlu0 %v2463, 96
    %v2497 = vpop.permute.xlu0 %2496
    %v2498 = vsel %vm484, %v2448, 0
    %v2500 = vsel %vm484, %v2453, 0
    %v2502 = vsel %vm484, %v2458, 0
    %v2504 = vsel %vm484, %v2463, 0
    %v2506 = vsel %vm484, %v2491, 0
    %v2508 = vsel %vm484, %v2493, 0
    %v2510 = vsel %vm484, %v2495, 0
    %v2512 = vsel %vm484, %v2497, 0
    %2514 = vmatprep.subr.mxu0 0.0
    %2515 = vmatpush1.xpose.msra.mxu0 %v2506
    %2516 = vmatprep.subr.mxu0 0.0
    %2517 = vmatpush1.xpose.msra.mxu0 %v2508
    %2518 = vmatprep.subr.mxu0 0.0
    %2519 = vmatpush1.xpose.msra.mxu0 %v2510
    %2520 = vmatprep.subr.mxu0 0.0
    %2521 = vmatpush1.xpose.msra.mxu0 %v2512
    %2522 = vmatprep.subr.mxu0 0.0
    %2523 = vmatpush1.xpose.msra.mxu0 0.0
    %2524 = vmatprep.subr.mxu0 0.0
    %2525 = vmatpush1.xpose.msra.mxu0 0.0
    %2526 = vmatprep.subr.mxu0 0.0
    %2527 = vmatpush1.xpose.msra.mxu0 0.0
    %2528 = vmatprep.subr.mxu0 0.0
    %2529 = vmatpush1.xpose.msra.mxu0 0.0
    %2530 = vmatprep.subr.mxu0 0.0
    %2531 = vmatpush1.xpose.msra.mxu0 0.0
    %2532 = vmatprep.subr.mxu0 0.0
    %2533 = vmatpush1.xpose.msra.mxu0 0.0
    %2534 = vmatprep.subr.mxu0 0.0
    %2535 = vmatpush1.xpose.msra.mxu0 0.0
    %2536 = vmatprep.subr.mxu0 0.0
    %2537 = vmatpush1.xpose.msra.mxu0 0.0
    %2538 = vmatprep.subr.mxu0 0.0
    %2539 = vmatpush1.xpose.msra.mxu0 0.0
    %2540 = vmatprep.subr.mxu0 0.0
    %2541 = vmatpush1.xpose.msra.mxu0 0.0
    %2542 = vmatprep.subr.mxu0 0.0
    %2543 = vmatpush1.xpose.msra.mxu0 0.0
    %2544 = vmatprep.subr.mxu0 0.0
    %2545 = vmatpush1.xpose.msra.mxu0 0.0
    %2546 = vmatprep.subr.mxu0 0.0
    %2547 = vmatpush1.xpose.msra.mxu0 0.0
    %2548 = vmatprep.subr.mxu0 0.0
    %2549 = vmatpush1.xpose.msra.mxu0 0.0
    %2550 = vmatprep.subr.mxu0 0.0
    %2551 = vmatpush1.xpose.msra.mxu0 0.0
    %2552 = vmatprep.subr.mxu0 0.0
    %2553 = vmatpush1.xpose.msra.mxu0 0.0
    %2554 = vmatprep.subr.mxu0 0.0
    %2555 = vmatpush1.xpose.msra.mxu0 0.0
    %2556 = vmatprep.subr.mxu0 0.0
    %2557 = vmatpush1.xpose.msra.mxu0 0.0
    %2558 = vmatprep.subr.mxu0 0.0
    %2559 = vmatpush1.xpose.msra.mxu0 0.0
    %2560 = vmatprep.subr.mxu0 0.0
    %2561 = vmatpush1.xpose.msra.mxu0 0.0
    %2562 = vmatprep.subr.mxu0 0.0
    %2563 = vmatpush1.xpose.msra.mxu0 0.0
    %2564 = vmatprep.subr.mxu0 0.0
    %2565 = vmatpush1.xpose.msra.mxu0 0.0
    %2566 = vmatprep.subr.mxu0 0.0
    %2567 = vmatpush1.xpose.msra.mxu0 0.0
    %2568 = vmatprep.subr.mxu0 0.0
    %2569 = vmatpush1.xpose.msra.mxu0 0.0
    %2570 = vmatprep.subr.mxu0 0.0
    %2571 = vmatpush1.xpose.msra.mxu0 0.0
    %2572 = vmatprep.subr.mxu0 0.0
    %2573 = vmatpush1.xpose.msra.mxu0 0.0
    %2574 = vmatprep.subr.mxu0 0.0
    %2575 = vmatpush1.xpose.msra.mxu0 0.0
    %2576 = vmatprep.subr.mxu0 0.0
    %2577 = vmatpush1.xpose.msra.mxu0 0.0
    %2578 = vmatprep.mubr.f32.mxu0 0.0
    %2579 = vmatmul.mubr.f32.gmra.mrb[0].mxu0 %v2498
    %v2580 = vpop.f32.mrb[0].mxu0
    %v2581 = vadd.f32 0.0, %v2580
    %v2582 = vpop.f32.mrb[0].mxu0
    %2583 = vmatprep.mubr.f32.mxu0 0.0
    %2584 = vmatmul.mubr.f32.gmra.mrb[0].mxu0 %v2500
    %v2585 = vpop.f32.mrb[0].mxu0
    %v2586 = vadd.f32 0.0, %v2585
    %v2587 = vpop.f32.mrb[0].mxu0
    %2588 = vmatprep.mubr.f32.mxu0 0.0
    %2589 = vmatmul.mubr.f32.gmra.mrb[0].mxu0 %v2502
    %v2590 = vpop.f32.mrb[0].mxu0
    %v2591 = vadd.f32 0.0, %v2590
    %v2592 = vpop.f32.mrb[0].mxu0
    %2593 = vmatprep.mubr.f32.mxu0 0.0
    %2594 = vmatmul.mubr.f32.gmra.mrb[0].mxu0 %v2504
    %v2595 = vpop.f32.mrb[0].mxu0
    %v2596 = vadd.f32 0.0, %v2595
    %v2597 = vpop.f32.mrb[0].mxu0
    %2598 = vdwg.mxu0
    %v2599 = vsel %vm74, %v2581, -inf
    %2600 = vmax.xlane.f32.xlu0 %v2599
    %v2601 = vpop.xlane.xlu0 %2600
    %v2602 = vsel %vm74, %v2586, -inf
    %2603 = vmax.xlane.f32.xlu0 %v2602
    %v2604 = vpop.xlane.xlu0 %2603
    %v2605 = vsel %vm74, %v2591, -inf
    %2606 = vmax.xlane.f32.xlu0 %v2605
    %v2607 = vpop.xlane.xlu0 %2606
    %v2608 = vsel %vm74, %v2596, -inf
    %2609 = vmax.xlane.f32.xlu0 %v2608
    %v2610 = vpop.xlane.xlu0 %2609
    %v2611 = vsub.f32 %v2581, %v2601
    %v2612 = vsub.f32 %v2586, %v2604
    %v2613 = vsub.f32 %v2591, %v2607
    %v2614 = vsub.f32 %v2596, %v2610
    %v2615 = vmul.f32 %v2611, 1.442695
    %v2616 = vpow.pop %v2615
    %v2617 = vmul.f32 %v2612, 1.442695
    %v2618 = vpow.pop %v2617
    %v2619 = vmul.f32 %v2613, 1.442695
    %v2620 = vpow.pop %v2619
    %v2621 = vmul.f32 %v2614, 1.442695
    %v2622 = vpow.pop %v2621
    %v2623 = vsel %vm74, %v2616, 0.0
    %2624 = vadd.xlane.f32.xlu0 %v2623
    %v2625 = vpop.xlane.xlu0 %2624
    %v2626 = vsel %vm74, %v2618, 0.0
    %2627 = vadd.xlane.f32.xlu0 %v2626
    %v2628 = vpop.xlane.xlu0 %2627
    %v2629 = vsel %vm74, %v2620, 0.0
    %2630 = vadd.xlane.f32.xlu0 %v2629
    %v2631 = vpop.xlane.xlu0 %2630
    %v2632 = vsel %vm74, %v2622, 0.0
    %2633 = vadd.xlane.f32.xlu0 %v2632
    %v2634 = vpop.xlane.xlu0 %2633
    %2635 = vrot.lane.b32.xlu0 %v2448, 64
    %v2636 = vpop.permute.xlu0 %2635
    %2637 = vrot.lane.b32.xlu0 %v2453, 64
    %v2638 = vpop.permute.xlu0 %2637
    %2639 = vrot.lane.b32.xlu0 %v2458, 64
    %v2640 = vpop.permute.xlu0 %2639
    %2641 = vrot.lane.b32.xlu0 %v2463, 64
    %v2642 = vpop.permute.xlu0 %2641
    %v2648 = vsel %vm74, %v2616, 0
    %v2651 = vsel %vm74, %v2618, 0
    %v2654 = vsel %vm74, %v2620, 0
    %v2657 = vsel %vm74, %v2622, 0
    %2659 = vmatprep.subr.mxu0 0.0
    %2660 = vmatpush1.msra.mxu0 %v2636
    %2661 = vmatprep.subr.mxu0 0.0
    %2662 = vmatpush1.msra.mxu0 %v2638
    %2663 = vmatprep.subr.mxu0 0.0
    %2664 = vmatpush1.msra.mxu0 %v2640
    %2665 = vmatprep.subr.mxu0 0.0
    %2666 = vmatpush1.msra.mxu0 %v2642
    %2667 = vmatprep.subr.mxu0 0.0
    %2668 = vmatpush1.msra.mxu0 0.0
    %2669 = vmatprep.subr.mxu0 0.0
    %2670 = vmatpush1.msra.mxu0 0.0
    %2671 = vmatprep.subr.mxu0 0.0
    %2672 = vmatpush1.msra.mxu0 0.0
    %2673 = vmatprep.subr.mxu0 0.0
    %2674 = vmatpush1.msra.mxu0 0.0
    %2675 = vmatprep.subr.mxu0 0.0
    %2676 = vmatpush1.msra.mxu0 0.0
    %2677 = vmatprep.subr.mxu0 0.0
    %2678 = vmatpush1.msra.mxu0 0.0
    %2679 = vmatprep.subr.mxu0 0.0
    %2680 = vmatpush1.msra.mxu0 0.0
    %2681 = vmatprep.subr.mxu0 0.0
    %2682 = vmatpush1.msra.mxu0 0.0
    %2683 = vmatprep.subr.mxu0 0.0
    %2684 = vmatpush1.msra.mxu0 0.0
    %2685 = vmatprep.subr.mxu0 0.0
    %2686 = vmatpush1.msra.mxu0 0.0
    %2687 = vmatprep.subr.mxu0 0.0
    %2688 = vmatpush1.msra.mxu0 0.0
    %2689 = vmatprep.subr.mxu0 0.0
    %2690 = vmatpush1.msra.mxu0 0.0
    %2691 = vmatprep.subr.mxu0 0.0
    %2692 = vmatpush1.msra.mxu0 0.0
    %2693 = vmatprep.subr.mxu0 0.0
    %2694 = vmatpush1.msra.mxu0 0.0
    %2695 = vmatprep.subr.mxu0 0.0
    %2696 = vmatpush1.msra.mxu0 0.0
    %2697 = vmatprep.subr.mxu0 0.0
    %2698 = vmatpush1.msra.mxu0 0.0
    %2699 = vmatprep.subr.mxu0 0.0
    %2700 = vmatpush1.msra.mxu0 0.0
    %2701 = vmatprep.subr.mxu0 0.0
    %2702 = vmatpush1.msra.mxu0 0.0
    %2703 = vmatprep.subr.mxu0 0.0
    %2704 = vmatpush1.msra.mxu0 0.0
    %2705 = vmatprep.subr.mxu0 0.0
    %2706 = vmatpush1.msra.mxu0 0.0
    %2707 = vmatprep.subr.mxu0 0.0
    %2708 = vmatpush1.msra.mxu0 0.0
    %2709 = vmatprep.subr.mxu0 0.0
    %2710 = vmatpush1.msra.mxu0 0.0
    %2711 = vmatprep.subr.mxu0 0.0
    %2712 = vmatpush1.msra.mxu0 0.0
    %2713 = vmatprep.subr.mxu0 0.0
    %2714 = vmatpush1.msra.mxu0 0.0
    %2715 = vmatprep.subr.mxu0 0.0
    %2716 = vmatpush1.msra.mxu0 0.0
    %2717 = vmatprep.subr.mxu0 0.0
    %2718 = vmatpush1.msra.mxu0 0.0
    %2719 = vmatprep.subr.mxu0 0.0
    %2720 = vmatpush1.msra.mxu0 0.0
    %2721 = vmatprep.subr.mxu0 0.0
    %2722 = vmatpush1.msra.mxu0 0.0
    %2723 = vmatprep.mubr.f32.mxu0 0.0
    %2724 = vmatmul.mubr.f32.gmra.mrb[0].mxu0 %v2648
    %v2725 = vpop.f32.mrb[0].mxu0
    %v2726 = vadd.f32 0.0, %v2725
    %v2727 = vpop.f32.mrb[0].mxu0
    %2728 = vmatprep.mubr.f32.mxu0 0.0
    %2729 = vmatmul.mubr.f32.gmra.mrb[0].mxu0 %v2651
    %v2730 = vpop.f32.mrb[0].mxu0
    %v2731 = vadd.f32 0.0, %v2730
    %v2732 = vpop.f32.mrb[0].mxu0
    %2733 = vmatprep.mubr.f32.mxu0 0.0
    %2734 = vmatmul.mubr.f32.gmra.mrb[0].mxu0 %v2654
    %v2735 = vpop.f32.mrb[0].mxu0
    %v2736 = vadd.f32 0.0, %v2735
    %v2737 = vpop.f32.mrb[0].mxu0
    %2738 = vmatprep.mubr.f32.mxu0 0.0
    %2739 = vmatmul.mubr.f32.gmra.mrb[0].mxu0 %v2657
    %v2740 = vpop.f32.mrb[0].mxu0
    %v2741 = vadd.f32 0.0, %v2740
    %v2742 = vpop.f32.mrb[0].mxu0
    %2743 = vdwg.mxu0
    %v2744 = vrcp.pop %v2625
    %v2745 = vrcp.pop %v2628
    %v2746 = vrcp.pop %v2631
    %v2747 = vrcp.pop %v2634
    %v2748 = vmul.f32 %v2726, %v2744
    %v2749 = vmul.f32 %v2731, %v2745
    %v2750 = vmul.f32 %v2736, %v2746
    %v2751 = vmul.f32 %v2741, %v2747
    %2752 = vrot.lane.b32.xlu0 %v2448, 112
    %v2753 = vpop.permute.xlu0 %2752
    %2754 = vrot.lane.b32.xlu0 %v2453, 112
    %v2755 = vpop.permute.xlu0 %2754
    %2756 = vrot.lane.b32.xlu0 %v2458, 112
    %v2757 = vpop.permute.xlu0 %2756
    %2758 = vrot.lane.b32.xlu0 %v2463, 112
    %v2759 = vpop.permute.xlu0 %2758
    %2760 = vrot.lane.b32.xlu0 %v2448, 80
    %v2761 = vpop.permute.xlu0 %2760
    %2762 = vrot.lane.b32.xlu0 %v2453, 80
    %v2763 = vpop.permute.xlu0 %2762
    %2764 = vrot.lane.b32.xlu0 %v2458, 80
    %v2765 = vpop.permute.xlu0 %2764
    %2766 = vrot.lane.b32.xlu0 %v2463, 80
    %v2767 = vpop.permute.xlu0 %2766
    %v2768 = vsel %vm484, %v2753, 0
    %v2770 = vsel %vm484, %v2755, 0
    %v2772 = vsel %vm484, %v2757, 0
    %v2774 = vsel %vm484, %v2759, 0
    %v2776 = vsel %vm484, %v2761, 0
    %v2778 = vsel %vm484, %v2763, 0
    %v2780 = vsel %vm484, %v2765, 0
    %v2782 = vsel %vm484, %v2767, 0
    %2784 = vmatprep.subr.mxu0 0.0
    %2785 = vmatpush1.xpose.msra.mxu0 %v2776
    %2786 = vmatprep.subr.mxu0 0.0
    %2787 = vmatpush1.xpose.msra.mxu0 %v2778
    %2788 = vmatprep.subr.mxu0 0.0
    %2789 = vmatpush1.xpose.msra.mxu0 %v2780
    %2790 = vmatprep.subr.mxu0 0.0
    %2791 = vmatpush1.xpose.msra.mxu0 %v2782
    %2792 = vmatprep.subr.mxu0 0.0
    %2793 = vmatpush1.xpose.msra.mxu0 0.0
    %2794 = vmatprep.subr.mxu0 0.0
    %2795 = vmatpush1.xpose.msra.mxu0 0.0
    %2796 = vmatprep.subr.mxu0 0.0
    %2797 = vmatpush1.xpose.msra.mxu0 0.0
    %2798 = vmatprep.subr.mxu0 0.0
    %2799 = vmatpush1.xpose.msra.mxu0 0.0
    %2800 = vmatprep.subr.mxu0 0.0
    %2801 = vmatpush1.xpose.msra.mxu0 0.0
    %2802 = vmatprep.subr.mxu0 0.0
    %2803 = vmatpush1.xpose.msra.mxu0 0.0
    %2804 = vmatprep.subr.mxu0 0.0
    %2805 = vmatpush1.xpose.msra.mxu0 0.0
    %2806 = vmatprep.subr.mxu0 0.0
    %2807 = vmatpush1.xpose.msra.mxu0 0.0
    %2808 = vmatprep.subr.mxu0 0.0
    %2809 = vmatpush1.xpose.msra.mxu0 0.0
    %2810 = vmatprep.subr.mxu0 0.0
    %2811 = vmatpush1.xpose.msra.mxu0 0.0
    %2812 = vmatprep.subr.mxu0 0.0
    %2813 = vmatpush1.xpose.msra.mxu0 0.0
    %2814 = vmatprep.subr.mxu0 0.0
    %2815 = vmatpush1.xpose.msra.mxu0 0.0
    %2816 = vmatprep.subr.mxu0 0.0
    %2817 = vmatpush1.xpose.msra.mxu0 0.0
    %2818 = vmatprep.subr.mxu0 0.0
    %2819 = vmatpush1.xpose.msra.mxu0 0.0
    %2820 = vmatprep.subr.mxu0 0.0
    %2821 = vmatpush1.xpose.msra.mxu0 0.0
    %2822 = vmatprep.subr.mxu0 0.0
    %2823 = vmatpush1.xpose.msra.mxu0 0.0
    %2824 = vmatprep.subr.mxu0 0.0
    %2825 = vmatpush1.xpose.msra.mxu0 0.0
    %2826 = vmatprep.subr.mxu0 0.0
    %2827 = vmatpush1.xpose.msra.mxu0 0.0
    %2828 = vmatprep.subr.mxu0 0.0
    %2829 = vmatpush1.xpose.msra.mxu0 0.0
    %2830 = vmatprep.subr.mxu0 0.0
    %2831 = vmatpush1.xpose.msra.mxu0 0.0
    %2832 = vmatprep.subr.mxu0 0.0
    %2833 = vmatpush1.xpose.msra.mxu0 0.0
    %2834 = vmatprep.subr.mxu0 0.0
    %2835 = vmatpush1.xpose.msra.mxu0 0.0
    %2836 = vmatprep.subr.mxu0 0.0
    %2837 = vmatpush1.xpose.msra.mxu0 0.0
    %2838 = vmatprep.subr.mxu0 0.0
    %2839 = vmatpush1.xpose.msra.mxu0 0.0
    %2840 = vmatprep.subr.mxu0 0.0
    %2841 = vmatpush1.xpose.msra.mxu0 0.0
    %2842 = vmatprep.subr.mxu0 0.0
    %2843 = vmatpush1.xpose.msra.mxu0 0.0
    %2844 = vmatprep.subr.mxu0 0.0
    %2845 = vmatpush1.xpose.msra.mxu0 0.0
    %2846 = vmatprep.subr.mxu0 0.0
    %2847 = vmatpush1.xpose.msra.mxu0 0.0
    %2848 = vmatprep.mubr.f32.mxu0 0.0
    %2849 = vmatmul.mubr.f32.gmra.mrb[0].mxu0 %v2768
    %v2850 = vpop.f32.mrb[0].mxu0
    %v2851 = vadd.f32 0.0, %v2850
    %v2852 = vpop.f32.mrb[0].mxu0
    %2853 = vmatprep.mubr.f32.mxu0 0.0
    %2854 = vmatmul.mubr.f32.gmra.mrb[0].mxu0 %v2770
    %v2855 = vpop.f32.mrb[0].mxu0
    %v2856 = vadd.f32 0.0, %v2855
    %v2857 = vpop.f32.mrb[0].mxu0
    %2858 = vmatprep.mubr.f32.mxu0 0.0
    %2859 = vmatmul.mubr.f32.gmra.mrb[0].mxu0 %v2772
    %v2860 = vpop.f32.mrb[0].mxu0
    %v2861 = vadd.f32 0.0, %v2860
    %v2862 = vpop.f32.mrb[0].mxu0
    %2863 = vmatprep.mubr.f32.mxu0 0.0
    %2864 = vmatmul.mubr.f32.gmra.mrb[0].mxu0 %v2774
    %v2865 = vpop.f32.mrb[0].mxu0
    %v2866 = vadd.f32 0.0, %v2865
    %v2867 = vpop.f32.mrb[0].mxu0
    %2868 = vdwg.mxu0
    %v2869 = vsel %vm74, %v2851, -inf
    %2870 = vmax.xlane.f32.xlu0 %v2869
    %v2871 = vpop.xlane.xlu0 %2870
    %v2872 = vsel %vm74, %v2856, -inf
    %2873 = vmax.xlane.f32.xlu0 %v2872
    %v2874 = vpop.xlane.xlu0 %2873
    %v2875 = vsel %vm74, %v2861, -inf
    %2876 = vmax.xlane.f32.xlu0 %v2875
    %v2877 = vpop.xlane.xlu0 %2876
    %v2878 = vsel %vm74, %v2866, -inf
    %2879 = vmax.xlane.f32.xlu0 %v2878
    %v2880 = vpop.xlane.xlu0 %2879
    %v2881 = vsub.f32 %v2851, %v2871
    %v2882 = vsub.f32 %v2856, %v2874
    %v2883 = vsub.f32 %v2861, %v2877
    %v2884 = vsub.f32 %v2866, %v2880
    %v2885 = vmul.f32 %v2881, 1.442695
    %v2886 = vpow.pop %v2885
    %v2887 = vmul.f32 %v2882, 1.442695
    %v2888 = vpow.pop %v2887
    %v2889 = vmul.f32 %v2883, 1.442695
    %v2890 = vpow.pop %v2889
    %v2891 = vmul.f32 %v2884, 1.442695
    %v2892 = vpow.pop %v2891
    %v2893 = vsel %vm74, %v2886, 0.0
    %2894 = vadd.xlane.f32.xlu0 %v2893
    %v2895 = vpop.xlane.xlu0 %2894
    %v2896 = vsel %vm74, %v2888, 0.0
    %2897 = vadd.xlane.f32.xlu0 %v2896
    %v2898 = vpop.xlane.xlu0 %2897
    %v2899 = vsel %vm74, %v2890, 0.0
    %2900 = vadd.xlane.f32.xlu0 %v2899
    %v2901 = vpop.xlane.xlu0 %2900
    %v2902 = vsel %vm74, %v2892, 0.0
    %2903 = vadd.xlane.f32.xlu0 %v2902
    %v2904 = vpop.xlane.xlu0 %2903
    %2905 = vrot.lane.b32.xlu0 %v2448, 48
    %v2906 = vpop.permute.xlu0 %2905
    %2907 = vrot.lane.b32.xlu0 %v2453, 48
    %v2908 = vpop.permute.xlu0 %2907
    %2909 = vrot.lane.b32.xlu0 %v2458, 48
    %v2910 = vpop.permute.xlu0 %2909
    %2911 = vrot.lane.b32.xlu0 %v2463, 48
    %v2912 = vpop.permute.xlu0 %2911
    %v2918 = vsel %vm74, %v2886, 0
    %v2921 = vsel %vm74, %v2888, 0
    %v2924 = vsel %vm74, %v2890, 0
    %v2927 = vsel %vm74, %v2892, 0
    %2929 = vmatprep.subr.mxu0 0.0
    %2930 = vmatpush1.msra.mxu0 %v2906
    %2931 = vmatprep.subr.mxu0 0.0
    %2932 = vmatpush1.msra.mxu0 %v2908
    %2933 = vmatprep.subr.mxu0 0.0
    %2934 = vmatpush1.msra.mxu0 %v2910
    %2935 = vmatprep.subr.mxu0 0.0
    %2936 = vmatpush1.msra.mxu0 %v2912
    %2937 = vmatprep.subr.mxu0 0.0
    %2938 = vmatpush1.msra.mxu0 0.0
    %2939 = vmatprep.subr.mxu0 0.0
    %2940 = vmatpush1.msra.mxu0 0.0
    %2941 = vmatprep.subr.mxu0 0.0
    %2942 = vmatpush1.msra.mxu0 0.0
    %2943 = vmatprep.subr.mxu0 0.0
    %2944 = vmatpush1.msra.mxu0 0.0
    %2945 = vmatprep.subr.mxu0 0.0
    %2946 = vmatpush1.msra.mxu0 0.0
    %2947 = vmatprep.subr.mxu0 0.0
    %2948 = vmatpush1.msra.mxu0 0.0
    %2949 = vmatprep.subr.mxu0 0.0
    %2950 = vmatpush1.msra.mxu0 0.0
    %2951 = vmatprep.subr.mxu0 0.0
    %2952 = vmatpush1.msra.mxu0 0.0
    %2953 = vmatprep.subr.mxu0 0.0
    %2954 = vmatpush1.msra.mxu0 0.0
    %2955 = vmatprep.subr.mxu0 0.0
    %2956 = vmatpush1.msra.mxu0 0.0
    %2957 = vmatprep.subr.mxu0 0.0
    %2958 = vmatpush1.msra.mxu0 0.0
    %2959 = vmatprep.subr.mxu0 0.0
    %2960 = vmatpush1.msra.mxu0 0.0
    %2961 = vmatprep.subr.mxu0 0.0
    %2962 = vmatpush1.msra.mxu0 0.0
    %2963 = vmatprep.subr.mxu0 0.0
    %2964 = vmatpush1.msra.mxu0 0.0
    %2965 = vmatprep.subr.mxu0 0.0
    %2966 = vmatpush1.msra.mxu0 0.0
    %2967 = vmatprep.subr.mxu0 0.0
    %2968 = vmatpush1.msra.mxu0 0.0
    %2969 = vmatprep.subr.mxu0 0.0
    %2970 = vmatpush1.msra.mxu0 0.0
    %2971 = vmatprep.subr.mxu0 0.0
    %2972 = vmatpush1.msra.mxu0 0.0
    %2973 = vmatprep.subr.mxu0 0.0
    %2974 = vmatpush1.msra.mxu0 0.0
    %2975 = vmatprep.subr.mxu0 0.0
    %2976 = vmatpush1.msra.mxu0 0.0
    %2977 = vmatprep.subr.mxu0 0.0
    %2978 = vmatpush1.msra.mxu0 0.0
    %2979 = vmatprep.subr.mxu0 0.0
    %2980 = vmatpush1.msra.mxu0 0.0
    %2981 = vmatprep.subr.mxu0 0.0
    %2982 = vmatpush1.msra.mxu0 0.0
    %2983 = vmatprep.subr.mxu0 0.0
    %2984 = vmatpush1.msra.mxu0 0.0
    %2985 = vmatprep.subr.mxu0 0.0
    %2986 = vmatpush1.msra.mxu0 0.0
    %2987 = vmatprep.subr.mxu0 0.0
    %2988 = vmatpush1.msra.mxu0 0.0
    %2989 = vmatprep.subr.mxu0 0.0
    %2990 = vmatpush1.msra.mxu0 0.0
    %2991 = vmatprep.subr.mxu0 0.0
    %2992 = vmatpush1.msra.mxu0 0.0
    %2993 = vmatprep.mubr.f32.mxu0 0.0
    %2994 = vmatmul.mubr.f32.gmra.mrb[0].mxu0 %v2918
    %v2995 = vpop.f32.mrb[0].mxu0
    %v2996 = vadd.f32 0.0, %v2995
    %v2997 = vpop.f32.mrb[0].mxu0
    %2998 = vmatprep.mubr.f32.mxu0 0.0
    %2999 = vmatmul.mubr.f32.gmra.mrb[0].mxu0 %v2921
    %v3000 = vpop.f32.mrb[0].mxu0
    %v3001 = vadd.f32 0.0, %v3000
    %v3002 = vpop.f32.mrb[0].mxu0
    %3003 = vmatprep.mubr.f32.mxu0 0.0
    %3004 = vmatmul.mubr.f32.gmra.mrb[0].mxu0 %v2924
    %v3005 = vpop.f32.mrb[0].mxu0
    %v3006 = vadd.f32 0.0, %v3005
    %v3007 = vpop.f32.mrb[0].mxu0
    %3008 = vmatprep.mubr.f32.mxu0 0.0
    %3009 = vmatmul.mubr.f32.gmra.mrb[0].mxu0 %v2927
    %v3010 = vpop.f32.mrb[0].mxu0
    %v3011 = vadd.f32 0.0, %v3010
    %v3012 = vpop.f32.mrb[0].mxu0
    %3013 = vdwg.mxu0
    %v3014 = vrcp.pop %v2895
    %v3015 = vrcp.pop %v2898
    %v3016 = vrcp.pop %v2901
    %v3017 = vrcp.pop %v2904
    %v3018 = vmul.f32 %v2996, %v3014
    %v3019 = vmul.f32 %v3001, %v3015
    %v3020 = vmul.f32 %v3006, %v3016
    %v3021 = vmul.f32 %v3011, %v3017
    %3026 = vrot.lane.b32.xlu0 %v3018, 16
    %v3027 = vpop.permute.xlu0 %3026
    %3028 = vrot.lane.b32.xlu0 %v3019, 16
    %v3029 = vpop.permute.xlu0 %3028
    %3030 = vrot.lane.b32.xlu0 %v3020, 16
    %v3031 = vpop.permute.xlu0 %3030
    %3032 = vrot.lane.b32.xlu0 %v3021, 16
    %v3033 = vpop.permute.xlu0 %3032
    %v3038 = vsel %vm484, %v2748, %v3027
    %v3039 = vsel %vm484, %v2749, %v3029
    %v3040 = vsel %vm484, %v2750, %v3031
    %v3041 = vsel %vm484, %v2751, %v3033
    %3046 = vrot.lane.b32.xlu0 %v2468, 96
    %v3047 = vpop.permute.xlu0 %3046
    %3048 = vrot.lane.b32.xlu0 %v2473, 96
    %v3049 = vpop.permute.xlu0 %3048
    %3050 = vrot.lane.b32.xlu0 %v2478, 96
    %v3051 = vpop.permute.xlu0 %3050
    %3052 = vrot.lane.b32.xlu0 %v2483, 96
    %v3053 = vpop.permute.xlu0 %3052
    %v3054 = vsel %vm484, %v2468, 0
    %v3056 = vsel %vm484, %v2473, 0
    %v3058 = vsel %vm484, %v2478, 0
    %v3060 = vsel %vm484, %v2483, 0
    %v3062 = vsel %vm484, %v3047, 0
    %v3064 = vsel %vm484, %v3049, 0
    %v3066 = vsel %vm484, %v3051, 0
    %v3068 = vsel %vm484, %v3053, 0
    %3070 = vmatprep.subr.mxu0 0.0
    %3071 = vmatpush1.xpose.msra.mxu0 %v3062
    %3072 = vmatprep.subr.mxu0 0.0
    %3073 = vmatpush1.xpose.msra.mxu0 %v3064
    %3074 = vmatprep.subr.mxu0 0.0
    %3075 = vmatpush1.xpose.msra.mxu0 %v3066
    %3076 = vmatprep.subr.mxu0 0.0
    %3077 = vmatpush1.xpose.msra.mxu0 %v3068
    %3078 = vmatprep.subr.mxu0 0.0
    %3079 = vmatpush1.xpose.msra.mxu0 0.0
    %3080 = vmatprep.subr.mxu0 0.0
    %3081 = vmatpush1.xpose.msra.mxu0 0.0
    %3082 = vmatprep.subr.mxu0 0.0
    %3083 = vmatpush1.xpose.msra.mxu0 0.0
    %3084 = vmatprep.subr.mxu0 0.0
    %3085 = vmatpush1.xpose.msra.mxu0 0.0
    %3086 = vmatprep.subr.mxu0 0.0
    %3087 = vmatpush1.xpose.msra.mxu0 0.0
    %3088 = vmatprep.subr.mxu0 0.0
    %3089 = vmatpush1.xpose.msra.mxu0 0.0
    %3090 = vmatprep.subr.mxu0 0.0
    %3091 = vmatpush1.xpose.msra.mxu0 0.0
    %3092 = vmatprep.subr.mxu0 0.0
    %3093 = vmatpush1.xpose.msra.mxu0 0.0
    %3094 = vmatprep.subr.mxu0 0.0
    %3095 = vmatpush1.xpose.msra.mxu0 0.0
    %3096 = vmatprep.subr.mxu0 0.0
    %3097 = vmatpush1.xpose.msra.mxu0 0.0
    %3098 = vmatprep.subr.mxu0 0.0
    %3099 = vmatpush1.xpose.msra.mxu0 0.0
    %3100 = vmatprep.subr.mxu0 0.0
    %3101 = vmatpush1.xpose.msra.mxu0 0.0
    %3102 = vmatprep.subr.mxu0 0.0
    %3103 = vmatpush1.xpose.msra.mxu0 0.0
    %3104 = vmatprep.subr.mxu0 0.0
    %3105 = vmatpush1.xpose.msra.mxu0 0.0
    %3106 = vmatprep.subr.mxu0 0.0
    %3107 = vmatpush1.xpose.msra.mxu0 0.0
    %3108 = vmatprep.subr.mxu0 0.0
    %3109 = vmatpush1.xpose.msra.mxu0 0.0
    %3110 = vmatprep.subr.mxu0 0.0
    %3111 = vmatpush1.xpose.msra.mxu0 0.0
    %3112 = vmatprep.subr.mxu0 0.0
    %3113 = vmatpush1.xpose.msra.mxu0 0.0
    %3114 = vmatprep.subr.mxu0 0.0
    %3115 = vmatpush1.xpose.msra.mxu0 0.0
    %3116 = vmatprep.subr.mxu0 0.0
    %3117 = vmatpush1.xpose.msra.mxu0 0.0
    %3118 = vmatprep.subr.mxu0 0.0
    %3119 = vmatpush1.xpose.msra.mxu0 0.0
    %3120 = vmatprep.subr.mxu0 0.0
    %3121 = vmatpush1.xpose.msra.mxu0 0.0
    %3122 = vmatprep.subr.mxu0 0.0
    %3123 = vmatpush1.xpose.msra.mxu0 0.0
    %3124 = vmatprep.subr.mxu0 0.0
    %3125 = vmatpush1.xpose.msra.mxu0 0.0
    %3126 = vmatprep.subr.mxu0 0.0
    %3127 = vmatpush1.xpose.msra.mxu0 0.0
    %3128 = vmatprep.subr.mxu0 0.0
    %3129 = vmatpush1.xpose.msra.mxu0 0.0
    %3130 = vmatprep.subr.mxu0 0.0
    %3131 = vmatpush1.xpose.msra.mxu0 0.0
    %3132 = vmatprep.subr.mxu0 0.0
    %3133 = vmatpush1.xpose.msra.mxu0 0.0
    %3134 = vmatprep.mubr.f32.mxu0 0.0
    %3135 = vmatmul.mubr.f32.gmra.mrb[0].mxu0 %v3054
    %v3136 = vpop.f32.mrb[0].mxu0
    %v3137 = vadd.f32 0.0, %v3136
    %v3138 = vpop.f32.mrb[0].mxu0
    %3139 = vmatprep.mubr.f32.mxu0 0.0
    %3140 = vmatmul.mubr.f32.gmra.mrb[0].mxu0 %v3056
    %v3141 = vpop.f32.mrb[0].mxu0
    %v3142 = vadd.f32 0.0, %v3141
    %v3143 = vpop.f32.mrb[0].mxu0
    %3144 = vmatprep.mubr.f32.mxu0 0.0
    %3145 = vmatmul.mubr.f32.gmra.mrb[0].mxu0 %v3058
    %v3146 = vpop.f32.mrb[0].mxu0
    %v3147 = vadd.f32 0.0, %v3146
    %v3148 = vpop.f32.mrb[0].mxu0
    %3149 = vmatprep.mubr.f32.mxu0 0.0
    %3150 = vmatmul.mubr.f32.gmra.mrb[0].mxu0 %v3060
    %v3151 = vpop.f32.mrb[0].mxu0
    %v3152 = vadd.f32 0.0, %v3151
    %v3153 = vpop.f32.mrb[0].mxu0
    %3154 = vdwg.mxu0
    %v3155 = vsel %vm74, %v3137, -inf
    %3156 = vmax.xlane.f32.xlu0 %v3155
    %v3157 = vpop.xlane.xlu0 %3156
    %v3158 = vsel %vm74, %v3142, -inf
    %3159 = vmax.xlane.f32.xlu0 %v3158
    %v3160 = vpop.xlane.xlu0 %3159
    %v3161 = vsel %vm74, %v3147, -inf
    %3162 = vmax.xlane.f32.xlu0 %v3161
    %v3163 = vpop.xlane.xlu0 %3162
    %v3164 = vsel %vm74, %v3152, -inf
    %3165 = vmax.xlane.f32.xlu0 %v3164
    %v3166 = vpop.xlane.xlu0 %3165
    %v3167 = vsub.f32 %v3137, %v3157
    %v3168 = vsub.f32 %v3142, %v3160
    %v3169 = vsub.f32 %v3147, %v3163
    %v3170 = vsub.f32 %v3152, %v3166
    %v3171 = vmul.f32 %v3167, 1.442695
    %v3172 = vpow.pop %v3171
    %v3173 = vmul.f32 %v3168, 1.442695
    %v3174 = vpow.pop %v3173
    %v3175 = vmul.f32 %v3169, 1.442695
    %v3176 = vpow.pop %v3175
    %v3177 = vmul.f32 %v3170, 1.442695
    %v3178 = vpow.pop %v3177
    %v3179 = vsel %vm74, %v3172, 0.0
    %3180 = vadd.xlane.f32.xlu0 %v3179
    %v3181 = vpop.xlane.xlu0 %3180
    %v3182 = vsel %vm74, %v3174, 0.0
    %3183 = vadd.xlane.f32.xlu0 %v3182
    %v3184 = vpop.xlane.xlu0 %3183
    %v3185 = vsel %vm74, %v3176, 0.0
    %3186 = vadd.xlane.f32.xlu0 %v3185
    %v3187 = vpop.xlane.xlu0 %3186
    %v3188 = vsel %vm74, %v3178, 0.0
    %3189 = vadd.xlane.f32.xlu0 %v3188
    %v3190 = vpop.xlane.xlu0 %3189
    %3191 = vrot.lane.b32.xlu0 %v2468, 64
    %v3192 = vpop.permute.xlu0 %3191
    %3193 = vrot.lane.b32.xlu0 %v2473, 64
    %v3194 = vpop.permute.xlu0 %3193
    %3195 = vrot.lane.b32.xlu0 %v2478, 64
    %v3196 = vpop.permute.xlu0 %3195
    %3197 = vrot.lane.b32.xlu0 %v2483, 64
    %v3198 = vpop.permute.xlu0 %3197
    %v3204 = vsel %vm74, %v3172, 0
    %v3207 = vsel %vm74, %v3174, 0
    %v3210 = vsel %vm74, %v3176, 0
    %v3213 = vsel %vm74, %v3178, 0
    %3215 = vmatprep.subr.mxu0 0.0
    %3216 = vmatpush1.msra.mxu0 %v3192
    %3217 = vmatprep.subr.mxu0 0.0
    %3218 = vmatpush1.msra.mxu0 %v3194
    %3219 = vmatprep.subr.mxu0 0.0
    %3220 = vmatpush1.msra.mxu0 %v3196
    %3221 = vmatprep.subr.mxu0 0.0
    %3222 = vmatpush1.msra.mxu0 %v3198
    %3223 = vmatprep.subr.mxu0 0.0
    %3224 = vmatpush1.msra.mxu0 0.0
    %3225 = vmatprep.subr.mxu0 0.0
    %3226 = vmatpush1.msra.mxu0 0.0
    %3227 = vmatprep.subr.mxu0 0.0
    %3228 = vmatpush1.msra.mxu0 0.0
    %3229 = vmatprep.subr.mxu0 0.0
    %3230 = vmatpush1.msra.mxu0 0.0
    %3231 = vmatprep.subr.mxu0 0.0
    %3232 = vmatpush1.msra.mxu0 0.0
    %3233 = vmatprep.subr.mxu0 0.0
    %3234 = vmatpush1.msra.mxu0 0.0
    %3235 = vmatprep.subr.mxu0 0.0
    %3236 = vmatpush1.msra.mxu0 0.0
    %3237 = vmatprep.subr.mxu0 0.0
    %3238 = vmatpush1.msra.mxu0 0.0
    %3239 = vmatprep.subr.mxu0 0.0
    %3240 = vmatpush1.msra.mxu0 0.0
    %3241 = vmatprep.subr.mxu0 0.0
    %3242 = vmatpush1.msra.mxu0 0.0
    %3243 = vmatprep.subr.mxu0 0.0
    %3244 = vmatpush1.msra.mxu0 0.0
    %3245 = vmatprep.subr.mxu0 0.0
    %3246 = vmatpush1.msra.mxu0 0.0
    %3247 = vmatprep.subr.mxu0 0.0
    %3248 = vmatpush1.msra.mxu0 0.0
    %3249 = vmatprep.subr.mxu0 0.0
    %3250 = vmatpush1.msra.mxu0 0.0
    %3251 = vmatprep.subr.mxu0 0.0
    %3252 = vmatpush1.msra.mxu0 0.0
    %3253 = vmatprep.subr.mxu0 0.0
    %3254 = vmatpush1.msra.mxu0 0.0
    %3255 = vmatprep.subr.mxu0 0.0
    %3256 = vmatpush1.msra.mxu0 0.0
    %3257 = vmatprep.subr.mxu0 0.0
    %3258 = vmatpush1.msra.mxu0 0.0
    %3259 = vmatprep.subr.mxu0 0.0
    %3260 = vmatpush1.msra.mxu0 0.0
    %3261 = vmatprep.subr.mxu0 0.0
    %3262 = vmatpush1.msra.mxu0 0.0
    %3263 = vmatprep.subr.mxu0 0.0
    %3264 = vmatpush1.msra.mxu0 0.0
    %3265 = vmatprep.subr.mxu0 0.0
    %3266 = vmatpush1.msra.mxu0 0.0
    %3267 = vmatprep.subr.mxu0 0.0
    %3268 = vmatpush1.msra.mxu0 0.0
    %3269 = vmatprep.subr.mxu0 0.0
    %3270 = vmatpush1.msra.mxu0 0.0
    %3271 = vmatprep.subr.mxu0 0.0
    %3272 = vmatpush1.msra.mxu0 0.0
    %3273 = vmatprep.subr.mxu0 0.0
    %3274 = vmatpush1.msra.mxu0 0.0
    %3275 = vmatprep.subr.mxu0 0.0
    %3276 = vmatpush1.msra.mxu0 0.0
    %3277 = vmatprep.subr.mxu0 0.0
    %3278 = vmatpush1.msra.mxu0 0.0
    %3279 = vmatprep.mubr.f32.mxu0 0.0
    %3280 = vmatmul.mubr.f32.gmra.mrb[0].mxu0 %v3204
    %v3281 = vpop.f32.mrb[0].mxu0
    %v3282 = vadd.f32 0.0, %v3281
    %v3283 = vpop.f32.mrb[0].mxu0
    %3284 = vmatprep.mubr.f32.mxu0 0.0
    %3285 = vmatmul.mubr.f32.gmra.mrb[0].mxu0 %v3207
    %v3286 = vpop.f32.mrb[0].mxu0
    %v3287 = vadd.f32 0.0, %v3286
    %v3288 = vpop.f32.mrb[0].mxu0
    %3289 = vmatprep.mubr.f32.mxu0 0.0
    %3290 = vmatmul.mubr.f32.gmra.mrb[0].mxu0 %v3210
    %v3291 = vpop.f32.mrb[0].mxu0
    %v3292 = vadd.f32 0.0, %v3291
    %v3293 = vpop.f32.mrb[0].mxu0
    %3294 = vmatprep.mubr.f32.mxu0 0.0
    %3295 = vmatmul.mubr.f32.gmra.mrb[0].mxu0 %v3213
    %v3296 = vpop.f32.mrb[0].mxu0
    %v3297 = vadd.f32 0.0, %v3296
    %v3298 = vpop.f32.mrb[0].mxu0
    %3299 = vdwg.mxu0
    %v3300 = vrcp.pop %v3181
    %v3301 = vrcp.pop %v3184
    %v3302 = vrcp.pop %v3187
    %v3303 = vrcp.pop %v3190
    %v3304 = vmul.f32 %v3282, %v3300
    %v3305 = vmul.f32 %v3287, %v3301
    %v3306 = vmul.f32 %v3292, %v3302
    %v3307 = vmul.f32 %v3297, %v3303
    %3308 = vrot.lane.b32.xlu0 %v2468, 112
    %v3309 = vpop.permute.xlu0 %3308
    %3310 = vrot.lane.b32.xlu0 %v2473, 112
    %v3311 = vpop.permute.xlu0 %3310
    %3312 = vrot.lane.b32.xlu0 %v2478, 112
    %v3313 = vpop.permute.xlu0 %3312
    %3314 = vrot.lane.b32.xlu0 %v2483, 112
    %v3315 = vpop.permute.xlu0 %3314
    %3316 = vrot.lane.b32.xlu0 %v2468, 80
    %v3317 = vpop.permute.xlu0 %3316
    %3318 = vrot.lane.b32.xlu0 %v2473, 80
    %v3319 = vpop.permute.xlu0 %3318
    %3320 = vrot.lane.b32.xlu0 %v2478, 80
    %v3321 = vpop.permute.xlu0 %3320
    %3322 = vrot.lane.b32.xlu0 %v2483, 80
    %v3323 = vpop.permute.xlu0 %3322
    %v3324 = vsel %vm484, %v3309, 0
    %v3326 = vsel %vm484, %v3311, 0
    %v3328 = vsel %vm484, %v3313, 0
    %v3330 = vsel %vm484, %v3315, 0
    %v3332 = vsel %vm484, %v3317, 0
    %v3334 = vsel %vm484, %v3319, 0
    %v3336 = vsel %vm484, %v3321, 0
    %v3338 = vsel %vm484, %v3323, 0
    %3340 = vmatprep.subr.mxu0 0.0
    %3341 = vmatpush1.xpose.msra.mxu0 %v3332
    %3342 = vmatprep.subr.mxu0 0.0
    %3343 = vmatpush1.xpose.msra.mxu0 %v3334
    %3344 = vmatprep.subr.mxu0 0.0
    %3345 = vmatpush1.xpose.msra.mxu0 %v3336
    %3346 = vmatprep.subr.mxu0 0.0
    %3347 = vmatpush1.xpose.msra.mxu0 %v3338
    %3348 = vmatprep.subr.mxu0 0.0
    %3349 = vmatpush1.xpose.msra.mxu0 0.0
    %3350 = vmatprep.subr.mxu0 0.0
    %3351 = vmatpush1.xpose.msra.mxu0 0.0
    %3352 = vmatprep.subr.mxu0 0.0
    %3353 = vmatpush1.xpose.msra.mxu0 0.0
    %3354 = vmatprep.subr.mxu0 0.0
    %3355 = vmatpush1.xpose.msra.mxu0 0.0
    %3356 = vmatprep.subr.mxu0 0.0
    %3357 = vmatpush1.xpose.msra.mxu0 0.0
    %3358 = vmatprep.subr.mxu0 0.0
    %3359 = vmatpush1.xpose.msra.mxu0 0.0
    %3360 = vmatprep.subr.mxu0 0.0
    %3361 = vmatpush1.xpose.msra.mxu0 0.0
    %3362 = vmatprep.subr.mxu0 0.0
    %3363 = vmatpush1.xpose.msra.mxu0 0.0
    %3364 = vmatprep.subr.mxu0 0.0
    %3365 = vmatpush1.xpose.msra.mxu0 0.0
    %3366 = vmatprep.subr.mxu0 0.0
    %3367 = vmatpush1.xpose.msra.mxu0 0.0
    %3368 = vmatprep.subr.mxu0 0.0
    %3369 = vmatpush1.xpose.msra.mxu0 0.0
    %3370 = vmatprep.subr.mxu0 0.0
    %3371 = vmatpush1.xpose.msra.mxu0 0.0
    %3372 = vmatprep.subr.mxu0 0.0
    %3373 = vmatpush1.xpose.msra.mxu0 0.0
    %3374 = vmatprep.subr.mxu0 0.0
    %3375 = vmatpush1.xpose.msra.mxu0 0.0
    %3376 = vmatprep.subr.mxu0 0.0
    %3377 = vmatpush1.xpose.msra.mxu0 0.0
    %3378 = vmatprep.subr.mxu0 0.0
    %3379 = vmatpush1.xpose.msra.mxu0 0.0
    %3380 = vmatprep.subr.mxu0 0.0
    %3381 = vmatpush1.xpose.msra.mxu0 0.0
    %3382 = vmatprep.subr.mxu0 0.0
    %3383 = vmatpush1.xpose.msra.mxu0 0.0
    %3384 = vmatprep.subr.mxu0 0.0
    %3385 = vmatpush1.xpose.msra.mxu0 0.0
    %3386 = vmatprep.subr.mxu0 0.0
    %3387 = vmatpush1.xpose.msra.mxu0 0.0
    %3388 = vmatprep.subr.mxu0 0.0
    %3389 = vmatpush1.xpose.msra.mxu0 0.0
    %3390 = vmatprep.subr.mxu0 0.0
    %3391 = vmatpush1.xpose.msra.mxu0 0.0
    %3392 = vmatprep.subr.mxu0 0.0
    %3393 = vmatpush1.xpose.msra.mxu0 0.0
    %3394 = vmatprep.subr.mxu0 0.0
    %3395 = vmatpush1.xpose.msra.mxu0 0.0
    %3396 = vmatprep.subr.mxu0 0.0
    %3397 = vmatpush1.xpose.msra.mxu0 0.0
    %3398 = vmatprep.subr.mxu0 0.0
    %3399 = vmatpush1.xpose.msra.mxu0 0.0
    %3400 = vmatprep.subr.mxu0 0.0
    %3401 = vmatpush1.xpose.msra.mxu0 0.0
    %3402 = vmatprep.subr.mxu0 0.0
    %3403 = vmatpush1.xpose.msra.mxu0 0.0
    %3404 = vmatprep.mubr.f32.mxu0 0.0
    %3405 = vmatmul.mubr.f32.gmra.mrb[0].mxu0 %v3324
    %v3406 = vpop.f32.mrb[0].mxu0
    %v3407 = vadd.f32 0.0, %v3406
    %v3408 = vpop.f32.mrb[0].mxu0
    %3409 = vmatprep.mubr.f32.mxu0 0.0
    %3410 = vmatmul.mubr.f32.gmra.mrb[0].mxu0 %v3326
    %v3411 = vpop.f32.mrb[0].mxu0
    %v3412 = vadd.f32 0.0, %v3411
    %v3413 = vpop.f32.mrb[0].mxu0
    %3414 = vmatprep.mubr.f32.mxu0 0.0
    %3415 = vmatmul.mubr.f32.gmra.mrb[0].mxu0 %v3328
    %v3416 = vpop.f32.mrb[0].mxu0
    %v3417 = vadd.f32 0.0, %v3416
    %v3418 = vpop.f32.mrb[0].mxu0
    %3419 = vmatprep.mubr.f32.mxu0 0.0
    %3420 = vmatmul.mubr.f32.gmra.mrb[0].mxu0 %v3330
    %v3421 = vpop.f32.mrb[0].mxu0
    %v3422 = vadd.f32 0.0, %v3421
    %v3423 = vpop.f32.mrb[0].mxu0
    %3424 = vdwg.mxu0
    %v3425 = vsel %vm74, %v3407, -inf
    %3426 = vmax.xlane.f32.xlu0 %v3425
    %v3427 = vpop.xlane.xlu0 %3426
    %v3428 = vsel %vm74, %v3412, -inf
    %3429 = vmax.xlane.f32.xlu0 %v3428
    %v3430 = vpop.xlane.xlu0 %3429
    %v3431 = vsel %vm74, %v3417, -inf
    %3432 = vmax.xlane.f32.xlu0 %v3431
    %v3433 = vpop.xlane.xlu0 %3432
    %v3434 = vsel %vm74, %v3422, -inf
    %3435 = vmax.xlane.f32.xlu0 %v3434
    %v3436 = vpop.xlane.xlu0 %3435
    %v3437 = vsub.f32 %v3407, %v3427
    %v3438 = vsub.f32 %v3412, %v3430
    %v3439 = vsub.f32 %v3417, %v3433
    %v3440 = vsub.f32 %v3422, %v3436
    %v3441 = vmul.f32 %v3437, 1.442695
    %v3442 = vpow.pop %v3441
    %v3443 = vmul.f32 %v3438, 1.442695
    %v3444 = vpow.pop %v3443
    %v3445 = vmul.f32 %v3439, 1.442695
    %v3446 = vpow.pop %v3445
    %v3447 = vmul.f32 %v3440, 1.442695
    %v3448 = vpow.pop %v3447
    %v3449 = vsel %vm74, %v3442, 0.0
    %3450 = vadd.xlane.f32.xlu0 %v3449
    %v3451 = vpop.xlane.xlu0 %3450
    %v3452 = vsel %vm74, %v3444, 0.0
    %3453 = vadd.xlane.f32.xlu0 %v3452
    %v3454 = vpop.xlane.xlu0 %3453
    %v3455 = vsel %vm74, %v3446, 0.0
    %3456 = vadd.xlane.f32.xlu0 %v3455
    %v3457 = vpop.xlane.xlu0 %3456
    %v3458 = vsel %vm74, %v3448, 0.0
    %3459 = vadd.xlane.f32.xlu0 %v3458
    %v3460 = vpop.xlane.xlu0 %3459
    %3461 = vrot.lane.b32.xlu0 %v2468, 48
    %v3462 = vpop.permute.xlu0 %3461
    %3463 = vrot.lane.b32.xlu0 %v2473, 48
    %v3464 = vpop.permute.xlu0 %3463
    %3465 = vrot.lane.b32.xlu0 %v2478, 48
    %v3466 = vpop.permute.xlu0 %3465
    %3467 = vrot.lane.b32.xlu0 %v2483, 48
    %v3468 = vpop.permute.xlu0 %3467
    %v3474 = vsel %vm74, %v3442, 0
    %v3477 = vsel %vm74, %v3444, 0
    %v3480 = vsel %vm74, %v3446, 0
    %v3483 = vsel %vm74, %v3448, 0
    %3485 = vmatprep.subr.mxu0 0.0
    %3486 = vmatpush1.msra.mxu0 %v3462
    %3487 = vmatprep.subr.mxu0 0.0
    %3488 = vmatpush1.msra.mxu0 %v3464
    %3489 = vmatprep.subr.mxu0 0.0
    %3490 = vmatpush1.msra.mxu0 %v3466
    %3491 = vmatprep.subr.mxu0 0.0
    %3492 = vmatpush1.msra.mxu0 %v3468
    %3493 = vmatprep.subr.mxu0 0.0
    %3494 = vmatpush1.msra.mxu0 0.0
    %3495 = vmatprep.subr.mxu0 0.0
    %3496 = vmatpush1.msra.mxu0 0.0
    %3497 = vmatprep.subr.mxu0 0.0
    %3498 = vmatpush1.msra.mxu0 0.0
    %3499 = vmatprep.subr.mxu0 0.0
    %3500 = vmatpush1.msra.mxu0 0.0
    %3501 = vmatprep.subr.mxu0 0.0
    %3502 = vmatpush1.msra.mxu0 0.0
    %3503 = vmatprep.subr.mxu0 0.0
    %3504 = vmatpush1.msra.mxu0 0.0
    %3505 = vmatprep.subr.mxu0 0.0
    %3506 = vmatpush1.msra.mxu0 0.0
    %3507 = vmatprep.subr.mxu0 0.0
    %3508 = vmatpush1.msra.mxu0 0.0
    %3509 = vmatprep.subr.mxu0 0.0
    %3510 = vmatpush1.msra.mxu0 0.0
    %3511 = vmatprep.subr.mxu0 0.0
    %3512 = vmatpush1.msra.mxu0 0.0
    %3513 = vmatprep.subr.mxu0 0.0
    %3514 = vmatpush1.msra.mxu0 0.0
    %3515 = vmatprep.subr.mxu0 0.0
    %3516 = vmatpush1.msra.mxu0 0.0
    %3517 = vmatprep.subr.mxu0 0.0
    %3518 = vmatpush1.msra.mxu0 0.0
    %3519 = vmatprep.subr.mxu0 0.0
    %3520 = vmatpush1.msra.mxu0 0.0
    %3521 = vmatprep.subr.mxu0 0.0
    %3522 = vmatpush1.msra.mxu0 0.0
    %3523 = vmatprep.subr.mxu0 0.0
    %3524 = vmatpush1.msra.mxu0 0.0
    %3525 = vmatprep.subr.mxu0 0.0
    %3526 = vmatpush1.msra.mxu0 0.0
    %3527 = vmatprep.subr.mxu0 0.0
    %3528 = vmatpush1.msra.mxu0 0.0
    %3529 = vmatprep.subr.mxu0 0.0
    %3530 = vmatpush1.msra.mxu0 0.0
    %3531 = vmatprep.subr.mxu0 0.0
    %3532 = vmatpush1.msra.mxu0 0.0
    %3533 = vmatprep.subr.mxu0 0.0
    %3534 = vmatpush1.msra.mxu0 0.0
    %3535 = vmatprep.subr.mxu0 0.0
    %3536 = vmatpush1.msra.mxu0 0.0
    %3537 = vmatprep.subr.mxu0 0.0
    %3538 = vmatpush1.msra.mxu0 0.0
    %3539 = vmatprep.subr.mxu0 0.0
    %3540 = vmatpush1.msra.mxu0 0.0
    %3541 = vmatprep.subr.mxu0 0.0
    %3542 = vmatpush1.msra.mxu0 0.0
    %3543 = vmatprep.subr.mxu0 0.0
    %3544 = vmatpush1.msra.mxu0 0.0
    %3545 = vmatprep.subr.mxu0 0.0
    %3546 = vmatpush1.msra.mxu0 0.0
    %3547 = vmatprep.subr.mxu0 0.0
    %3548 = vmatpush1.msra.mxu0 0.0
    %3549 = vmatprep.mubr.f32.mxu0 0.0
    %3550 = vmatmul.mubr.f32.gmra.mrb[0].mxu0 %v3474
    %v3551 = vpop.f32.mrb[0].mxu0
    %v3552 = vadd.f32 0.0, %v3551
    %v3553 = vpop.f32.mrb[0].mxu0
    %3554 = vmatprep.mubr.f32.mxu0 0.0
    %3555 = vmatmul.mubr.f32.gmra.mrb[0].mxu0 %v3477
    %v3556 = vpop.f32.mrb[0].mxu0
    %v3557 = vadd.f32 0.0, %v3556
    %v3558 = vpop.f32.mrb[0].mxu0
    %3559 = vmatprep.mubr.f32.mxu0 0.0
    %3560 = vmatmul.mubr.f32.gmra.mrb[0].mxu0 %v3480
    %v3561 = vpop.f32.mrb[0].mxu0
    %v3562 = vadd.f32 0.0, %v3561
    %v3563 = vpop.f32.mrb[0].mxu0
    %3564 = vmatprep.mubr.f32.mxu0 0.0
    %3565 = vmatmul.mubr.f32.gmra.mrb[0].mxu0 %v3483
    %v3566 = vpop.f32.mrb[0].mxu0
    %v3567 = vadd.f32 0.0, %v3566
    %v3568 = vpop.f32.mrb[0].mxu0
    %3569 = vdwg.mxu0
    %v3570 = vrcp.pop %v3451
    %v3571 = vrcp.pop %v3454
    %v3572 = vrcp.pop %v3457
    %v3573 = vrcp.pop %v3460
    %v3574 = vmul.f32 %v3552, %v3570
    %v3575 = vmul.f32 %v3557, %v3571
    %v3576 = vmul.f32 %v3562, %v3572
    %v3577 = vmul.f32 %v3567, %v3573
    %3582 = vrot.lane.b32.xlu0 %v3574, 16
    %v3583 = vpop.permute.xlu0 %3582
    %3584 = vrot.lane.b32.xlu0 %v3575, 16
    %v3585 = vpop.permute.xlu0 %3584
    %3586 = vrot.lane.b32.xlu0 %v3576, 16
    %v3587 = vpop.permute.xlu0 %3586
    %3588 = vrot.lane.b32.xlu0 %v3577, 16
    %v3589 = vpop.permute.xlu0 %3588
    %v3594 = vsel %vm484, %v3304, %v3583
    %v3595 = vsel %vm484, %v3305, %v3585
    %v3596 = vsel %vm484, %v3306, %v3587
    %v3597 = vsel %vm484, %v3307, %v3589
    %s3598 = scalar_lea.vmem %s6, 32
    %v3599 = vld [vmem:[%s3598] sm:$0xff]
    %v3600 = vld [vmem:[%s3598 + $0x8] sm:$0xff]
    %v3601 = vld [vmem:[%s3598 + $0x10] sm:$0xff]
    %v3602 = vld [vmem:[%s3598 + $0x18] sm:$0xff]
    %v3604 = vsel %vm74, %v3038, 0
    %v3607 = vsel %vm74, %v3039, 0
    %v3610 = vsel %vm74, %v3040, 0
    %v3613 = vsel %vm74, %v3041, 0
    %v3616 = vsel %vm74, %v3594, 0
    %v3619 = vsel %vm74, %v3595, 0
    %v3622 = vsel %vm74, %v3596, 0
    %v3625 = vsel %vm74, %v3597, 0
    %3627 = vmatprep.subr.mxu0 0.0
    %3628 = vmatpush1.msra.mxu0 %v3599
    %3629 = vmatprep.subr.mxu0 0.0
    %3630 = vmatpush1.msra.mxu0 %v3600
    %3631 = vmatprep.subr.mxu0 0.0
    %3632 = vmatpush1.msra.mxu0 %v3601
    %3633 = vmatprep.subr.mxu0 0.0
    %3634 = vmatpush1.msra.mxu0 %v3602
    %3635 = vmatprep.subr.mxu0 0.0
    %3636 = vmatpush1.msra.mxu0 0.0
    %3637 = vmatprep.subr.mxu0 0.0
    %3638 = vmatpush1.msra.mxu0 0.0
    %3639 = vmatprep.subr.mxu0 0.0
    %3640 = vmatpush1.msra.mxu0 0.0
    %3641 = vmatprep.subr.mxu0 0.0
    %3642 = vmatpush1.msra.mxu0 0.0
    %3643 = vmatprep.subr.mxu0 0.0
    %3644 = vmatpush1.msra.mxu0 0.0
    %3645 = vmatprep.subr.mxu0 0.0
    %3646 = vmatpush1.msra.mxu0 0.0
    %3647 = vmatprep.subr.mxu0 0.0
    %3648 = vmatpush1.msra.mxu0 0.0
    %3649 = vmatprep.subr.mxu0 0.0
    %3650 = vmatpush1.msra.mxu0 0.0
    %3651 = vmatprep.subr.mxu0 0.0
    %3652 = vmatpush1.msra.mxu0 0.0
    %3653 = vmatprep.subr.mxu0 0.0
    %3654 = vmatpush1.msra.mxu0 0.0
    %3655 = vmatprep.subr.mxu0 0.0
    %3656 = vmatpush1.msra.mxu0 0.0
    %3657 = vmatprep.subr.mxu0 0.0
    %3658 = vmatpush1.msra.mxu0 0.0
    %3659 = vmatprep.subr.mxu0 0.0
    %3660 = vmatpush1.msra.mxu0 0.0
    %3661 = vmatprep.subr.mxu0 0.0
    %3662 = vmatpush1.msra.mxu0 0.0
    %3663 = vmatprep.subr.mxu0 0.0
    %3664 = vmatpush1.msra.mxu0 0.0
    %3665 = vmatprep.subr.mxu0 0.0
    %3666 = vmatpush1.msra.mxu0 0.0
    %3667 = vmatprep.subr.mxu0 0.0
    %3668 = vmatpush1.msra.mxu0 0.0
    %3669 = vmatprep.subr.mxu0 0.0
    %3670 = vmatpush1.msra.mxu0 0.0
    %3671 = vmatprep.subr.mxu0 0.0
    %3672 = vmatpush1.msra.mxu0 0.0
    %3673 = vmatprep.subr.mxu0 0.0
    %3674 = vmatpush1.msra.mxu0 0.0
    %3675 = vmatprep.subr.mxu0 0.0
    %3676 = vmatpush1.msra.mxu0 0.0
    %3677 = vmatprep.subr.mxu0 0.0
    %3678 = vmatpush1.msra.mxu0 0.0
    %3679 = vmatprep.subr.mxu0 0.0
    %3680 = vmatpush1.msra.mxu0 0.0
    %3681 = vmatprep.subr.mxu0 0.0
    %3682 = vmatpush1.msra.mxu0 0.0
    %3683 = vmatprep.subr.mxu0 0.0
    %3684 = vmatpush1.msra.mxu0 0.0
    %3685 = vmatprep.subr.mxu0 0.0
    %3686 = vmatpush1.msra.mxu0 0.0
    %3687 = vmatprep.subr.mxu0 0.0
    %3688 = vmatpush1.msra.mxu0 0.0
    %3689 = vmatprep.subr.mxu0 0.0
    %3690 = vmatpush1.msra.mxu0 0.0
    %3691 = vmatprep.mubr.f32.mxu0 0.0
    %3692 = vmatmul.mubr.f32.gmra.mrb[0].mxu0 %v3604
    %v3693 = vpop.f32.mrb[0].mxu0
    %v3694 = vadd.f32 0.0, %v3693
    %v3695 = vpop.f32.mrb[0].mxu0
    %3696 = vmatprep.mubr.f32.mxu0 0.0
    %3697 = vmatmul.mubr.f32.gmra.mrb[0].mxu0 %v3607
    %v3698 = vpop.f32.mrb[0].mxu0
    %v3699 = vadd.f32 0.0, %v3698
    %v3700 = vpop.f32.mrb[0].mxu0
    %3701 = vmatprep.mubr.f32.mxu0 0.0
    %3702 = vmatmul.mubr.f32.gmra.mrb[0].mxu0 %v3610
    %v3703 = vpop.f32.mrb[0].mxu0
    %v3704 = vadd.f32 0.0, %v3703
    %v3705 = vpop.f32.mrb[0].mxu0
    %3706 = vmatprep.mubr.f32.mxu0 0.0
    %3707 = vmatmul.mubr.f32.gmra.mrb[0].mxu0 %v3613
    %v3708 = vpop.f32.mrb[0].mxu0
    %v3709 = vadd.f32 0.0, %v3708
    %v3710 = vpop.f32.mrb[0].mxu0
    %3711 = vmatprep.mubr.f32.mxu0 0.0
    %3712 = vmatmul.mubr.f32.gmra.mrb[0].mxu0 %v3616
    %v3713 = vpop.f32.mrb[0].mxu0
    %v3714 = vadd.f32 0.0, %v3713
    %v3715 = vpop.f32.mrb[0].mxu0
    %3716 = vmatprep.mubr.f32.mxu0 0.0
    %3717 = vmatmul.mubr.f32.gmra.mrb[0].mxu0 %v3619
    %v3718 = vpop.f32.mrb[0].mxu0
    %v3719 = vadd.f32 0.0, %v3718
    %v3720 = vpop.f32.mrb[0].mxu0
    %3721 = vmatprep.mubr.f32.mxu0 0.0
    %3722 = vmatmul.mubr.f32.gmra.mrb[0].mxu0 %v3622
    %v3723 = vpop.f32.mrb[0].mxu0
    %v3724 = vadd.f32 0.0, %v3723
    %v3725 = vpop.f32.mrb[0].mxu0
    %3726 = vmatprep.mubr.f32.mxu0 0.0
    %3727 = vmatmul.mubr.f32.gmra.mrb[0].mxu0 %v3625
    %v3728 = vpop.f32.mrb[0].mxu0
    %v3729 = vadd.f32 0.0, %v3728
    %v3730 = vpop.f32.mrb[0].mxu0
    %3731 = vdwg.mxu0
    %v3732 = vadd.f32 %v2208, %v3694
    %v3733 = vadd.f32 %v2209, %v3699
    %v3734 = vadd.f32 %v2210, %v3704
    %v3735 = vadd.f32 %v2211, %v3709
    %v3736 = vadd.f32 %v2212, %v3714
    %v3737 = vadd.f32 %v2213, %v3719
    %v3738 = vadd.f32 %v2214, %v3724
    %v3739 = vadd.f32 %v2215, %v3729
    %s3740 = scalar_lea.vmem %s7, 1
    %v3741 = vld [vmem:[%s3740] sm:$0x1]
    %v3743 = vlaneseq
    %v3744 = vshrl.u32 %v3743, 7
    %v3745 = vsub.s32 0, %v3744
    %v3746 = vrot.slane %v3741, %v3745
    %v3748 = vadd.f32 %v3732, %v3746
    %v3749 = vadd.f32 %v3733, %v3746
    %v3750 = vadd.f32 %v3734, %v3746
    %v3751 = vadd.f32 %v3735, %v3746
    %v3752 = vadd.f32 %v3736, %v3746
    %v3753 = vadd.f32 %v3737, %v3746
    %v3754 = vadd.f32 %v3738, %v3746
    %v3755 = vadd.f32 %v3739, %v3746
    %s3756 = scalar_lea.vmem %s8, 1
    %v3757 = vld [vmem:[%s3756] sm:$0x1]
    %s3758 = scalar_lea.vmem %s9, 1
    %v3759 = vld [vmem:[%s3758] sm:$0x1]
    %v3760 = vsel %vm74, %v3748, 0.0
    %3761 = vadd.xlane.f32.xlu0 %v3760
    %v3762 = vpop.xlane.xlu0 %3761
    %v3763 = vsel %vm74, %v3749, 0.0
    %3764 = vadd.xlane.f32.xlu0 %v3763
    %v3765 = vpop.xlane.xlu0 %3764
    %v3766 = vsel %vm74, %v3750, 0.0
    %3767 = vadd.xlane.f32.xlu0 %v3766
    %v3768 = vpop.xlane.xlu0 %3767
    %v3769 = vsel %vm74, %v3751, 0.0
    %3770 = vadd.xlane.f32.xlu0 %v3769
    %v3771 = vpop.xlane.xlu0 %3770
    %v3772 = vsel %vm74, %v3752, 0.0
    %3773 = vadd.xlane.f32.xlu0 %v3772
    %v3774 = vpop.xlane.xlu0 %3773
    %v3775 = vsel %vm74, %v3753, 0.0
    %3776 = vadd.xlane.f32.xlu0 %v3775
    %v3777 = vpop.xlane.xlu0 %3776
    %v3778 = vsel %vm74, %v3754, 0.0
    %3779 = vadd.xlane.f32.xlu0 %v3778
    %v3780 = vpop.xlane.xlu0 %3779
    %v3781 = vsel %vm74, %v3755, 0.0
    %3782 = vadd.xlane.f32.xlu0 %v3781
    %v3783 = vpop.xlane.xlu0 %3782
    %v3784 = vmul.f32 %v3762, %v230
    %v3785 = vmul.f32 %v3765, %v230
    %v3786 = vmul.f32 %v3768, %v230
    %v3787 = vmul.f32 %v3771, %v230
    %v3788 = vmul.f32 %v3774, %v230
    %v3789 = vmul.f32 %v3777, %v230
    %v3790 = vmul.f32 %v3780, %v230
    %v3791 = vmul.f32 %v3783, %v230
    %v3792 = vsub.f32 %v3748, %v3784
    %v3793 = vsub.f32 %v3749, %v3785
    %v3794 = vsub.f32 %v3750, %v3786
    %v3795 = vsub.f32 %v3751, %v3787
    %v3796 = vsub.f32 %v3752, %v3788
    %v3797 = vsub.f32 %v3753, %v3789
    %v3798 = vsub.f32 %v3754, %v3790
    %v3799 = vsub.f32 %v3755, %v3791
    %v3800 = vmul.f32 %v3792, %v3792
    %v3801 = vmul.f32 %v3793, %v3793
    %v3802 = vmul.f32 %v3794, %v3794
    %v3803 = vmul.f32 %v3795, %v3795
    %v3804 = vmul.f32 %v3796, %v3796
    %v3805 = vmul.f32 %v3797, %v3797
    %v3806 = vmul.f32 %v3798, %v3798
    %v3807 = vmul.f32 %v3799, %v3799
    %v3808 = vsel %vm74, %v3800, 0.0
    %3809 = vadd.xlane.f32.xlu0 %v3808
    %v3810 = vpop.xlane.xlu0 %3809
    %v3811 = vsel %vm74, %v3801, 0.0
    %3812 = vadd.xlane.f32.xlu0 %v3811
    %v3813 = vpop.xlane.xlu0 %3812
    %v3814 = vsel %vm74, %v3802, 0.0
    %3815 = vadd.xlane.f32.xlu0 %v3814
    %v3816 = vpop.xlane.xlu0 %3815
    %v3817 = vsel %vm74, %v3803, 0.0
    %3818 = vadd.xlane.f32.xlu0 %v3817
    %v3819 = vpop.xlane.xlu0 %3818
    %v3820 = vsel %vm74, %v3804, 0.0
    %3821 = vadd.xlane.f32.xlu0 %v3820
    %v3822 = vpop.xlane.xlu0 %3821
    %v3823 = vsel %vm74, %v3805, 0.0
    %3824 = vadd.xlane.f32.xlu0 %v3823
    %v3825 = vpop.xlane.xlu0 %3824
    %v3826 = vsel %vm74, %v3806, 0.0
    %3827 = vadd.xlane.f32.xlu0 %v3826
    %v3828 = vpop.xlane.xlu0 %3827
    %v3829 = vsel %vm74, %v3807, 0.0
    %3830 = vadd.xlane.f32.xlu0 %v3829
    %v3831 = vpop.xlane.xlu0 %3830
    %v3832 = vmul.f32 %v3810, %v230
    %v3833 = vmul.f32 %v3813, %v230
    %v3834 = vmul.f32 %v3816, %v230
    %v3835 = vmul.f32 %v3819, %v230
    %v3836 = vmul.f32 %v3822, %v230
    %v3837 = vmul.f32 %v3825, %v230
    %v3838 = vmul.f32 %v3828, %v230
    %v3839 = vmul.f32 %v3831, %v230
    %v3840 = vadd.f32 %v3832, 1e-05
    %v3841 = vadd.f32 %v3833, 1e-05
    %v3842 = vadd.f32 %v3834, 1e-05
    %v3843 = vadd.f32 %v3835, 1e-05
    %v3844 = vadd.f32 %v3836, 1e-05
    %v3845 = vadd.f32 %v3837, 1e-05
    %v3846 = vadd.f32 %v3838, 1e-05
    %v3847 = vadd.f32 %v3839, 1e-05
    %v3848 = vrsqrt.pop %v3840
    %v3849 = vrsqrt.pop %v3841
    %v3850 = vrsqrt.pop %v3842
    %v3851 = vrsqrt.pop %v3843
    %v3852 = vrsqrt.pop %v3844
    %v3853 = vrsqrt.pop %v3845
    %v3854 = vrsqrt.pop %v3846
    %v3855 = vrsqrt.pop %v3847
    %v3856 = vmul.f32 %v3792, %v3848
    %v3857 = vmul.f32 %v3793, %v3849
    %v3858 = vmul.f32 %v3794, %v3850
    %v3859 = vmul.f32 %v3795, %v3851
    %v3860 = vmul.f32 %v3796, %v3852
    %v3861 = vmul.f32 %v3797, %v3853
    %v3862 = vmul.f32 %v3798, %v3854
    %v3863 = vmul.f32 %v3799, %v3855
    %v3865 = vlaneseq
    %v3866 = vshrl.u32 %v3865, 7
    %v3867 = vsub.s32 0, %v3866
    %v3868 = vrot.slane %v3757, %v3867
    %v3870 = vmul.f32 %v3856, %v3868
    %v3871 = vmul.f32 %v3857, %v3868
    %v3872 = vmul.f32 %v3858, %v3868
    %v3873 = vmul.f32 %v3859, %v3868
    %v3874 = vmul.f32 %v3860, %v3868
    %v3875 = vmul.f32 %v3861, %v3868
    %v3876 = vmul.f32 %v3862, %v3868
    %v3877 = vmul.f32 %v3863, %v3868
    %v3879 = vlaneseq
    %v3880 = vshrl.u32 %v3879, 7
    %v3881 = vsub.s32 0, %v3880
    %v3882 = vrot.slane %v3759, %v3881
    %v3884 = vadd.f32 %v3870, %v3882
    %v3885 = vadd.f32 %v3871, %v3882
    %v3886 = vadd.f32 %v3872, %v3882
    %v3887 = vadd.f32 %v3873, %v3882
    %v3888 = vadd.f32 %v3874, %v3882
    %v3889 = vadd.f32 %v3875, %v3882
    %v3890 = vadd.f32 %v3876, %v3882
    %v3891 = vadd.f32 %v3877, %v3882
    %s3892 = scalar_lea.vmem %s10, 32
    %v3893 = vld [vmem:[%s3892] sm:$0xff]
    %v3894 = vld [vmem:[%s3892 + $0x8] sm:$0xff]
    %v3895 = vld [vmem:[%s3892 + $0x10] sm:$0xff]
    %v3896 = vld [vmem:[%s3892 + $0x18] sm:$0xff]
    %s3897 = scalar_lea.vmem %s11, 1
    %v3898 = vld [vmem:[%s3897] sm:$0x1]
    %v3900 = vlaneseq
    %v3901 = vshrl.u32 %v3900, 7
    %v3902 = vsub.s32 0, %v3901
    %v3903 = vrot.slane %v3898, %v3902
    %v3906 = vsel %vm74, %v3884, 0
    %v3909 = vsel %vm74, %v3885, 0
    %v3912 = vsel %vm74, %v3886, 0
    %v3915 = vsel %vm74, %v3887, 0
    %v3918 = vsel %vm74, %v3888, 0
    %v3921 = vsel %vm74, %v3889, 0
    %v3924 = vsel %vm74, %v3890, 0
    %v3927 = vsel %vm74, %v3891, 0
    %3929 = vmatprep.subr.mxu0 0.0
    %3930 = vmatpush1.msra.mxu0 %v3893
    %3931 = vmatprep.subr.mxu0 0.0
    %3932 = vmatpush1.msra.mxu0 %v3894
    %3933 = vmatprep.subr.mxu0 0.0
    %3934 = vmatpush1.msra.mxu0 %v3895
    %3935 = vmatprep.subr.mxu0 0.0
    %3936 = vmatpush1.msra.mxu0 %v3896
    %3937 = vmatprep.subr.mxu0 0.0
    %3938 = vmatpush1.msra.mxu0 0.0
    %3939 = vmatprep.subr.mxu0 0.0
    %3940 = vmatpush1.msra.mxu0 0.0
    %3941 = vmatprep.subr.mxu0 0.0
    %3942 = vmatpush1.msra.mxu0 0.0
    %3943 = vmatprep.subr.mxu0 0.0
    %3944 = vmatpush1.msra.mxu0 0.0
    %3945 = vmatprep.subr.mxu0 0.0
    %3946 = vmatpush1.msra.mxu0 0.0
    %3947 = vmatprep.subr.mxu0 0.0
    %3948 = vmatpush1.msra.mxu0 0.0
    %3949 = vmatprep.subr.mxu0 0.0
    %3950 = vmatpush1.msra.mxu0 0.0
    %3951 = vmatprep.subr.mxu0 0.0
    %3952 = vmatpush1.msra.mxu0 0.0
    %3953 = vmatprep.subr.mxu0 0.0
    %3954 = vmatpush1.msra.mxu0 0.0
    %3955 = vmatprep.subr.mxu0 0.0
    %3956 = vmatpush1.msra.mxu0 0.0
    %3957 = vmatprep.subr.mxu0 0.0
    %3958 = vmatpush1.msra.mxu0 0.0
    %3959 = vmatprep.subr.mxu0 0.0
    %3960 = vmatpush1.msra.mxu0 0.0
    %3961 = vmatprep.subr.mxu0 0.0
    %3962 = vmatpush1.msra.mxu0 0.0
    %3963 = vmatprep.subr.mxu0 0.0
    %3964 = vmatpush1.msra.mxu0 0.0
    %3965 = vmatprep.subr.mxu0 0.0
    %3966 = vmatpush1.msra.mxu0 0.0
    %3967 = vmatprep.subr.mxu0 0.0
    %3968 = vmatpush1.msra.mxu0 0.0
    %3969 = vmatprep.subr.mxu0 0.0
    %3970 = vmatpush1.msra.mxu0 0.0
    %3971 = vmatprep.subr.mxu0 0.0
    %3972 = vmatpush1.msra.mxu0 0.0
    %3973 = vmatprep.subr.mxu0 0.0
    %3974 = vmatpush1.msra.mxu0 0.0
    %3975 = vmatprep.subr.mxu0 0.0
    %3976 = vmatpush1.msra.mxu0 0.0
    %3977 = vmatprep.subr.mxu0 0.0
    %3978 = vmatpush1.msra.mxu0 0.0
    %3979 = vmatprep.subr.mxu0 0.0
    %3980 = vmatpush1.msra.mxu0 0.0
    %3981 = vmatprep.subr.mxu0 0.0
    %3982 = vmatpush1.msra.mxu0 0.0
    %3983 = vmatprep.subr.mxu0 0.0
    %3984 = vmatpush1.msra.mxu0 0.0
    %3985 = vmatprep.subr.mxu0 0.0
    %3986 = vmatpush1.msra.mxu0 0.0
    %3987 = vmatprep.subr.mxu0 0.0
    %3988 = vmatpush1.msra.mxu0 0.0
    %3989 = vmatprep.subr.mxu0 0.0
    %3990 = vmatpush1.msra.mxu0 0.0
    %3991 = vmatprep.subr.mxu0 0.0
    %3992 = vmatpush1.msra.mxu0 0.0
    %3993 = vmatprep.mubr.f32.mxu0 0.0
    %3994 = vmatmul.mubr.f32.gmra.mrb[0].mxu0 %v3906
    %v3995 = vpop.f32.mrb[0].mxu0
    %v3996 = vadd.f32 %v3903, %v3995
    %v3997 = vpop.f32.mrb[0].mxu0
    %3998 = vmatprep.mubr.f32.mxu0 0.0
    %3999 = vmatmul.mubr.f32.gmra.mrb[0].mxu0 %v3909
    %v4000 = vpop.f32.mrb[0].mxu0
    %v4001 = vadd.f32 %v3903, %v4000
    %v4002 = vpop.f32.mrb[0].mxu0
    %4003 = vmatprep.mubr.f32.mxu0 0.0
    %4004 = vmatmul.mubr.f32.gmra.mrb[0].mxu0 %v3912
    %v4005 = vpop.f32.mrb[0].mxu0
    %v4006 = vadd.f32 %v3903, %v4005
    %v4007 = vpop.f32.mrb[0].mxu0
    %4008 = vmatprep.mubr.f32.mxu0 0.0
    %4009 = vmatmul.mubr.f32.gmra.mrb[0].mxu0 %v3915
    %v4010 = vpop.f32.mrb[0].mxu0
    %v4011 = vadd.f32 %v3903, %v4010
    %v4012 = vpop.f32.mrb[0].mxu0
    %4013 = vmatprep.mubr.f32.mxu0 0.0
    %4014 = vmatmul.mubr.f32.gmra.mrb[0].mxu0 %v3918
    %v4015 = vpop.f32.mrb[0].mxu0
    %v4016 = vadd.f32 %v3903, %v4015
    %v4017 = vpop.f32.mrb[0].mxu0
    %4018 = vmatprep.mubr.f32.mxu0 0.0
    %4019 = vmatmul.mubr.f32.gmra.mrb[0].mxu0 %v3921
    %v4020 = vpop.f32.mrb[0].mxu0
    %v4021 = vadd.f32 %v3903, %v4020
    %v4022 = vpop.f32.mrb[0].mxu0
    %4023 = vmatprep.mubr.f32.mxu0 0.0
    %4024 = vmatmul.mubr.f32.gmra.mrb[0].mxu0 %v3924
    %v4025 = vpop.f32.mrb[0].mxu0
    %v4026 = vadd.f32 %v3903, %v4025
    %v4027 = vpop.f32.mrb[0].mxu0
    %4028 = vmatprep.mubr.f32.mxu0 0.0
    %4029 = vmatmul.mubr.f32.gmra.mrb[0].mxu0 %v3927
    %v4030 = vpop.f32.mrb[0].mxu0
    %v4031 = vadd.f32 %v3903, %v4030
    %v4032 = vpop.f32.mrb[0].mxu0
    %4033 = vdwg.mxu0
    %v4034 = vmul.f32 %v3996, 0.5
    %v4035 = vmul.f32 %v4001, 0.5
    %v4036 = vmul.f32 %v4006, 0.5
    %v4037 = vmul.f32 %v4011, 0.5
    %v4038 = vmul.f32 %v4016, 0.5
    %v4039 = vmul.f32 %v4021, 0.5
    %v4040 = vmul.f32 %v4026, 0.5
    %v4041 = vmul.f32 %v4031, 0.5
    %v4042 = vmul.f32 %v3996, 0.70710677
    %v4043 = vmul.f32 %v4001, 0.70710677
    %v4044 = vmul.f32 %v4006, 0.70710677
    %v4045 = vmul.f32 %v4011, 0.70710677
    %v4046 = vmul.f32 %v4016, 0.70710677
    %v4047 = vmul.f32 %v4021, 0.70710677
    %v4048 = vmul.f32 %v4026, 0.70710677
    %v4049 = vmul.f32 %v4031, 0.70710677
    %v4050 = verf.f32.pop %v4042
    %v4051 = verf.f32.pop %v4043
    %v4052 = verf.f32.pop %v4044
    %v4053 = verf.f32.pop %v4045
    %v4054 = verf.f32.pop %v4046
    %v4055 = verf.f32.pop %v4047
    %v4056 = verf.f32.pop %v4048
    %v4057 = verf.f32.pop %v4049
    %v4058 = vadd.f32 %v4050, 1.0
    %v4059 = vadd.f32 %v4051, 1.0
    %v4060 = vadd.f32 %v4052, 1.0
    %v4061 = vadd.f32 %v4053, 1.0
    %v4062 = vadd.f32 %v4054, 1.0
    %v4063 = vadd.f32 %v4055, 1.0
    %v4064 = vadd.f32 %v4056, 1.0
    %v4065 = vadd.f32 %v4057, 1.0
    %v4066 = vmul.f32 %v4034, %v4058
    %v4067 = vmul.f32 %v4035, %v4059
    %v4068 = vmul.f32 %v4036, %v4060
    %v4069 = vmul.f32 %v4037, %v4061
    %v4070 = vmul.f32 %v4038, %v4062
    %v4071 = vmul.f32 %v4039, %v4063
    %v4072 = vmul.f32 %v4040, %v4064
    %v4073 = vmul.f32 %v4041, %v4065
    %s4074 = scalar_lea.vmem %s12, 64
    %v4075 = vld [vmem:[%s4074] sm:$0xff]
    %v4076 = vld [vmem:[%s4074 + $0x8] sm:$0xff]
    %v4077 = vld [vmem:[%s4074 + $0x10] sm:$0xff]
    %v4078 = vld [vmem:[%s4074 + $0x18] sm:$0xff]
    %v4079 = vld [vmem:[%s4074 + $0x20] sm:$0xff]
    %v4080 = vld [vmem:[%s4074 + $0x28] sm:$0xff]
    %v4081 = vld [vmem:[%s4074 + $0x30] sm:$0xff]
    %v4082 = vld [vmem:[%s4074 + $0x38] sm:$0xff]
    %v4084 = vsel %vm2063, %v4066, 0
    %v4087 = vsel %vm2063, %v4067, 0
    %v4090 = vsel %vm2063, %v4068, 0
    %v4093 = vsel %vm2063, %v4069, 0
    %v4096 = vsel %vm2063, %v4070, 0
    %v4099 = vsel %vm2063, %v4071, 0
    %v4102 = vsel %vm2063, %v4072, 0
    %v4105 = vsel %vm2063, %v4073, 0
    %4107 = vmatprep.subr.mxu0 0.0
    %4108 = vmatpush1.msra.mxu0 %v4075
    %4109 = vmatprep.subr.mxu0 0.0
    %4110 = vmatpush1.msra.mxu0 %v4076
    %4111 = vmatprep.subr.mxu0 0.0
    %4112 = vmatpush1.msra.mxu0 %v4077
    %4113 = vmatprep.subr.mxu0 0.0
    %4114 = vmatpush1.msra.mxu0 %v4078
    %4115 = vmatprep.subr.mxu0 0.0
    %4116 = vmatpush1.msra.mxu0 %v4079
    %4117 = vmatprep.subr.mxu0 0.0
    %4118 = vmatpush1.msra.mxu0 %v4080
    %4119 = vmatprep.subr.mxu0 0.0
    %4120 = vmatpush1.msra.mxu0 %v4081
    %4121 = vmatprep.subr.mxu0 0.0
    %4122 = vmatpush1.msra.mxu0 %v4082
    %4123 = vmatprep.subr.mxu0 0.0
    %4124 = vmatpush1.msra.mxu0 0.0
    %4125 = vmatprep.subr.mxu0 0.0
    %4126 = vmatpush1.msra.mxu0 0.0
    %4127 = vmatprep.subr.mxu0 0.0
    %4128 = vmatpush1.msra.mxu0 0.0
    %4129 = vmatprep.subr.mxu0 0.0
    %4130 = vmatpush1.msra.mxu0 0.0
    %4131 = vmatprep.subr.mxu0 0.0
    %4132 = vmatpush1.msra.mxu0 0.0
    %4133 = vmatprep.subr.mxu0 0.0
    %4134 = vmatpush1.msra.mxu0 0.0
    %4135 = vmatprep.subr.mxu0 0.0
    %4136 = vmatpush1.msra.mxu0 0.0
    %4137 = vmatprep.subr.mxu0 0.0
    %4138 = vmatpush1.msra.mxu0 0.0
    %4139 = vmatprep.subr.mxu0 0.0
    %4140 = vmatpush1.msra.mxu0 0.0
    %4141 = vmatprep.subr.mxu0 0.0
    %4142 = vmatpush1.msra.mxu0 0.0
    %4143 = vmatprep.subr.mxu0 0.0
    %4144 = vmatpush1.msra.mxu0 0.0
    %4145 = vmatprep.subr.mxu0 0.0
    %4146 = vmatpush1.msra.mxu0 0.0
    %4147 = vmatprep.subr.mxu0 0.0
    %4148 = vmatpush1.msra.mxu0 0.0
    %4149 = vmatprep.subr.mxu0 0.0
    %4150 = vmatpush1.msra.mxu0 0.0
    %4151 = vmatprep.subr.mxu0 0.0
    %4152 = vmatpush1.msra.mxu0 0.0
    %4153 = vmatprep.subr.mxu0 0.0
    %4154 = vmatpush1.msra.mxu0 0.0
    %4155 = vmatprep.subr.mxu0 0.0
    %4156 = vmatpush1.msra.mxu0 0.0
    %4157 = vmatprep.subr.mxu0 0.0
    %4158 = vmatpush1.msra.mxu0 0.0
    %4159 = vmatprep.subr.mxu0 0.0
    %4160 = vmatpush1.msra.mxu0 0.0
    %4161 = vmatprep.subr.mxu0 0.0
    %4162 = vmatpush1.msra.mxu0 0.0
    %4163 = vmatprep.subr.mxu0 0.0
    %4164 = vmatpush1.msra.mxu0 0.0
    %4165 = vmatprep.subr.mxu0 0.0
    %4166 = vmatpush1.msra.mxu0 0.0
    %4167 = vmatprep.subr.mxu0 0.0
    %4168 = vmatpush1.msra.mxu0 0.0
    %4169 = vmatprep.subr.mxu0 0.0
    %4170 = vmatpush1.msra.mxu0 0.0
    %4171 = vmatprep.mubr.f32.mxu0 0.0
    %4172 = vmatmul.mubr.f32.gmra.mrb[0].mxu0 %v4084
    %v4173 = vpop.f32.mrb[0].mxu0
    %v4174 = vadd.f32 0.0, %v4173
    %v4175 = vpop.f32.mrb[0].mxu0
    %4176 = vmatprep.mubr.f32.mxu0 0.0
    %4177 = vmatmul.mubr.f32.gmra.mrb[0].mxu0 %v4087
    %v4178 = vpop.f32.mrb[0].mxu0
    %v4179 = vadd.f32 0.0, %v4178
    %v4180 = vpop.f32.mrb[0].mxu0
    %4181 = vmatprep.mubr.f32.mxu0 0.0
    %4182 = vmatmul.mubr.f32.gmra.mrb[0].mxu0 %v4090
    %v4183 = vpop.f32.mrb[0].mxu0
    %v4184 = vadd.f32 0.0, %v4183
    %v4185 = vpop.f32.mrb[0].mxu0
    %4186 = vmatprep.mubr.f32.mxu0 0.0
    %4187 = vmatmul.mubr.f32.gmra.mrb[0].mxu0 %v4093
    %v4188 = vpop.f32.mrb[0].mxu0
    %v4189 = vadd.f32 0.0, %v4188
    %v4190 = vpop.f32.mrb[0].mxu0
    %4191 = vmatprep.mubr.f32.mxu0 0.0
    %4192 = vmatmul.mubr.f32.gmra.mrb[0].mxu0 %v4096
    %v4193 = vpop.f32.mrb[0].mxu0
    %v4194 = vadd.f32 0.0, %v4193
    %v4195 = vpop.f32.mrb[0].mxu0
    %4196 = vmatprep.mubr.f32.mxu0 0.0
    %4197 = vmatmul.mubr.f32.gmra.mrb[0].mxu0 %v4099
    %v4198 = vpop.f32.mrb[0].mxu0
    %v4199 = vadd.f32 0.0, %v4198
    %v4200 = vpop.f32.mrb[0].mxu0
    %4201 = vmatprep.mubr.f32.mxu0 0.0
    %4202 = vmatmul.mubr.f32.gmra.mrb[0].mxu0 %v4102
    %v4203 = vpop.f32.mrb[0].mxu0
    %v4204 = vadd.f32 0.0, %v4203
    %v4205 = vpop.f32.mrb[0].mxu0
    %4206 = vmatprep.mubr.f32.mxu0 0.0
    %4207 = vmatmul.mubr.f32.gmra.mrb[0].mxu0 %v4105
    %v4208 = vpop.f32.mrb[0].mxu0
    %v4209 = vadd.f32 0.0, %v4208
    %v4210 = vpop.f32.mrb[0].mxu0
    %4211 = vdwg.mxu0
    %v4212 = vadd.f32 %v3748, %v4174
    %v4213 = vadd.f32 %v3749, %v4179
    %v4214 = vadd.f32 %v3750, %v4184
    %v4215 = vadd.f32 %v3751, %v4189
    %v4216 = vadd.f32 %v3752, %v4194
    %v4217 = vadd.f32 %v3753, %v4199
    %v4218 = vadd.f32 %v3754, %v4204
    %v4219 = vadd.f32 %v3755, %v4209
    %s4220 = scalar_lea.vmem %s13, 1
    %v4221 = vld [vmem:[%s4220] sm:$0x1]
    %v4223 = vlaneseq
    %v4224 = vshrl.u32 %v4223, 7
    %v4225 = vsub.s32 0, %v4224
    %v4226 = vrot.slane %v4221, %v4225
    %v4228 = vadd.f32 %v4212, %v4226
    %v4229 = vadd.f32 %v4213, %v4226
    %v4230 = vadd.f32 %v4214, %v4226
    %v4231 = vadd.f32 %v4215, %v4226
    %v4232 = vadd.f32 %v4216, %v4226
    %v4233 = vadd.f32 %v4217, %v4226
    %v4234 = vadd.f32 %v4218, %v4226
    %v4235 = vadd.f32 %v4219, %v4226
    %4236 = vxpose.xlu0.b32.start [1/16] %v4228, 128
    %4237 = vxpose.xlu0.b32.cont [2/16] %v4229, 128
    %4238 = vxpose.xlu0.b32.cont [3/16] %v4230, 128
    %4239 = vxpose.xlu0.b32.cont [4/16] %v4231, 128
    %4240 = vxpose.xlu0.b32.cont [5/16] 0.0, 128
    %4241 = vxpose.xlu0.b32.cont [6/16] 0.0, 128
    %4242 = vxpose.xlu0.b32.cont [7/16] 0.0, 128
    %4243 = vxpose.xlu0.b32.cont [8/16] 0.0, 128
    %4244 = vxpose.xlu0.b32.cont [9/16] 0.0, 128
    %4245 = vxpose.xlu0.b32.cont [10/16] 0.0, 128
    %4246 = vxpose.xlu0.b32.cont [11/16] 0.0, 128
    %4247 = vxpose.xlu0.b32.cont [12/16] 0.0, 128
    %4248 = vxpose.xlu0.b32.cont [13/16] 0.0, 128
    %4249 = vxpose.xlu0.b32.cont [14/16] 0.0, 128
    %4250 = vxpose.xlu0.b32.cont [15/16] 0.0, 128
    %4251 = vxpose.xlu0.b32.end [16/16] 0.0, 128
    %v4252 = vpop.trf.xlu0
    %v4253 = vpop.trf.xlu0
    %v4254 = vpop.trf.xlu0
    %v4255 = vpop.trf.xlu0
    %v4256 = vpop.trf.xlu0
    %v4257 = vpop.trf.xlu0
    %v4258 = vpop.trf.xlu0
    %v4259 = vpop.trf.xlu0
    %v4260 = vpop.trf.xlu0
    %v4261 = vpop.trf.xlu0
    %v4262 = vpop.trf.xlu0
    %v4263 = vpop.trf.xlu0
    %v4264 = vpop.trf.xlu0
    %v4265 = vpop.trf.xlu0
    %v4266 = vpop.trf.xlu0
    %v4267 = vpop.trf.xlu0
    %v4268 = vsel %vm74, %v4252, 0.0
    %v4269 = vsel %vm74, %v4253, 0.0
    %v4270 = vadd.f32 %v4268, %v4269
    %v4271 = vsel %vm74, %v4254, 0.0
    %v4272 = vadd.f32 %v4270, %v4271
    %v4273 = vsel %vm74, %v4255, 0.0
    %v4274 = vadd.f32 %v4272, %v4273
    %v4275 = vrot.slane %v4274, 4
    %v4276 = vadd.f32 %v4274, %v4275
    %v4277 = vrot.slane %v4276, 2
    %v4278 = vadd.f32 %v4276, %v4277
    %v4279 = vrot.slane %v4278, 1
    %v4280 = vadd.f32 %v4278, %v4279
    %v4281 = vmul.f32 %v4280, %v230
    %vm4282 = vcmask 253952
    %v4283 = vsel %vm4282, %v4281, 0.0
    %4284 = vadd.xlane.f32.xlu0 %v4283
    %v4285 = vpop.xlane.xlu0 %4284
    %v4286 = vrot.slane %v4285, 4
    %v4287 = vadd.f32 %v4285, %v4286
    %v4288 = vrot.slane %v4287, 2
    %v4289 = vadd.f32 %v4287, %v4288
    %v4290 = vrot.slane %v4289, 1
    %v4291 = vadd.f32 %v4289, %v4290
    %s4292 = vtos %v4291
    %v4293 = vrcp.pop 32.0
    %s4294 = vtos %v4293
    %s4295 = smul.f32 %s4292, %s4294
    %v4296 = vstv %s4295
    %v4297 = vsub.f32 %v4281, %v4296
    %v4298 = vmul.f32 %v4297, %v4297
    %v4299 = vsel %vm4282, %v4298, 0.0
    %4300 = vadd.xlane.f32.xlu0 %v4299
    %v4301 = vpop.xlane.xlu0 %4300
    %v4302 = vrot.slane %v4301, 4
    %v4303 = vadd.f32 %v4301, %v4302
    %v4304 = vrot.slane %v4303, 2
    %v4305 = vadd.f32 %v4303, %v4304
    %v4306 = vrot.slane %v4305, 1
    %v4307 = vadd.f32 %v4305, %v4306
    %s4308 = vtos %v4307
    %v4309 = vrcp.pop 32.0
    %s4310 = vtos %v4309
    %s4311 = smul.f32 %s4308, %s4310
    %s4312 = sadd.f32 %s4311, 1e-05
    %v4313 = vstv %s4312
    %v4314 = vrsqrt.pop %v4313
    %s4315 = vtos %v4314
    %v4316 = vstv %s4315
    %v4317 = vmul.f32 %v4297, %v4316
    %v4318 = vld [vmem:[%s14] sm:$0x1]
    %v4319 = vmul.f32 %v4317, %v4318
    %v4320 = vld [vmem:[%s15] sm:$0x1]
    %v4321 = vadd.f32 %v4319, %v4320
    %4322 = vxpose.xlu0.b32.start [1/16] %v4232, 128
    %4323 = vxpose.xlu0.b32.cont [2/16] %v4233, 128
    %4324 = vxpose.xlu0.b32.cont [3/16] %v4234, 128
    %4325 = vxpose.xlu0.b32.cont [4/16] %v4235, 128
    %4326 = vxpose.xlu0.b32.cont [5/16] 0.0, 128
    %4327 = vxpose.xlu0.b32.cont [6/16] 0.0, 128
    %4328 = vxpose.xlu0.b32.cont [7/16] 0.0, 128
    %4329 = vxpose.xlu0.b32.cont [8/16] 0.0, 128
    %4330 = vxpose.xlu0.b32.cont [9/16] 0.0, 128
    %4331 = vxpose.xlu0.b32.cont [10/16] 0.0, 128
    %4332 = vxpose.xlu0.b32.cont [11/16] 0.0, 128
    %4333 = vxpose.xlu0.b32.cont [12/16] 0.0, 128
    %4334 = vxpose.xlu0.b32.cont [13/16] 0.0, 128
    %4335 = vxpose.xlu0.b32.cont [14/16] 0.0, 128
    %4336 = vxpose.xlu0.b32.cont [15/16] 0.0, 128
    %4337 = vxpose.xlu0.b32.end [16/16] 0.0, 128
    %v4338 = vpop.trf.xlu0
    %v4339 = vpop.trf.xlu0
    %v4340 = vpop.trf.xlu0
    %v4341 = vpop.trf.xlu0
    %v4342 = vpop.trf.xlu0
    %v4343 = vpop.trf.xlu0
    %v4344 = vpop.trf.xlu0
    %v4345 = vpop.trf.xlu0
    %v4346 = vpop.trf.xlu0
    %v4347 = vpop.trf.xlu0
    %v4348 = vpop.trf.xlu0
    %v4349 = vpop.trf.xlu0
    %v4350 = vpop.trf.xlu0
    %v4351 = vpop.trf.xlu0
    %v4352 = vpop.trf.xlu0
    %v4353 = vpop.trf.xlu0
    %v4354 = vsel %vm74, %v4338, 0.0
    %v4355 = vsel %vm74, %v4339, 0.0
    %v4356 = vadd.f32 %v4354, %v4355
    %v4357 = vsel %vm74, %v4340, 0.0
    %v4358 = vadd.f32 %v4356, %v4357
    %v4359 = vsel %vm74, %v4341, 0.0
    %v4360 = vadd.f32 %v4358, %v4359
    %v4361 = vrot.slane %v4360, 4
    %v4362 = vadd.f32 %v4360, %v4361
    %v4363 = vrot.slane %v4362, 2
    %v4364 = vadd.f32 %v4362, %v4363
    %v4365 = vrot.slane %v4364, 1
    %v4366 = vadd.f32 %v4364, %v4365
    %v4367 = vmul.f32 %v4366, %v230
    %v4368 = vsel %vm4282, %v4367, 0.0
    %4369 = vadd.xlane.f32.xlu0 %v4368
    %v4370 = vpop.xlane.xlu0 %4369
    %v4371 = vrot.slane %v4370, 4
    %v4372 = vadd.f32 %v4370, %v4371
    %v4373 = vrot.slane %v4372, 2
    %v4374 = vadd.f32 %v4372, %v4373
    %v4375 = vrot.slane %v4374, 1
    %v4376 = vadd.f32 %v4374, %v4375
    %s4377 = vtos %v4376
    %v4378 = vrcp.pop 32.0
    %s4379 = vtos %v4378
    %s4380 = smul.f32 %s4377, %s4379
    %v4381 = vstv %s4380
    %v4382 = vsub.f32 %v4367, %v4381
    %v4383 = vmul.f32 %v4382, %v4382
    %v4384 = vsel %vm4282, %v4383, 0.0
    %4385 = vadd.xlane.f32.xlu0 %v4384
    %v4386 = vpop.xlane.xlu0 %4385
    %v4387 = vrot.slane %v4386, 4
    %v4388 = vadd.f32 %v4386, %v4387
    %v4389 = vrot.slane %v4388, 2
    %v4390 = vadd.f32 %v4388, %v4389
    %v4391 = vrot.slane %v4390, 1
    %v4392 = vadd.f32 %v4390, %v4391
    %s4393 = vtos %v4392
    %v4394 = vrcp.pop 32.0
    %s4395 = vtos %v4394
    %s4396 = smul.f32 %s4393, %s4395
    %s4397 = sadd.f32 %s4396, 1e-05
    %v4398 = vstv %s4397
    %v4399 = vrsqrt.pop %v4398
    %s4400 = vtos %v4399
    %v4401 = vstv %s4400
    %v4402 = vmul.f32 %v4382, %v4401
    %v4403 = vmul.f32 %v4402, %v4318
    %v4404 = vadd.f32 %v4403, %v4320
    %v4406 = vrot.slane %v4404, 7
    %vm4408 = vcmask 1040384
    %v4409 = vsel %vm4408, %v4321, %v4406
    %vm4410 = vcmask 254976
    %4411 = vst.msk [vmem:[#allocation2] sm:$0x3] %vm4410, %v4409
    // Predicated region
    $region66: #{ct_forward.1} parent=1 // pred_check
      _
    $region67: #{ct_forward.1} parent=1 // pred_check_branch
      %4413 = sbr.rel (0) target = $region69
    $region68: #{ct_forward.1} parent=1 // pred_region
      %s4415 = ssub.s32 32, 32
      %4416 = vsyncadd [#allocation3], %s4415
      %s4418 = sshll.u32 [#allocation2], 4
      %s4419 = int_to_ptr.vmem [resolvable:$true] %s4418
      %4421 = dma.vmem_to_hbm [thread:$0]  %s4419, 32, %s16, [#allocation3]
    $region69: #{ct_forward.1} parent=1 // pred_fallthru
      _
    // Predicated region
    $region70: #{ct_forward.1} parent=1 // pred_check
      _
    $region71: #{ct_forward.1} parent=1 // pred_check_branch
      %4423 = sbr.rel (0) target = $region73
    $region72: #{ct_forward.1} parent=1 // pred_region
      %4424 = dma.done [#allocation3], 32
    $region73: #{ct_forward.1} parent=1 // pred_fallthru
      _
    %4425 = vsyncpa [#allocation3], 1

</llo_original>
